<compile_context>
chip_gen: v7x
topology: tpu7x:2x2x1
jax: 0.10.0
libtpu: 0.0.40
codegen_flags: <defaults>
</compile_context>

<pallas_src>
import jax
import jax.numpy as jnp
from jax.experimental import pallas as pl
from jax.experimental.pallas import tpu as pltpu

DIM = 32
HEADS = 4          # heads collapse for seq_len == 1 (softmax over one key == 1)
ENC_LAYERS = 2
FFN = 2048         # PyTorch TransformerEncoderLayer default dim_feedforward
BATCH = 8
LN_EPS = 1e-5      # PyTorch LayerNorm default eps
LANES = 128        # lane width of the packed parameter / output slabs

# ---- packed f32 parameter-slab row layout (all static Python ints) ----
ATTN_BASE = 0                                   # rows [DIM*l, DIM*(l+1)), lanes 0..DIM-1
VECS_PER_LAYER = 6                              # b_attn, ln1_w, ln1_b, lin2_b, ln2_w, ln2_b
VEC_BASE = ENC_LAYERS * DIM                     # one row per vector, lanes 0..DIM-1
PACK_BASE = VEC_BASE + VECS_PER_LAYER * ENC_LAYERS   # [DIM,128] pack matrix (emb | logit)
PACK_BIAS_ROW = PACK_BASE + DIM                 # [1,128] pack bias (cls_b at lane DIM)
SLAB_ROWS = ((PACK_BIAS_ROW + 1 + 7) // 8) * 8  # pad rows to a sublane multiple


def _layer_norm(h, w, b):
    mu = jnp.mean(h, axis=-1, keepdims=True)
    var = jnp.mean((h - mu) ** 2, axis=-1, keepdims=True)
    return (h - mu) * jax.lax.rsqrt(var + LN_EPS) * w + b


def pose_binary_kernel(x_ref, slab_ref, l1b_ref, l1w_ref, l2w_ref, out_ref):
    h = x_ref[...]                                            # [B, D] f32
    for l in range(ENC_LAYERS):                               # static 2-iter unroll
        w_attn = slab_ref[ATTN_BASE + DIM * l:ATTN_BASE + DIM * (l + 1), 0:DIM]
        base = VEC_BASE + VECS_PER_LAYER * l
        b_attn = slab_ref[base + 0:base + 1, 0:DIM]
        ln1_w = slab_ref[base + 1:base + 2, 0:DIM]
        ln1_b = slab_ref[base + 2:base + 3, 0:DIM]
        l2_b = slab_ref[base + 3:base + 4, 0:DIM]
        ln2_w = slab_ref[base + 4:base + 5, 0:DIM]
        ln2_b = slab_ref[base + 5:base + 6, 0:DIM]

        # ---- self-attention, host-fused to a single matmul (seq_len == 1) ----
        attn = jnp.dot(h, w_attn, preferred_element_type=jnp.float32) + b_attn
        h = _layer_norm(h + attn, ln1_w, ln1_b)

        # ---- feed-forward: bf16 weights on the MXU, f32 accumulate/VPU math ----
        ff = jnp.dot(h.astype(jnp.bfloat16), l1w_ref[l],      # [B,D] x [D,FFN]
                     preferred_element_type=jnp.float32) + l1b_ref[l:l + 1, :]
        ff = jnp.maximum(ff, 0.0)
        ff = jnp.dot(ff.astype(jnp.bfloat16), l2w_ref[l],     # [B,FFN] x [FFN,D]
                     preferred_element_type=jnp.float32) + l2_b
        h = _layer_norm(h + ff, ln2_w, ln2_b)

    # ---- single lane-dense output store: lanes 0..D-1 = emb, lane D = logit ----
    # pack matrix = [ I_DxD | cls_w | 0 ], pack bias has cls_b at lane D.
    pack_w = slab_ref[PACK_BASE:PACK_BASE + DIM, :]           # [D, 128]
    pack_b = slab_ref[PACK_BIAS_ROW:PACK_BIAS_ROW + 1, :]     # [1, 128]
    out_ref[...] = jnp.dot(h, pack_w, preferred_element_type=jnp.float32) + pack_b


def make_params(key):
    """Parameters in PyTorch layout (f32), matching nn.TransformerEncoder."""
    ks = jax.random.split(key, 14)

    def nrm(k, shape, scale=0.05):
        return scale * jax.random.normal(k, shape, dtype=jnp.float32)

    return dict(
        in_proj_w=nrm(ks[0], (ENC_LAYERS, 3 * DIM, DIM)),
        in_proj_b=nrm(ks[1], (ENC_LAYERS, 3 * DIM)),
        out_proj_w=nrm(ks[2], (ENC_LAYERS, DIM, DIM)),
        out_proj_b=nrm(ks[3], (ENC_LAYERS, DIM)),
        ln1_w=1.0 + nrm(ks[4], (ENC_LAYERS, DIM)),
        ln1_b=nrm(ks[5], (ENC_LAYERS, DIM)),
        lin1_w=nrm(ks[6], (ENC_LAYERS, FFN, DIM)),
        lin1_b=nrm(ks[7], (ENC_LAYERS, FFN)),
        lin2_w=nrm(ks[8], (ENC_LAYERS, DIM, FFN)),
        lin2_b=nrm(ks[9], (ENC_LAYERS, DIM)),
        ln2_w=1.0 + nrm(ks[10], (ENC_LAYERS, DIM)),
        ln2_b=nrm(ks[11], (ENC_LAYERS, DIM)),
        cls_w=nrm(ks[12], (1, DIM)),
        cls_b=nrm(ks[13], (1,)),
    )


def prepare_kernel_params(p):
    """One-time host prep: fuse attention pair, pack tiny params into one
    lane-aligned slab, pre-transpose FFN weights (lane-dense RHS) as bf16."""
    hi = jax.lax.Precision.HIGHEST
    Wv = p["in_proj_w"][:, 2 * DIM:3 * DIM, :]                 # [L, D, D]
    bv = p["in_proj_b"][:, 2 * DIM:3 * DIM]                    # [L, D]
    Wo = p["out_proj_w"]                                       # [L, D, D]
    bo = p["out_proj_b"]                                       # [L, D]
    # attn(h) = (h Wv^T + bv) Wo^T + bo = h @ w_attn + b_attn  (f32 compose)
    w_attn = jnp.einsum("lij,lki->ljk", Wv, Wo, precision=hi)  # [L, D, D]
    b_attn = jnp.einsum("li,lki->lk", bv, Wo, precision=hi) + bo

    slab = jnp.zeros((SLAB_ROWS, LANES), jnp.float32)
    for l in range(ENC_LAYERS):
        slab = slab.at[ATTN_BASE + DIM * l:ATTN_BASE + DIM * (l + 1),
                       0:DIM].set(w_attn[l])
        base = VEC_BASE + VECS_PER_LAYER * l
        vecs = jnp.stack([b_attn[l], p["ln1_w"][l], p["ln1_b"][l],
                          p["lin2_b"][l], p["ln2_w"][l], p["ln2_b"][l]])
        slab = slab.at[base:base + VECS_PER_LAYER, 0:DIM].set(vecs)
    pack = jnp.zeros((DIM, LANES), jnp.float32)
    pack = pack.at[:, 0:DIM].set(jnp.eye(DIM, dtype=jnp.float32))
    pack = pack.at[:, DIM].set(p["cls_w"][0])
    slab = slab.at[PACK_BASE:PACK_BASE + DIM, :].set(pack)
    slab = slab.at[PACK_BIAS_ROW, DIM].set(p["cls_b"][0])

    return dict(
        slab=slab,                                                        # [112,128] f32
        lin1_b=p["lin1_b"],                                               # [L, FFN] f32
        lin1_w=jnp.transpose(p["lin1_w"], (0, 2, 1)).astype(jnp.bfloat16),  # [L, D, FFN]
        lin2_w=jnp.transpose(p["lin2_w"], (0, 2, 1)).astype(jnp.bfloat16),  # [L, FFN, D]
    )


@jax.jit
def pose_binary_forward(x, kp):
    # x: [batch, seq_len=1, dim]  (same convention as the PyTorch module)
    B = x.shape[0]
    x2d = jnp.transpose(x, (1, 0, 2))[0]       # permute(1,0,2) + squeeze(0) -> [B, D]
    vmem = pl.BlockSpec(memory_space=pltpu.MemorySpace.VMEM)
    out = pl.pallas_call(
        pose_binary_kernel,
        out_shape=jax.ShapeDtypeStruct((B, LANES), jnp.float32),
        in_specs=[vmem] * 5,
        out_specs=vmem,
    )(x2d, kp["slab"], kp["lin1_b"], kp["lin1_w"], kp["lin2_w"])
    # lane 0..D-1 = embeddings, lane D = classifier logit
    return out[:, DIM], out[:, :DIM]            # (.squeeze(1) as in PyTorch)


def reference_forward(x, p):
    """Pure-JAX reference of the eval-mode forward: un-fused two-step attention
    in f32 (HIGHEST), bf16 FFN matmuls mirroring the kernel's precision."""
    hi = jax.lax.Precision.HIGHEST
    h = jnp.transpose(x, (1, 0, 2))[0]
    for l in range(ENC_LAYERS):
        wv = p["in_proj_w"][l, 2 * DIM:3 * DIM]
        bv = p["in_proj_b"][l, 2 * DIM:3 * DIM]
        v = jnp.dot(h, wv.T, precision=hi) + bv
        attn = jnp.dot(v, p["out_proj_w"][l].T, precision=hi) + p["out_proj_b"][l]
        h = _layer_norm(h + attn, p["ln1_w"][l], p["ln1_b"][l])
        w1 = jnp.transpose(p["lin1_w"][l]).astype(jnp.bfloat16)
        w2 = jnp.transpose(p["lin2_w"][l]).astype(jnp.bfloat16)
        ff = jnp.dot(h.astype(jnp.bfloat16), w1,
                     preferred_element_type=jnp.float32) + p["lin1_b"][l]
        ff = jnp.maximum(ff, 0.0)
        ff = jnp.dot(ff.astype(jnp.bfloat16), w2,
                     preferred_element_type=jnp.float32) + p["lin2_b"][l]
        h = _layer_norm(h + ff, p["ln2_w"][l], p["ln2_b"][l])
    logits = jnp.sum(h * p["cls_w"], axis=-1) + p["cls_b"]
    return logits, h


# NOTE: bf16 FFN weights intentionally deviate from PyTorch's f32 forward
# (reference mirrors it); switch lin1_w/lin2_w back to f32 if strict parity
# with the original module is required.
# TODO(synk): compute_loss (BCEWithLogitsLoss / TripletMarginLoss /
#             MultiSimilarityMiner) is training-only and not part of forward.

if __name__ == "__main__":
    key = jax.random.PRNGKey(0)
    kx, kp_key = jax.random.split(key)
    x = jax.random.normal(kx, (BATCH, 1, DIM), dtype=jnp.float32)
    params = make_params(kp_key)
    kparams = prepare_kernel_params(params)

    logits, emb = pose_binary_forward(x, kparams)
    jax.block_until_ready((logits, emb))

    ref_logits, ref_emb = reference_forward(x, params)
    assert logits.shape == (BATCH,) and emb.shape == (BATCH, DIM)
    assert jnp.allclose(logits, ref_logits, atol=1e-3, rtol=1e-3)
    assert jnp.allclose(emb, ref_emb, atol=1e-3, rtol=1e-3)

    print("KERNEL_OK")
</pallas_src>

<mosaic_0001>
module attributes {stable_mosaic.version = 11 : i64} {
  func.func @pose_binary_kernel(%arg0: memref<8x32xf32, #tpu.memory_space<vmem>>, %arg1: memref<112x128xf32, #tpu.memory_space<vmem>>, %arg2: memref<2x2048xf32, #tpu.memory_space<vmem>>, %arg3: memref<2x32x2048xbf16, #tpu.memory_space<vmem>>, %arg4: memref<2x2048x32xbf16, #tpu.memory_space<vmem>>, %arg5: memref<8x128xf32, #tpu.memory_space<vmem>>) attributes {dimension_semantics = [], scalar_prefetch = 0 : i64, scratch_operands = 0 : i64, tpu.core_type = #tpu.core_type<tc>} {
    %c0 = arith.constant 0 : index
    %c0_0 = arith.constant 0 : index
    %0 = vector.load %arg0[%c0, %c0_0] : memref<8x32xf32, #tpu.memory_space<vmem>>, vector<8x32xf32>
    %c0_1 = arith.constant 0 : index
    %c0_2 = arith.constant 0 : index
    %1 = vector.load %arg1[%c0_1, %c0_2] : memref<112x128xf32, #tpu.memory_space<vmem>>, vector<32x32xf32>
    %c64 = arith.constant 64 : index
    %c0_3 = arith.constant 0 : index
    %2 = vector.load %arg1[%c64, %c0_3] : memref<112x128xf32, #tpu.memory_space<vmem>>, vector<1x32xf32>
    %c65 = arith.constant 65 : index
    %c0_4 = arith.constant 0 : index
    %3 = vector.load %arg1[%c65, %c0_4] : memref<112x128xf32, #tpu.memory_space<vmem>>, vector<1x32xf32>
    %c66 = arith.constant 66 : index
    %c0_5 = arith.constant 0 : index
    %4 = vector.load %arg1[%c66, %c0_5] : memref<112x128xf32, #tpu.memory_space<vmem>>, vector<1x32xf32>
    %c67 = arith.constant 67 : index
    %c0_6 = arith.constant 0 : index
    %5 = vector.load %arg1[%c67, %c0_6] : memref<112x128xf32, #tpu.memory_space<vmem>>, vector<1x32xf32>
    %c68 = arith.constant 68 : index
    %c0_7 = arith.constant 0 : index
    %6 = vector.load %arg1[%c68, %c0_7] : memref<112x128xf32, #tpu.memory_space<vmem>>, vector<1x32xf32>
    %c69 = arith.constant 69 : index
    %c0_8 = arith.constant 0 : index
    %7 = vector.load %arg1[%c69, %c0_8] : memref<112x128xf32, #tpu.memory_space<vmem>>, vector<1x32xf32>
    %cst = arith.constant dense<0.000000e+00> : vector<8x32xf32>
    %8 = tpu.matmul %0, %1, %cst {dimension_numbers = #tpu.dot_dimension_numbers<[1], [0], [0], [1], [0, 0, 1, 1], [], []>} : vector<8x32xf32>, vector<32x32xf32>, vector<8x32xf32> -> vector<8x32xf32>
    %9 = vector.broadcast %2 : vector<1x32xf32> to vector<8x32xf32>
    %10 = arith.addf %8, %9 : vector<8x32xf32>
    %11 = arith.addf %0, %10 : vector<8x32xf32>
    %cst_9 = arith.constant dense<0.000000e+00> : vector<8xf32>
    %12 = vector.multi_reduction <add>, %11, %cst_9 [1] : vector<8x32xf32> to vector<8xf32>
    %13 = vector.shape_cast %12 : vector<8xf32> to vector<8x1xf32>
    %cst_10 = arith.constant 3.200000e+01 : f32
    %14 = vector.broadcast %cst_10 : f32 to vector<8x1xf32>
    %15 = arith.divf %13, %14 : vector<8x1xf32>
    %16 = vector.broadcast %15 : vector<8x1xf32> to vector<8x32xf32>
    %17 = arith.subf %11, %16 : vector<8x32xf32>
    %18 = arith.mulf %17, %17 : vector<8x32xf32>
    %cst_11 = arith.constant dense<0.000000e+00> : vector<8xf32>
    %19 = vector.multi_reduction <add>, %18, %cst_11 [1] : vector<8x32xf32> to vector<8xf32>
    %20 = vector.shape_cast %19 : vector<8xf32> to vector<8x1xf32>
    %cst_12 = arith.constant 3.200000e+01 : f32
    %21 = vector.broadcast %cst_12 : f32 to vector<8x1xf32>
    %22 = arith.divf %20, %21 : vector<8x1xf32>
    %23 = vector.broadcast %15 : vector<8x1xf32> to vector<8x32xf32>
    %24 = arith.subf %11, %23 : vector<8x32xf32>
    %cst_13 = arith.constant 9.99999974E-6 : f32
    %25 = vector.broadcast %cst_13 : f32 to vector<8x1xf32>
    %26 = arith.addf %22, %25 : vector<8x1xf32>
    %27 = math.rsqrt %26 : vector<8x1xf32>
    %28 = vector.broadcast %27 : vector<8x1xf32> to vector<8x32xf32>
    %29 = arith.mulf %24, %28 : vector<8x32xf32>
    %30 = vector.broadcast %3 : vector<1x32xf32> to vector<8x32xf32>
    %31 = arith.mulf %29, %30 : vector<8x32xf32>
    %32 = vector.broadcast %4 : vector<1x32xf32> to vector<8x32xf32>
    %33 = arith.addf %31, %32 : vector<8x32xf32>
    %34 = arith.truncf %33 : vector<8x32xf32> to vector<8x32xbf16>
    %c0_14 = arith.constant 0 : index
    %c0_15 = arith.constant 0 : index
    %c0_16 = arith.constant 0 : index
    %35 = vector.load %arg3[%c0_14, %c0_15, %c0_16] : memref<2x32x2048xbf16, #tpu.memory_space<vmem>>, vector<1x32x2048xbf16>
    %36 = vector.shape_cast %35 : vector<1x32x2048xbf16> to vector<32x2048xbf16>
    %cst_17 = arith.constant dense<0.000000e+00> : vector<8x2048xf32>
    %37 = tpu.matmul %34, %36, %cst_17 {dimension_numbers = #tpu.dot_dimension_numbers<[1], [0], [0], [1], [0, 0, 1, 1], [], []>} : vector<8x32xbf16>, vector<32x2048xbf16>, vector<8x2048xf32> -> vector<8x2048xf32>
    %c0_18 = arith.constant 0 : index
    %c0_19 = arith.constant 0 : index
    %38 = vector.load %arg2[%c0_18, %c0_19] : memref<2x2048xf32, #tpu.memory_space<vmem>>, vector<1x2048xf32>
    %39 = vector.broadcast %38 : vector<1x2048xf32> to vector<8x2048xf32>
    %40 = arith.addf %37, %39 : vector<8x2048xf32>
    %cst_20 = arith.constant 0.000000e+00 : f32
    %41 = vector.broadcast %cst_20 : f32 to vector<8x2048xf32>
    %42 = arith.maximumf %40, %41 : vector<8x2048xf32>
    %43 = arith.truncf %42 : vector<8x2048xf32> to vector<8x2048xbf16>
    %c0_21 = arith.constant 0 : index
    %c0_22 = arith.constant 0 : index
    %c0_23 = arith.constant 0 : index
    %44 = vector.load %arg4[%c0_21, %c0_22, %c0_23] : memref<2x2048x32xbf16, #tpu.memory_space<vmem>>, vector<1x2048x32xbf16>
    %45 = vector.shape_cast %44 : vector<1x2048x32xbf16> to vector<2048x32xbf16>
    %cst_24 = arith.constant dense<0.000000e+00> : vector<8x32xf32>
    %46 = tpu.matmul %43, %45, %cst_24 {dimension_numbers = #tpu.dot_dimension_numbers<[1], [0], [0], [1], [0, 0, 1, 1], [], []>} : vector<8x2048xbf16>, vector<2048x32xbf16>, vector<8x32xf32> -> vector<8x32xf32>
    %47 = vector.broadcast %5 : vector<1x32xf32> to vector<8x32xf32>
    %48 = arith.addf %46, %47 : vector<8x32xf32>
    %49 = arith.addf %33, %48 : vector<8x32xf32>
    %cst_25 = arith.constant dense<0.000000e+00> : vector<8xf32>
    %50 = vector.multi_reduction <add>, %49, %cst_25 [1] : vector<8x32xf32> to vector<8xf32>
    %51 = vector.shape_cast %50 : vector<8xf32> to vector<8x1xf32>
    %cst_26 = arith.constant 3.200000e+01 : f32
    %52 = vector.broadcast %cst_26 : f32 to vector<8x1xf32>
    %53 = arith.divf %51, %52 : vector<8x1xf32>
    %54 = vector.broadcast %53 : vector<8x1xf32> to vector<8x32xf32>
    %55 = arith.subf %49, %54 : vector<8x32xf32>
    %56 = arith.mulf %55, %55 : vector<8x32xf32>
    %cst_27 = arith.constant dense<0.000000e+00> : vector<8xf32>
    %57 = vector.multi_reduction <add>, %56, %cst_27 [1] : vector<8x32xf32> to vector<8xf32>
    %58 = vector.shape_cast %57 : vector<8xf32> to vector<8x1xf32>
    %cst_28 = arith.constant 3.200000e+01 : f32
    %59 = vector.broadcast %cst_28 : f32 to vector<8x1xf32>
    %60 = arith.divf %58, %59 : vector<8x1xf32>
    %61 = vector.broadcast %53 : vector<8x1xf32> to vector<8x32xf32>
    %62 = arith.subf %49, %61 : vector<8x32xf32>
    %cst_29 = arith.constant 9.99999974E-6 : f32
    %63 = vector.broadcast %cst_29 : f32 to vector<8x1xf32>
    %64 = arith.addf %60, %63 : vector<8x1xf32>
    %65 = math.rsqrt %64 : vector<8x1xf32>
    %66 = vector.broadcast %65 : vector<8x1xf32> to vector<8x32xf32>
    %67 = arith.mulf %62, %66 : vector<8x32xf32>
    %68 = vector.broadcast %6 : vector<1x32xf32> to vector<8x32xf32>
    %69 = arith.mulf %67, %68 : vector<8x32xf32>
    %70 = vector.broadcast %7 : vector<1x32xf32> to vector<8x32xf32>
    %71 = arith.addf %69, %70 : vector<8x32xf32>
    %c32 = arith.constant 32 : index
    %c0_30 = arith.constant 0 : index
    %72 = vector.load %arg1[%c32, %c0_30] : memref<112x128xf32, #tpu.memory_space<vmem>>, vector<32x32xf32>
    %c70 = arith.constant 70 : index
    %c0_31 = arith.constant 0 : index
    %73 = vector.load %arg1[%c70, %c0_31] : memref<112x128xf32, #tpu.memory_space<vmem>>, vector<1x32xf32>
    %c71 = arith.constant 71 : index
    %c0_32 = arith.constant 0 : index
    %74 = vector.load %arg1[%c71, %c0_32] : memref<112x128xf32, #tpu.memory_space<vmem>>, vector<1x32xf32>
    %c72 = arith.constant 72 : index
    %c0_33 = arith.constant 0 : index
    %75 = vector.load %arg1[%c72, %c0_33] : memref<112x128xf32, #tpu.memory_space<vmem>>, vector<1x32xf32>
    %c73 = arith.constant 73 : index
    %c0_34 = arith.constant 0 : index
    %76 = vector.load %arg1[%c73, %c0_34] : memref<112x128xf32, #tpu.memory_space<vmem>>, vector<1x32xf32>
    %c74 = arith.constant 74 : index
    %c0_35 = arith.constant 0 : index
    %77 = vector.load %arg1[%c74, %c0_35] : memref<112x128xf32, #tpu.memory_space<vmem>>, vector<1x32xf32>
    %c75 = arith.constant 75 : index
    %c0_36 = arith.constant 0 : index
    %78 = vector.load %arg1[%c75, %c0_36] : memref<112x128xf32, #tpu.memory_space<vmem>>, vector<1x32xf32>
    %cst_37 = arith.constant dense<0.000000e+00> : vector<8x32xf32>
    %79 = tpu.matmul %71, %72, %cst_37 {dimension_numbers = #tpu.dot_dimension_numbers<[1], [0], [0], [1], [0, 0, 1, 1], [], []>} : vector<8x32xf32>, vector<32x32xf32>, vector<8x32xf32> -> vector<8x32xf32>
    %80 = vector.broadcast %73 : vector<1x32xf32> to vector<8x32xf32>
    %81 = arith.addf %79, %80 : vector<8x32xf32>
    %82 = arith.addf %71, %81 : vector<8x32xf32>
    %cst_38 = arith.constant dense<0.000000e+00> : vector<8xf32>
    %83 = vector.multi_reduction <add>, %82, %cst_38 [1] : vector<8x32xf32> to vector<8xf32>
    %84 = vector.shape_cast %83 : vector<8xf32> to vector<8x1xf32>
    %cst_39 = arith.constant 3.200000e+01 : f32
    %85 = vector.broadcast %cst_39 : f32 to vector<8x1xf32>
    %86 = arith.divf %84, %85 : vector<8x1xf32>
    %87 = vector.broadcast %86 : vector<8x1xf32> to vector<8x32xf32>
    %88 = arith.subf %82, %87 : vector<8x32xf32>
    %89 = arith.mulf %88, %88 : vector<8x32xf32>
    %cst_40 = arith.constant dense<0.000000e+00> : vector<8xf32>
    %90 = vector.multi_reduction <add>, %89, %cst_40 [1] : vector<8x32xf32> to vector<8xf32>
    %91 = vector.shape_cast %90 : vector<8xf32> to vector<8x1xf32>
    %cst_41 = arith.constant 3.200000e+01 : f32
    %92 = vector.broadcast %cst_41 : f32 to vector<8x1xf32>
    %93 = arith.divf %91, %92 : vector<8x1xf32>
    %94 = vector.broadcast %86 : vector<8x1xf32> to vector<8x32xf32>
    %95 = arith.subf %82, %94 : vector<8x32xf32>
    %cst_42 = arith.constant 9.99999974E-6 : f32
    %96 = vector.broadcast %cst_42 : f32 to vector<8x1xf32>
    %97 = arith.addf %93, %96 : vector<8x1xf32>
    %98 = math.rsqrt %97 : vector<8x1xf32>
    %99 = vector.broadcast %98 : vector<8x1xf32> to vector<8x32xf32>
    %100 = arith.mulf %95, %99 : vector<8x32xf32>
    %101 = vector.broadcast %74 : vector<1x32xf32> to vector<8x32xf32>
    %102 = arith.mulf %100, %101 : vector<8x32xf32>
    %103 = vector.broadcast %75 : vector<1x32xf32> to vector<8x32xf32>
    %104 = arith.addf %102, %103 : vector<8x32xf32>
    %105 = arith.truncf %104 : vector<8x32xf32> to vector<8x32xbf16>
    %c1 = arith.constant 1 : index
    %c0_43 = arith.constant 0 : index
    %c0_44 = arith.constant 0 : index
    %106 = vector.load %arg3[%c1, %c0_43, %c0_44] : memref<2x32x2048xbf16, #tpu.memory_space<vmem>>, vector<1x32x2048xbf16>
    %107 = vector.shape_cast %106 : vector<1x32x2048xbf16> to vector<32x2048xbf16>
    %cst_45 = arith.constant dense<0.000000e+00> : vector<8x2048xf32>
    %108 = tpu.matmul %105, %107, %cst_45 {dimension_numbers = #tpu.dot_dimension_numbers<[1], [0], [0], [1], [0, 0, 1, 1], [], []>} : vector<8x32xbf16>, vector<32x2048xbf16>, vector<8x2048xf32> -> vector<8x2048xf32>
    %c1_46 = arith.constant 1 : index
    %c0_47 = arith.constant 0 : index
    %109 = vector.load %arg2[%c1_46, %c0_47] : memref<2x2048xf32, #tpu.memory_space<vmem>>, vector<1x2048xf32>
    %110 = vector.broadcast %109 : vector<1x2048xf32> to vector<8x2048xf32>
    %111 = arith.addf %108, %110 : vector<8x2048xf32>
    %cst_48 = arith.constant 0.000000e+00 : f32
    %112 = vector.broadcast %cst_48 : f32 to vector<8x2048xf32>
    %113 = arith.maximumf %111, %112 : vector<8x2048xf32>
    %114 = arith.truncf %113 : vector<8x2048xf32> to vector<8x2048xbf16>
    %c1_49 = arith.constant 1 : index
    %c0_50 = arith.constant 0 : index
    %c0_51 = arith.constant 0 : index
    %115 = vector.load %arg4[%c1_49, %c0_50, %c0_51] : memref<2x2048x32xbf16, #tpu.memory_space<vmem>>, vector<1x2048x32xbf16>
    %116 = vector.shape_cast %115 : vector<1x2048x32xbf16> to vector<2048x32xbf16>
    %cst_52 = arith.constant dense<0.000000e+00> : vector<8x32xf32>
    %117 = tpu.matmul %114, %116, %cst_52 {dimension_numbers = #tpu.dot_dimension_numbers<[1], [0], [0], [1], [0, 0, 1, 1], [], []>} : vector<8x2048xbf16>, vector<2048x32xbf16>, vector<8x32xf32> -> vector<8x32xf32>
    %118 = vector.broadcast %76 : vector<1x32xf32> to vector<8x32xf32>
    %119 = arith.addf %117, %118 : vector<8x32xf32>
    %120 = arith.addf %104, %119 : vector<8x32xf32>
    %cst_53 = arith.constant dense<0.000000e+00> : vector<8xf32>
    %121 = vector.multi_reduction <add>, %120, %cst_53 [1] : vector<8x32xf32> to vector<8xf32>
    %122 = vector.shape_cast %121 : vector<8xf32> to vector<8x1xf32>
    %cst_54 = arith.constant 3.200000e+01 : f32
    %123 = vector.broadcast %cst_54 : f32 to vector<8x1xf32>
    %124 = arith.divf %122, %123 : vector<8x1xf32>
    %125 = vector.broadcast %124 : vector<8x1xf32> to vector<8x32xf32>
    %126 = arith.subf %120, %125 : vector<8x32xf32>
    %127 = arith.mulf %126, %126 : vector<8x32xf32>
    %cst_55 = arith.constant dense<0.000000e+00> : vector<8xf32>
    %128 = vector.multi_reduction <add>, %127, %cst_55 [1] : vector<8x32xf32> to vector<8xf32>
    %129 = vector.shape_cast %128 : vector<8xf32> to vector<8x1xf32>
    %cst_56 = arith.constant 3.200000e+01 : f32
    %130 = vector.broadcast %cst_56 : f32 to vector<8x1xf32>
    %131 = arith.divf %129, %130 : vector<8x1xf32>
    %132 = vector.broadcast %124 : vector<8x1xf32> to vector<8x32xf32>
    %133 = arith.subf %120, %132 : vector<8x32xf32>
    %cst_57 = arith.constant 9.99999974E-6 : f32
    %134 = vector.broadcast %cst_57 : f32 to vector<8x1xf32>
    %135 = arith.addf %131, %134 : vector<8x1xf32>
    %136 = math.rsqrt %135 : vector<8x1xf32>
    %137 = vector.broadcast %136 : vector<8x1xf32> to vector<8x32xf32>
    %138 = arith.mulf %133, %137 : vector<8x32xf32>
    %139 = vector.broadcast %77 : vector<1x32xf32> to vector<8x32xf32>
    %140 = arith.mulf %138, %139 : vector<8x32xf32>
    %141 = vector.broadcast %78 : vector<1x32xf32> to vector<8x32xf32>
    %142 = arith.addf %140, %141 : vector<8x32xf32>
    %c76 = arith.constant 76 : index
    %c0_58 = arith.constant 0 : index
    %143 = vector.load %arg1[%c76, %c0_58] : memref<112x128xf32, #tpu.memory_space<vmem>>, vector<32x128xf32>
    %c108 = arith.constant 108 : index
    %c0_59 = arith.constant 0 : index
    %144 = vector.load %arg1[%c108, %c0_59] : memref<112x128xf32, #tpu.memory_space<vmem>>, vector<1x128xf32>
    %cst_60 = arith.constant dense<0.000000e+00> : vector<8x128xf32>
    %145 = tpu.matmul %142, %143, %cst_60 {dimension_numbers = #tpu.dot_dimension_numbers<[1], [0], [0], [1], [0, 0, 1, 1], [], []>} : vector<8x32xf32>, vector<32x128xf32>, vector<8x128xf32> -> vector<8x128xf32>
    %146 = vector.broadcast %144 : vector<1x128xf32> to vector<8x128xf32>
    %147 = arith.addf %145, %146 : vector<8x128xf32>
    %c0_61 = arith.constant 0 : index
    %c0_62 = arith.constant 0 : index
    %148 = vector.load %arg5[%c0_61, %c0_62] : memref<8x128xf32, #tpu.memory_space<vmem>>, vector<8x128xf32>
    tpu.vector_store %arg5[%c0_61, %c0_62], %147 {strides = array<i32>} : memref<8x128xf32, #tpu.memory_space<vmem>>, vector<8x128xf32>,
    return
  }
}

</mosaic_0001>

<llo_original>
// kernel: pose_binary_forward.1
$region0: #{pose_binary_forward.1}
  #allocation0 [shape = 'u32[]', space=smem, size = 0x4, offset = 0x4, fixed_abs, tag = 'smem constant byte address 0x4 - core index']
  #allocation1 [shape = 'u32[144,128]{1,0:T(1,128)}', space=vmem, size = 0x12000, scoped, tag = 'internal scratch']
  %s0 = inlined_call_operand.vmem [shape: f32[8,32], index: 0, kind: input, shape index: {}]
  %s1 = inlined_call_operand.vmem [shape: f32[112,128], index: 1, kind: input, shape index: {}]
  %s2 = inlined_call_operand.vmem [shape: f32[2,2048], index: 2, kind: input, shape index: {}]
  %s3 = inlined_call_operand.vmem [shape: bf16[2,32,2048], index: 3, kind: input, shape index: {}]
  %s4 = inlined_call_operand.vmem [shape: bf16[2,2048,32], index: 4, kind: input, shape index: {}]
  %s5 = inlined_call_operand.vmem [shape: f32[8,128], index: 5, kind: output, shape index: {}]
  %s6 = sld [smem:[#allocation0]]
  $region30: #{pose_binary_forward.1} parent=0
    _
  %s8 = ssub.s32 1, %s6
  %s9 = scalar_select 0, %s8, %s6
  // Predicated region
  $region2: #{pose_binary_forward.1} parent=0 // pred_check
    _
  $region3: #{pose_binary_forward.1} parent=0 // pred_check_branch
    %11 = sbr.rel (0) target = $region5
  $region4: #{pose_binary_forward.1} parent=0 // pred_region
    _
  $region5: #{pose_binary_forward.1} parent=0 // pred_fallthru
    _
  // Predicated region
  $region6: #{pose_binary_forward.1} parent=0 // pred_check
    _
  $region7: #{pose_binary_forward.1} parent=0 // pred_check_branch
    %13 = sbr.rel (0) target = $region9
  $region8: #{pose_binary_forward.1} parent=0 // pred_region
    _
  $region9: #{pose_binary_forward.1} parent=0 // pred_fallthru
    _
  // Predicated region
  $region10: #{pose_binary_forward.1} parent=0 // pred_check
    _
  $region11: #{pose_binary_forward.1} parent=0 // pred_check_branch
    %15 = sbr.rel (0) target = $region13
  $region12: #{pose_binary_forward.1} parent=0 // pred_region
    _
  $region13: #{pose_binary_forward.1} parent=0 // pred_fallthru
    _
  // Predicated region
  $region14: #{pose_binary_forward.1} parent=0 // pred_check
    _
  $region15: #{pose_binary_forward.1} parent=0 // pred_check_branch
    %17 = sbr.rel (0) target = $region17
  $region16: #{pose_binary_forward.1} parent=0 // pred_region
    _
  $region17: #{pose_binary_forward.1} parent=0 // pred_fallthru
    _
  // Predicated region
  $region18: #{pose_binary_forward.1} parent=0 // pred_check
    _
  $region19: #{pose_binary_forward.1} parent=0 // pred_check_branch
    %19 = sbr.rel (0) target = $region21
  $region20: #{pose_binary_forward.1} parent=0 // pred_region
    _
  $region21: #{pose_binary_forward.1} parent=0 // pred_fallthru
    _
  %v21 = vld [vmem:[%s0] sm:$0xff]
  %v22 = vld [vmem:[%s1] sm:$0xff]
  %v23 = vld [vmem:[%s1 + $0x8] sm:$0xff]
  %v24 = vld [vmem:[%s1 + $0x10] sm:$0xff]
  %v25 = vld [vmem:[%s1 + $0x18] sm:$0xff]
  %v26 = vld [vmem:[%s1 + $0x40] sm:$0x1]
  %v27 = vld [vmem:[%s1 + $0x41] sm:$0x1]
  %v28 = vld [vmem:[%s1 + $0x42] sm:$0x1]
  %v29 = vld [vmem:[%s1 + $0x43] sm:$0x1]
  %v30 = vld [vmem:[%s1 + $0x44] sm:$0x1]
  %v31 = vld [vmem:[%s1 + $0x45] sm:$0x1]
  %v32 = vlaneseq
  %v33 = vshrl.u32 %v32, 7
  %v34 = vsub.s32 0, %v33
  %v35 = vrot.slane %v26, %v34
  %vm36 = vcmask 261120
  %v38 = vsel %vm36, %v21, 0
  %40 = vmatprep.subr.mxu0 0.0
  %41 = vmatpush1.msra.mxu0 %v22
  %42 = vmatprep.subr.mxu0 0.0
  %43 = vmatpush1.msra.mxu0 %v23
  %44 = vmatprep.subr.mxu0 0.0
  %45 = vmatpush1.msra.mxu0 %v24
  %46 = vmatprep.subr.mxu0 0.0
  %47 = vmatpush1.msra.mxu0 %v25
  %48 = vmatprep.subr.mxu0 0.0
  %49 = vmatpush1.msra.mxu0 0.0
  %50 = vmatprep.subr.mxu0 0.0
  %51 = vmatpush1.msra.mxu0 0.0
  %52 = vmatprep.subr.mxu0 0.0
  %53 = vmatpush1.msra.mxu0 0.0
  %54 = vmatprep.subr.mxu0 0.0
  %55 = vmatpush1.msra.mxu0 0.0
  %56 = vmatprep.subr.mxu0 0.0
  %57 = vmatpush1.msra.mxu0 0.0
  %58 = vmatprep.subr.mxu0 0.0
  %59 = vmatpush1.msra.mxu0 0.0
  %60 = vmatprep.subr.mxu0 0.0
  %61 = vmatpush1.msra.mxu0 0.0
  %62 = vmatprep.subr.mxu0 0.0
  %63 = vmatpush1.msra.mxu0 0.0
  %64 = vmatprep.subr.mxu0 0.0
  %65 = vmatpush1.msra.mxu0 0.0
  %66 = vmatprep.subr.mxu0 0.0
  %67 = vmatpush1.msra.mxu0 0.0
  %68 = vmatprep.subr.mxu0 0.0
  %69 = vmatpush1.msra.mxu0 0.0
  %70 = vmatprep.subr.mxu0 0.0
  %71 = vmatpush1.msra.mxu0 0.0
  %72 = vmatprep.subr.mxu0 0.0
  %73 = vmatpush1.msra.mxu0 0.0
  %74 = vmatprep.subr.mxu0 0.0
  %75 = vmatpush1.msra.mxu0 0.0
  %76 = vmatprep.subr.mxu0 0.0
  %77 = vmatpush1.msra.mxu0 0.0
  %78 = vmatprep.subr.mxu0 0.0
  %79 = vmatpush1.msra.mxu0 0.0
  %80 = vmatprep.subr.mxu0 0.0
  %81 = vmatpush1.msra.mxu0 0.0
  %82 = vmatprep.subr.mxu0 0.0
  %83 = vmatpush1.msra.mxu0 0.0
  %84 = vmatprep.subr.mxu0 0.0
  %85 = vmatpush1.msra.mxu0 0.0
  %86 = vmatprep.subr.mxu0 0.0
  %87 = vmatpush1.msra.mxu0 0.0
  %88 = vmatprep.subr.mxu0 0.0
  %89 = vmatpush1.msra.mxu0 0.0
  %90 = vmatprep.subr.mxu0 0.0
  %91 = vmatpush1.msra.mxu0 0.0
  %92 = vmatprep.subr.mxu0 0.0
  %93 = vmatpush1.msra.mxu0 0.0
  %94 = vmatprep.subr.mxu0 0.0
  %95 = vmatpush1.msra.mxu0 0.0
  %96 = vmatprep.subr.mxu0 0.0
  %97 = vmatpush1.msra.mxu0 0.0
  %98 = vmatprep.subr.mxu0 0.0
  %99 = vmatpush1.msra.mxu0 0.0
  %100 = vmatprep.subr.mxu0 0.0
  %101 = vmatpush1.msra.mxu0 0.0
  %102 = vmatprep.subr.mxu0 0.0
  %103 = vmatpush1.msra.mxu0 0.0
  %104 = vmatprep.mubr.f32.mxu0 0.0
  %105 = vmatmul.mubr.f32.gmra.mrb[0].mxu0 %v38
  %v106 = vpop.f32.mrb[0].mxu0
  %v107 = vadd.f32 %v35, %v106
  %v108 = vpop.f32.mrb[0].mxu0
  %109 = vdwg.mxu0
  %v110 = vadd.f32 %v21, %v107
  %v111 = vsel %vm36, %v110, 0.0
  %112 = vadd.xlane.f32.xlu0 %v111
  %v113 = vpop.xlane.xlu0 %112
  %v114 = vrcp.pop 32.0
  %v115 = vmul.f32 %v113, %v114
  %v116 = vsub.f32 %v110, %v115
  %v117 = vmul.f32 %v116, %v116
  %v118 = vsel %vm36, %v117, 0.0
  %119 = vadd.xlane.f32.xlu0 %v118
  %v120 = vpop.xlane.xlu0 %119
  %v121 = vmul.f32 %v120, %v114
  %v122 = vadd.f32 %v121, 1e-05
  %v123 = vrsqrt.pop %v122
  %v124 = vmul.f32 %v116, %v123
  %v125 = vlaneseq
  %v126 = vshrl.u32 %v125, 7
  %v127 = vsub.s32 0, %v126
  %v128 = vrot.slane %v27, %v127
  %v129 = vmul.f32 %v124, %v128
  %v130 = vlaneseq
  %v131 = vshrl.u32 %v130, 7
  %v132 = vsub.s32 0, %v131
  %v133 = vrot.slane %v28, %v132
  %v134 = vadd.f32 %v129, %v133
  %v135 = vpack.c.bf16 %v134, %v134
  %v136 = vld [vmem:[%s3] sm:$0xff]
  %v137 = vld [vmem:[%s3 + $0x8] sm:$0xff]
  %v138 = vld [vmem:[%s3 + $0x10] sm:$0xff]
  %v139 = vld [vmem:[%s3 + $0x18] sm:$0xff]
  %v140 = vld [vmem:[%s3 + $0x20] sm:$0xff]
  %v141 = vld [vmem:[%s3 + $0x28] sm:$0xff]
  %v142 = vld [vmem:[%s3 + $0x30] sm:$0xff]
  %v143 = vld [vmem:[%s3 + $0x38] sm:$0xff]
  %v144 = vld [vmem:[%s3 + $0x40] sm:$0xff]
  %v145 = vld [vmem:[%s3 + $0x48] sm:$0xff]
  %v146 = vld [vmem:[%s3 + $0x50] sm:$0xff]
  %v147 = vld [vmem:[%s3 + $0x58] sm:$0xff]
  %v148 = vld [vmem:[%s3 + $0x60] sm:$0xff]
  %v149 = vld [vmem:[%s3 + $0x68] sm:$0xff]
  %v150 = vld [vmem:[%s3 + $0x70] sm:$0xff]
  %v151 = vld [vmem:[%s3 + $0x78] sm:$0xff]
  %v152 = vld [vmem:[%s3 + $0x80] sm:$0xff]
  %v153 = vld [vmem:[%s3 + $0x88] sm:$0xff]
  %v154 = vld [vmem:[%s3 + $0x90] sm:$0xff]
  %v155 = vld [vmem:[%s3 + $0x98] sm:$0xff]
  %v156 = vld [vmem:[%s3 + $0xa0] sm:$0xff]
  %v157 = vld [vmem:[%s3 + $0xa8] sm:$0xff]
  %v158 = vld [vmem:[%s3 + $0xb0] sm:$0xff]
  %v159 = vld [vmem:[%s3 + $0xb8] sm:$0xff]
  %v160 = vld [vmem:[%s3 + $0xc0] sm:$0xff]
  %v161 = vld [vmem:[%s3 + $0xc8] sm:$0xff]
  %v162 = vld [vmem:[%s3 + $0xd0] sm:$0xff]
  %v163 = vld [vmem:[%s3 + $0xd8] sm:$0xff]
  %v164 = vld [vmem:[%s3 + $0xe0] sm:$0xff]
  %v165 = vld [vmem:[%s3 + $0xe8] sm:$0xff]
  %v166 = vld [vmem:[%s3 + $0xf0] sm:$0xff]
  %v167 = vld [vmem:[%s3 + $0xf8] sm:$0xff]
  %v168 = vld [vmem:[%s2] ss:$2 sm:$0xff]
  %s169 = scalar_lea.vmem %s2, 16
  %v170 = vld [vmem:[%s169] ss:$2 sm:$0xff]
  %v173 = vlaneseq
  %v174 = vshrl.u32 %v173, 7
  %v175 = vsub.s32 0, %v174
  %v176 = vrot.slane %v168, %v175
  %v177 = vlaneseq
  %v178 = vshrl.u32 %v177, 7
  %v179 = vsub.s32 1, %v178
  %v180 = vrot.slane %v168, %v179
  %v181 = vlaneseq
  %v182 = vshrl.u32 %v181, 7
  %v183 = vsub.s32 2, %v182
  %v184 = vrot.slane %v168, %v183
  %v185 = vlaneseq
  %v186 = vshrl.u32 %v185, 7
  %v187 = vsub.s32 3, %v186
  %v188 = vrot.slane %v168, %v187
  %v189 = vlaneseq
  %v190 = vshrl.u32 %v189, 7
  %v191 = vsub.s32 4, %v190
  %v192 = vrot.slane %v168, %v191
  %v193 = vlaneseq
  %v194 = vshrl.u32 %v193, 7
  %v195 = vsub.s32 5, %v194
  %v196 = vrot.slane %v168, %v195
  %v197 = vlaneseq
  %v198 = vshrl.u32 %v197, 7
  %v199 = vsub.s32 6, %v198
  %v200 = vrot.slane %v168, %v199
  %v201 = vlaneseq
  %v202 = vshrl.u32 %v201, 7
  %v203 = vsub.s32 7, %v202
  %v204 = vrot.slane %v168, %v203
  %v205 = vlaneseq
  %v206 = vshrl.u32 %v205, 7
  %v207 = vsub.s32 0, %v206
  %v208 = vrot.slane %v170, %v207
  %v209 = vlaneseq
  %v210 = vshrl.u32 %v209, 7
  %v211 = vsub.s32 1, %v210
  %v212 = vrot.slane %v170, %v211
  %v213 = vlaneseq
  %v214 = vshrl.u32 %v213, 7
  %v215 = vsub.s32 2, %v214
  %v216 = vrot.slane %v170, %v215
  %v217 = vlaneseq
  %v218 = vshrl.u32 %v217, 7
  %v219 = vsub.s32 3, %v218
  %v220 = vrot.slane %v170, %v219
  %v221 = vlaneseq
  %v222 = vshrl.u32 %v221, 7
  %v223 = vsub.s32 4, %v222
  %v224 = vrot.slane %v170, %v223
  %v225 = vlaneseq
  %v226 = vshrl.u32 %v225, 7
  %v227 = vsub.s32 5, %v226
  %v228 = vrot.slane %v170, %v227
  %v229 = vlaneseq
  %v230 = vshrl.u32 %v229, 7
  %v231 = vsub.s32 6, %v230
  %v232 = vrot.slane %v170, %v231
  %v233 = vlaneseq
  %v234 = vshrl.u32 %v233, 7
  %v235 = vsub.s32 7, %v234
  %v236 = vrot.slane %v170, %v235
  %v285 = vunpack.c.l.b16 %v136
  %v286 = vunpack.c.h.b16 %v136
  %v287 = vunpack.c.l.b16 %v137
  %v288 = vunpack.c.h.b16 %v137
  %v289 = vunpack.c.l.b16 %v138
  %v290 = vunpack.c.h.b16 %v138
  %v291 = vunpack.c.l.b16 %v139
  %v292 = vunpack.c.h.b16 %v139
  %v293 = vunpack.c.l.b16 %v140
  %v294 = vunpack.c.h.b16 %v140
  %v295 = vunpack.c.l.b16 %v141
  %v296 = vunpack.c.h.b16 %v141
  %v297 = vunpack.c.l.b16 %v142
  %v298 = vunpack.c.h.b16 %v142
  %v299 = vunpack.c.l.b16 %v143
  %v300 = vunpack.c.h.b16 %v143
  %v301 = vunpack.c.l.b16 %v144
  %v302 = vunpack.c.h.b16 %v144
  %v303 = vunpack.c.l.b16 %v145
  %v304 = vunpack.c.h.b16 %v145
  %v305 = vunpack.c.l.b16 %v146
  %v306 = vunpack.c.h.b16 %v146
  %v307 = vunpack.c.l.b16 %v147
  %v308 = vunpack.c.h.b16 %v147
  %v309 = vunpack.c.l.b16 %v148
  %v310 = vunpack.c.h.b16 %v148
  %v311 = vunpack.c.l.b16 %v149
  %v312 = vunpack.c.h.b16 %v149
  %v313 = vunpack.c.l.b16 %v150
  %v314 = vunpack.c.h.b16 %v150
  %v315 = vunpack.c.l.b16 %v151
  %v316 = vunpack.c.h.b16 %v151
  %v317 = vunpack.c.l.b16 %v152
  %v318 = vunpack.c.h.b16 %v152
  %v319 = vunpack.c.l.b16 %v153
  %v320 = vunpack.c.h.b16 %v153
  %v321 = vunpack.c.l.b16 %v154
  %v322 = vunpack.c.h.b16 %v154
  %v323 = vunpack.c.l.b16 %v155
  %v324 = vunpack.c.h.b16 %v155
  %v325 = vunpack.c.l.b16 %v156
  %v326 = vunpack.c.h.b16 %v156
  %v327 = vunpack.c.l.b16 %v157
  %v328 = vunpack.c.h.b16 %v157
  %v329 = vunpack.c.l.b16 %v158
  %v330 = vunpack.c.h.b16 %v158
  %v331 = vunpack.c.l.b16 %v159
  %v332 = vunpack.c.h.b16 %v159
  %v333 = vunpack.c.l.b16 %v160
  %v334 = vunpack.c.h.b16 %v160
  %v335 = vunpack.c.l.b16 %v161
  %v336 = vunpack.c.h.b16 %v161
  %v337 = vunpack.c.l.b16 %v162
  %v338 = vunpack.c.h.b16 %v162
  %v339 = vunpack.c.l.b16 %v163
  %v340 = vunpack.c.h.b16 %v163
  %v341 = vunpack.c.l.b16 %v164
  %v342 = vunpack.c.h.b16 %v164
  %v343 = vunpack.c.l.b16 %v165
  %v344 = vunpack.c.h.b16 %v165
  %v345 = vunpack.c.l.b16 %v166
  %v346 = vunpack.c.h.b16 %v166
  %v347 = vunpack.c.l.b16 %v167
  %v348 = vunpack.c.h.b16 %v167
  %v349 = vpack.c.b16 %v301, %v285
  %v350 = vpack.c.b16 %v302, %v286
  %v351 = vpack.c.b16 %v303, %v287
  %v352 = vpack.c.b16 %v304, %v288
  %v353 = vpack.c.b16 %v305, %v289
  %v354 = vpack.c.b16 %v306, %v290
  %v355 = vpack.c.b16 %v307, %v291
  %v356 = vpack.c.b16 %v308, %v292
  %v357 = vpack.c.b16 %v309, %v293
  %v358 = vpack.c.b16 %v310, %v294
  %v359 = vpack.c.b16 %v311, %v295
  %v360 = vpack.c.b16 %v312, %v296
  %v361 = vpack.c.b16 %v313, %v297
  %v362 = vpack.c.b16 %v314, %v298
  %v363 = vpack.c.b16 %v315, %v299
  %v364 = vpack.c.b16 %v316, %v300
  %v365 = vpack.c.b16 %v333, %v317
  %v366 = vpack.c.b16 %v334, %v318
  %v367 = vpack.c.b16 %v335, %v319
  %v368 = vpack.c.b16 %v336, %v320
  %v369 = vpack.c.b16 %v337, %v321
  %v370 = vpack.c.b16 %v338, %v322
  %v371 = vpack.c.b16 %v339, %v323
  %v372 = vpack.c.b16 %v340, %v324
  %v373 = vpack.c.b16 %v341, %v325
  %v374 = vpack.c.b16 %v342, %v326
  %v375 = vpack.c.b16 %v343, %v327
  %v376 = vpack.c.b16 %v344, %v328
  %v377 = vpack.c.b16 %v345, %v329
  %v378 = vpack.c.b16 %v346, %v330
  %v379 = vpack.c.b16 %v347, %v331
  %v380 = vpack.c.b16 %v348, %v332
  %v414 = vsel %vm36, %v135, 0
  %416 = vmatprep.subr.bf16.mxu0 %v350
  %417 = vmatpush1.bf16.msra.mxu0 %v349
  %418 = vmatprep.subr.bf16.mxu0 %v366
  %419 = vmatpush1.bf16.msra.mxu0 %v365
  %420 = vmatprep.subr.bf16.mxu0 0
  %421 = vmatpush1.bf16.msra.mxu0 0
  %422 = vmatprep.subr.bf16.mxu0 0
  %423 = vmatpush1.bf16.msra.mxu0 0
  %424 = vmatprep.subr.bf16.mxu0 0
  %425 = vmatpush1.bf16.msra.mxu0 0
  %426 = vmatprep.subr.bf16.mxu0 0
  %427 = vmatpush1.bf16.msra.mxu0 0
  %428 = vmatprep.subr.bf16.mxu0 0
  %429 = vmatpush1.bf16.msra.mxu0 0
  %430 = vmatprep.subr.bf16.mxu0 0
  %431 = vmatpush1.bf16.msra.mxu0 0
  %432 = vmatprep.subr.bf16.mxu0 0
  %433 = vmatpush1.bf16.msra.mxu0 0
  %434 = vmatprep.subr.bf16.mxu0 0
  %435 = vmatpush1.bf16.msra.mxu0 0
  %436 = vmatprep.subr.bf16.mxu0 0
  %437 = vmatpush1.bf16.msra.mxu0 0
  %438 = vmatprep.subr.bf16.mxu0 0
  %439 = vmatpush1.bf16.msra.mxu0 0
  %440 = vmatprep.subr.bf16.mxu0 0
  %441 = vmatpush1.bf16.msra.mxu0 0
  %442 = vmatprep.subr.bf16.mxu0 0
  %443 = vmatpush1.bf16.msra.mxu0 0
  %444 = vmatprep.subr.bf16.mxu0 0
  %445 = vmatpush1.bf16.msra.mxu0 0
  %446 = vmatprep.subr.bf16.mxu0 0
  %447 = vmatpush1.bf16.msra.mxu0 0
  %448 = vmatprep.mubr.bf16.mxu0 0
  %449 = vmatmul.mubr.bf16.gmra.mrb[0].mxu0 %v414
  %v450 = vpop.f32.mrb[0].mxu0
  %v451 = vadd.f32 %v176, %v450
  %v452 = vpop.f32.mrb[0].mxu0
  %v453 = vadd.f32 %v180, %v452
  %v454 = vpop.f32.mrb[0].mxu0
  %v455 = vpop.f32.mrb[0].mxu0
  %456 = vdwg.mxu0
  %457 = vmatprep.subr.bf16.mxu0 %v352
  %458 = vmatpush1.bf16.msra.mxu0 %v351
  %459 = vmatprep.subr.bf16.mxu0 %v368
  %460 = vmatpush1.bf16.msra.mxu0 %v367
  %461 = vmatprep.subr.bf16.mxu0 0
  %462 = vmatpush1.bf16.msra.mxu0 0
  %463 = vmatprep.subr.bf16.mxu0 0
  %464 = vmatpush1.bf16.msra.mxu0 0
  %465 = vmatprep.subr.bf16.mxu0 0
  %466 = vmatpush1.bf16.msra.mxu0 0
  %467 = vmatprep.subr.bf16.mxu0 0
  %468 = vmatpush1.bf16.msra.mxu0 0
  %469 = vmatprep.subr.bf16.mxu0 0
  %470 = vmatpush1.bf16.msra.mxu0 0
  %471 = vmatprep.subr.bf16.mxu0 0
  %472 = vmatpush1.bf16.msra.mxu0 0
  %473 = vmatprep.subr.bf16.mxu0 0
  %474 = vmatpush1.bf16.msra.mxu0 0
  %475 = vmatprep.subr.bf16.mxu0 0
  %476 = vmatpush1.bf16.msra.mxu0 0
  %477 = vmatprep.subr.bf16.mxu0 0
  %478 = vmatpush1.bf16.msra.mxu0 0
  %479 = vmatprep.subr.bf16.mxu0 0
  %480 = vmatpush1.bf16.msra.mxu0 0
  %481 = vmatprep.subr.bf16.mxu0 0
  %482 = vmatpush1.bf16.msra.mxu0 0
  %483 = vmatprep.subr.bf16.mxu0 0
  %484 = vmatpush1.bf16.msra.mxu0 0
  %485 = vmatprep.subr.bf16.mxu0 0
  %486 = vmatpush1.bf16.msra.mxu0 0
  %487 = vmatprep.subr.bf16.mxu0 0
  %488 = vmatpush1.bf16.msra.mxu0 0
  %489 = vmatprep.mubr.bf16.mxu0 0
  %490 = vmatmul.mubr.bf16.gmra.mrb[0].mxu0 %v414
  %v491 = vpop.f32.mrb[0].mxu0
  %v492 = vadd.f32 %v184, %v491
  %v493 = vpop.f32.mrb[0].mxu0
  %v494 = vadd.f32 %v188, %v493
  %v495 = vpop.f32.mrb[0].mxu0
  %v496 = vpop.f32.mrb[0].mxu0
  %497 = vdwg.mxu0
  %498 = vmatprep.subr.bf16.mxu0 %v354
  %499 = vmatpush1.bf16.msra.mxu0 %v353
  %500 = vmatprep.subr.bf16.mxu0 %v370
  %501 = vmatpush1.bf16.msra.mxu0 %v369
  %502 = vmatprep.subr.bf16.mxu0 0
  %503 = vmatpush1.bf16.msra.mxu0 0
  %504 = vmatprep.subr.bf16.mxu0 0
  %505 = vmatpush1.bf16.msra.mxu0 0
  %506 = vmatprep.subr.bf16.mxu0 0
  %507 = vmatpush1.bf16.msra.mxu0 0
  %508 = vmatprep.subr.bf16.mxu0 0
  %509 = vmatpush1.bf16.msra.mxu0 0
  %510 = vmatprep.subr.bf16.mxu0 0
  %511 = vmatpush1.bf16.msra.mxu0 0
  %512 = vmatprep.subr.bf16.mxu0 0
  %513 = vmatpush1.bf16.msra.mxu0 0
  %514 = vmatprep.subr.bf16.mxu0 0
  %515 = vmatpush1.bf16.msra.mxu0 0
  %516 = vmatprep.subr.bf16.mxu0 0
  %517 = vmatpush1.bf16.msra.mxu0 0
  %518 = vmatprep.subr.bf16.mxu0 0
  %519 = vmatpush1.bf16.msra.mxu0 0
  %520 = vmatprep.subr.bf16.mxu0 0
  %521 = vmatpush1.bf16.msra.mxu0 0
  %522 = vmatprep.subr.bf16.mxu0 0
  %523 = vmatpush1.bf16.msra.mxu0 0
  %524 = vmatprep.subr.bf16.mxu0 0
  %525 = vmatpush1.bf16.msra.mxu0 0
  %526 = vmatprep.subr.bf16.mxu0 0
  %527 = vmatpush1.bf16.msra.mxu0 0
  %528 = vmatprep.subr.bf16.mxu0 0
  %529 = vmatpush1.bf16.msra.mxu0 0
  %530 = vmatprep.mubr.bf16.mxu0 0
  %531 = vmatmul.mubr.bf16.gmra.mrb[0].mxu0 %v414
  %v532 = vpop.f32.mrb[0].mxu0
  %v533 = vadd.f32 %v192, %v532
  %v534 = vpop.f32.mrb[0].mxu0
  %v535 = vadd.f32 %v196, %v534
  %v536 = vpop.f32.mrb[0].mxu0
  %v537 = vpop.f32.mrb[0].mxu0
  %538 = vdwg.mxu0
  %539 = vmatprep.subr.bf16.mxu0 %v356
  %540 = vmatpush1.bf16.msra.mxu0 %v355
  %541 = vmatprep.subr.bf16.mxu0 %v372
  %542 = vmatpush1.bf16.msra.mxu0 %v371
  %543 = vmatprep.subr.bf16.mxu0 0
  %544 = vmatpush1.bf16.msra.mxu0 0
  %545 = vmatprep.subr.bf16.mxu0 0
  %546 = vmatpush1.bf16.msra.mxu0 0
  %547 = vmatprep.subr.bf16.mxu0 0
  %548 = vmatpush1.bf16.msra.mxu0 0
  %549 = vmatprep.subr.bf16.mxu0 0
  %550 = vmatpush1.bf16.msra.mxu0 0
  %551 = vmatprep.subr.bf16.mxu0 0
  %552 = vmatpush1.bf16.msra.mxu0 0
  %553 = vmatprep.subr.bf16.mxu0 0
  %554 = vmatpush1.bf16.msra.mxu0 0
  %555 = vmatprep.subr.bf16.mxu0 0
  %556 = vmatpush1.bf16.msra.mxu0 0
  %557 = vmatprep.subr.bf16.mxu0 0
  %558 = vmatpush1.bf16.msra.mxu0 0
  %559 = vmatprep.subr.bf16.mxu0 0
  %560 = vmatpush1.bf16.msra.mxu0 0
  %561 = vmatprep.subr.bf16.mxu0 0
  %562 = vmatpush1.bf16.msra.mxu0 0
  %563 = vmatprep.subr.bf16.mxu0 0
  %564 = vmatpush1.bf16.msra.mxu0 0
  %565 = vmatprep.subr.bf16.mxu0 0
  %566 = vmatpush1.bf16.msra.mxu0 0
  %567 = vmatprep.subr.bf16.mxu0 0
  %568 = vmatpush1.bf16.msra.mxu0 0
  %569 = vmatprep.subr.bf16.mxu0 0
  %570 = vmatpush1.bf16.msra.mxu0 0
  %571 = vmatprep.mubr.bf16.mxu0 0
  %572 = vmatmul.mubr.bf16.gmra.mrb[0].mxu0 %v414
  %v573 = vpop.f32.mrb[0].mxu0
  %v574 = vadd.f32 %v200, %v573
  %v575 = vpop.f32.mrb[0].mxu0
  %v576 = vadd.f32 %v204, %v575
  %v577 = vpop.f32.mrb[0].mxu0
  %v578 = vpop.f32.mrb[0].mxu0
  %579 = vdwg.mxu0
  %580 = vmatprep.subr.bf16.mxu0 %v358
  %581 = vmatpush1.bf16.msra.mxu0 %v357
  %582 = vmatprep.subr.bf16.mxu0 %v374
  %583 = vmatpush1.bf16.msra.mxu0 %v373
  %584 = vmatprep.subr.bf16.mxu0 0
  %585 = vmatpush1.bf16.msra.mxu0 0
  %586 = vmatprep.subr.bf16.mxu0 0
  %587 = vmatpush1.bf16.msra.mxu0 0
  %588 = vmatprep.subr.bf16.mxu0 0
  %589 = vmatpush1.bf16.msra.mxu0 0
  %590 = vmatprep.subr.bf16.mxu0 0
  %591 = vmatpush1.bf16.msra.mxu0 0
  %592 = vmatprep.subr.bf16.mxu0 0
  %593 = vmatpush1.bf16.msra.mxu0 0
  %594 = vmatprep.subr.bf16.mxu0 0
  %595 = vmatpush1.bf16.msra.mxu0 0
  %596 = vmatprep.subr.bf16.mxu0 0
  %597 = vmatpush1.bf16.msra.mxu0 0
  %598 = vmatprep.subr.bf16.mxu0 0
  %599 = vmatpush1.bf16.msra.mxu0 0
  %600 = vmatprep.subr.bf16.mxu0 0
  %601 = vmatpush1.bf16.msra.mxu0 0
  %602 = vmatprep.subr.bf16.mxu0 0
  %603 = vmatpush1.bf16.msra.mxu0 0
  %604 = vmatprep.subr.bf16.mxu0 0
  %605 = vmatpush1.bf16.msra.mxu0 0
  %606 = vmatprep.subr.bf16.mxu0 0
  %607 = vmatpush1.bf16.msra.mxu0 0
  %608 = vmatprep.subr.bf16.mxu0 0
  %609 = vmatpush1.bf16.msra.mxu0 0
  %610 = vmatprep.subr.bf16.mxu0 0
  %611 = vmatpush1.bf16.msra.mxu0 0
  %612 = vmatprep.mubr.bf16.mxu0 0
  %613 = vmatmul.mubr.bf16.gmra.mrb[0].mxu0 %v414
  %v614 = vpop.f32.mrb[0].mxu0
  %v615 = vadd.f32 %v208, %v614
  %v616 = vpop.f32.mrb[0].mxu0
  %v617 = vadd.f32 %v212, %v616
  %v618 = vpop.f32.mrb[0].mxu0
  %v619 = vpop.f32.mrb[0].mxu0
  %620 = vdwg.mxu0
  %621 = vmatprep.subr.bf16.mxu0 %v360
  %622 = vmatpush1.bf16.msra.mxu0 %v359
  %623 = vmatprep.subr.bf16.mxu0 %v376
  %624 = vmatpush1.bf16.msra.mxu0 %v375
  %625 = vmatprep.subr.bf16.mxu0 0
  %626 = vmatpush1.bf16.msra.mxu0 0
  %627 = vmatprep.subr.bf16.mxu0 0
  %628 = vmatpush1.bf16.msra.mxu0 0
  %629 = vmatprep.subr.bf16.mxu0 0
  %630 = vmatpush1.bf16.msra.mxu0 0
  %631 = vmatprep.subr.bf16.mxu0 0
  %632 = vmatpush1.bf16.msra.mxu0 0
  %633 = vmatprep.subr.bf16.mxu0 0
  %634 = vmatpush1.bf16.msra.mxu0 0
  %635 = vmatprep.subr.bf16.mxu0 0
  %636 = vmatpush1.bf16.msra.mxu0 0
  %637 = vmatprep.subr.bf16.mxu0 0
  %638 = vmatpush1.bf16.msra.mxu0 0
  %639 = vmatprep.subr.bf16.mxu0 0
  %640 = vmatpush1.bf16.msra.mxu0 0
  %641 = vmatprep.subr.bf16.mxu0 0
  %642 = vmatpush1.bf16.msra.mxu0 0
  %643 = vmatprep.subr.bf16.mxu0 0
  %644 = vmatpush1.bf16.msra.mxu0 0
  %645 = vmatprep.subr.bf16.mxu0 0
  %646 = vmatpush1.bf16.msra.mxu0 0
  %647 = vmatprep.subr.bf16.mxu0 0
  %648 = vmatpush1.bf16.msra.mxu0 0
  %649 = vmatprep.subr.bf16.mxu0 0
  %650 = vmatpush1.bf16.msra.mxu0 0
  %651 = vmatprep.subr.bf16.mxu0 0
  %652 = vmatpush1.bf16.msra.mxu0 0
  %653 = vmatprep.mubr.bf16.mxu0 0
  %654 = vmatmul.mubr.bf16.gmra.mrb[0].mxu0 %v414
  %v655 = vpop.f32.mrb[0].mxu0
  %v656 = vadd.f32 %v216, %v655
  %v657 = vpop.f32.mrb[0].mxu0
  %v658 = vadd.f32 %v220, %v657
  %v659 = vpop.f32.mrb[0].mxu0
  %v660 = vpop.f32.mrb[0].mxu0
  %661 = vdwg.mxu0
  %662 = vmatprep.subr.bf16.mxu0 %v362
  %663 = vmatpush1.bf16.msra.mxu0 %v361
  %664 = vmatprep.subr.bf16.mxu0 %v378
  %665 = vmatpush1.bf16.msra.mxu0 %v377
  %666 = vmatprep.subr.bf16.mxu0 0
  %667 = vmatpush1.bf16.msra.mxu0 0
  %668 = vmatprep.subr.bf16.mxu0 0
  %669 = vmatpush1.bf16.msra.mxu0 0
  %670 = vmatprep.subr.bf16.mxu0 0
  %671 = vmatpush1.bf16.msra.mxu0 0
  %672 = vmatprep.subr.bf16.mxu0 0
  %673 = vmatpush1.bf16.msra.mxu0 0
  %674 = vmatprep.subr.bf16.mxu0 0
  %675 = vmatpush1.bf16.msra.mxu0 0
  %676 = vmatprep.subr.bf16.mxu0 0
  %677 = vmatpush1.bf16.msra.mxu0 0
  %678 = vmatprep.subr.bf16.mxu0 0
  %679 = vmatpush1.bf16.msra.mxu0 0
  %680 = vmatprep.subr.bf16.mxu0 0
  %681 = vmatpush1.bf16.msra.mxu0 0
  %682 = vmatprep.subr.bf16.mxu0 0
  %683 = vmatpush1.bf16.msra.mxu0 0
  %684 = vmatprep.subr.bf16.mxu0 0
  %685 = vmatpush1.bf16.msra.mxu0 0
  %686 = vmatprep.subr.bf16.mxu0 0
  %687 = vmatpush1.bf16.msra.mxu0 0
  %688 = vmatprep.subr.bf16.mxu0 0
  %689 = vmatpush1.bf16.msra.mxu0 0
  %690 = vmatprep.subr.bf16.mxu0 0
  %691 = vmatpush1.bf16.msra.mxu0 0
  %692 = vmatprep.subr.bf16.mxu0 0
  %693 = vmatpush1.bf16.msra.mxu0 0
  %694 = vmatprep.mubr.bf16.mxu0 0
  %695 = vmatmul.mubr.bf16.gmra.mrb[0].mxu0 %v414
  %v696 = vpop.f32.mrb[0].mxu0
  %v697 = vadd.f32 %v224, %v696
  %v698 = vpop.f32.mrb[0].mxu0
  %v699 = vadd.f32 %v228, %v698
  %v700 = vpop.f32.mrb[0].mxu0
  %v701 = vpop.f32.mrb[0].mxu0
  %702 = vdwg.mxu0
  %703 = vmatprep.subr.bf16.mxu0 %v364
  %704 = vmatpush1.bf16.msra.mxu0 %v363
  %705 = vmatprep.subr.bf16.mxu0 %v380
  %706 = vmatpush1.bf16.msra.mxu0 %v379
  %707 = vmatprep.subr.bf16.mxu0 0
  %708 = vmatpush1.bf16.msra.mxu0 0
  %709 = vmatprep.subr.bf16.mxu0 0
  %710 = vmatpush1.bf16.msra.mxu0 0
  %711 = vmatprep.subr.bf16.mxu0 0
  %712 = vmatpush1.bf16.msra.mxu0 0
  %713 = vmatprep.subr.bf16.mxu0 0
  %714 = vmatpush1.bf16.msra.mxu0 0
  %715 = vmatprep.subr.bf16.mxu0 0
  %716 = vmatpush1.bf16.msra.mxu0 0
  %717 = vmatprep.subr.bf16.mxu0 0
  %718 = vmatpush1.bf16.msra.mxu0 0
  %719 = vmatprep.subr.bf16.mxu0 0
  %720 = vmatpush1.bf16.msra.mxu0 0
  %721 = vmatprep.subr.bf16.mxu0 0
  %722 = vmatpush1.bf16.msra.mxu0 0
  %723 = vmatprep.subr.bf16.mxu0 0
  %724 = vmatpush1.bf16.msra.mxu0 0
  %725 = vmatprep.subr.bf16.mxu0 0
  %726 = vmatpush1.bf16.msra.mxu0 0
  %727 = vmatprep.subr.bf16.mxu0 0
  %728 = vmatpush1.bf16.msra.mxu0 0
  %729 = vmatprep.subr.bf16.mxu0 0
  %730 = vmatpush1.bf16.msra.mxu0 0
  %731 = vmatprep.subr.bf16.mxu0 0
  %732 = vmatpush1.bf16.msra.mxu0 0
  %733 = vmatprep.subr.bf16.mxu0 0
  %734 = vmatpush1.bf16.msra.mxu0 0
  %735 = vmatprep.mubr.bf16.mxu0 0
  %736 = vmatmul.mubr.bf16.gmra.mrb[0].mxu0 %v414
  %v737 = vpop.f32.mrb[0].mxu0
  %v738 = vadd.f32 %v232, %v737
  %v739 = vpop.f32.mrb[0].mxu0
  %v740 = vadd.f32 %v236, %v739
  %v741 = vpop.f32.mrb[0].mxu0
  %v742 = vpop.f32.mrb[0].mxu0
  %743 = vdwg.mxu0
  %v744 = vmax.f32 %v451, 0.0
  %v745 = vmax.f32 %v453, 0.0
  %v746 = vmax.f32 %v492, 0.0
  %v747 = vmax.f32 %v494, 0.0
  %v748 = vmax.f32 %v533, 0.0
  %v749 = vmax.f32 %v535, 0.0
  %v750 = vmax.f32 %v574, 0.0
  %v751 = vmax.f32 %v576, 0.0
  %v752 = vmax.f32 %v615, 0.0
  %v753 = vmax.f32 %v617, 0.0
  %v754 = vmax.f32 %v656, 0.0
  %v755 = vmax.f32 %v658, 0.0
  %v756 = vmax.f32 %v697, 0.0
  %v757 = vmax.f32 %v699, 0.0
  %v758 = vmax.f32 %v738, 0.0
  %v759 = vmax.f32 %v740, 0.0
  %v760 = vpack.c.bf16 %v744, %v744
  %v761 = vpack.c.bf16 %v745, %v745
  %v762 = vpack.c.bf16 %v746, %v746
  %v763 = vpack.c.bf16 %v747, %v747
  %v764 = vpack.c.bf16 %v748, %v748
  %v765 = vpack.c.bf16 %v749, %v749
  %v766 = vpack.c.bf16 %v750, %v750
  %v767 = vpack.c.bf16 %v751, %v751
  %v768 = vpack.c.bf16 %v752, %v752
  %v769 = vpack.c.bf16 %v753, %v753
  %v770 = vpack.c.bf16 %v754, %v754
  %v771 = vpack.c.bf16 %v755, %v755
  %v772 = vpack.c.bf16 %v756, %v756
  %v773 = vpack.c.bf16 %v757, %v757
  %v774 = vpack.c.bf16 %v758, %v758
  %v775 = vpack.c.bf16 %v759, %v759
  %v776 = vld [vmem:[%s4] sm:$0xf]
  %v777 = vld [vmem:[%s4 + $0x4] sm:$0xf]
  %v778 = vld [vmem:[%s4 + $0x8] sm:$0xf]
  %v779 = vld [vmem:[%s4 + $0xc] sm:$0xf]
  %v780 = vld [vmem:[%s4 + $0x10] sm:$0xf]
  %v781 = vld [vmem:[%s4 + $0x14] sm:$0xf]
  %v782 = vld [vmem:[%s4 + $0x18] sm:$0xf]
  %v783 = vld [vmem:[%s4 + $0x1c] sm:$0xf]
  %v784 = vld [vmem:[%s4 + $0x20] sm:$0xf]
  %v785 = vld [vmem:[%s4 + $0x24] sm:$0xf]
  %v786 = vld [vmem:[%s4 + $0x28] sm:$0xf]
  %v787 = vld [vmem:[%s4 + $0x2c] sm:$0xf]
  %v788 = vld [vmem:[%s4 + $0x30] sm:$0xf]
  %v789 = vld [vmem:[%s4 + $0x34] sm:$0xf]
  %v790 = vld [vmem:[%s4 + $0x38] sm:$0xf]
  %v791 = vld [vmem:[%s4 + $0x3c] sm:$0xf]
  %v792 = vld [vmem:[%s4 + $0x40] sm:$0xf]
  %v793 = vld [vmem:[%s4 + $0x44] sm:$0xf]
  %v794 = vld [vmem:[%s4 + $0x48] sm:$0xf]
  %v795 = vld [vmem:[%s4 + $0x4c] sm:$0xf]
  %v796 = vld [vmem:[%s4 + $0x50] sm:$0xf]
  %v797 = vld [vmem:[%s4 + $0x54] sm:$0xf]
  %v798 = vld [vmem:[%s4 + $0x58] sm:$0xf]
  %v799 = vld [vmem:[%s4 + $0x5c] sm:$0xf]
  %v800 = vld [vmem:[%s4 + $0x60] sm:$0xf]
  %v801 = vld [vmem:[%s4 + $0x64] sm:$0xf]
  %v802 = vld [vmem:[%s4 + $0x68] sm:$0xf]
  %v803 = vld [vmem:[%s4 + $0x6c] sm:$0xf]
  %v804 = vld [vmem:[%s4 + $0x70] sm:$0xf]
  %v805 = vld [vmem:[%s4 + $0x74] sm:$0xf]
  %v806 = vld [vmem:[%s4 + $0x78] sm:$0xf]
  %v807 = vld [vmem:[%s4 + $0x7c] sm:$0xf]
  %v808 = vld [vmem:[%s4 + $0x80] sm:$0xf]
  %v809 = vld [vmem:[%s4 + $0x84] sm:$0xf]
  %v810 = vld [vmem:[%s4 + $0x88] sm:$0xf]
  %v811 = vld [vmem:[%s4 + $0x8c] sm:$0xf]
  %v812 = vld [vmem:[%s4 + $0x90] sm:$0xf]
  %v813 = vld [vmem:[%s4 + $0x94] sm:$0xf]
  %v814 = vld [vmem:[%s4 + $0x98] sm:$0xf]
  %v815 = vld [vmem:[%s4 + $0x9c] sm:$0xf]
  %v816 = vld [vmem:[%s4 + $0xa0] sm:$0xf]
  %v817 = vld [vmem:[%s4 + $0xa4] sm:$0xf]
  %v818 = vld [vmem:[%s4 + $0xa8] sm:$0xf]
  %v819 = vld [vmem:[%s4 + $0xac] sm:$0xf]
  %v820 = vld [vmem:[%s4 + $0xb0] sm:$0xf]
  %v821 = vld [vmem:[%s4 + $0xb4] sm:$0xf]
  %v822 = vld [vmem:[%s4 + $0xb8] sm:$0xf]
  %v823 = vld [vmem:[%s4 + $0xbc] sm:$0xf]
  %v824 = vld [vmem:[%s4 + $0xc0] sm:$0xf]
  %v825 = vld [vmem:[%s4 + $0xc4] sm:$0xf]
  %v826 = vld [vmem:[%s4 + $0xc8] sm:$0xf]
  %v827 = vld [vmem:[%s4 + $0xcc] sm:$0xf]
  %v828 = vld [vmem:[%s4 + $0xd0] sm:$0xf]
  %v829 = vld [vmem:[%s4 + $0xd4] sm:$0xf]
  %v830 = vld [vmem:[%s4 + $0xd8] sm:$0xf]
  %v831 = vld [vmem:[%s4 + $0xdc] sm:$0xf]
  %v832 = vld [vmem:[%s4 + $0xe0] sm:$0xf]
  %v833 = vld [vmem:[%s4 + $0xe4] sm:$0xf]
  %v834 = vld [vmem:[%s4 + $0xe8] sm:$0xf]
  %v835 = vld [vmem:[%s4 + $0xec] sm:$0xf]
  %v836 = vld [vmem:[%s4 + $0xf0] sm:$0xf]
  %v837 = vld [vmem:[%s4 + $0xf4] sm:$0xf]
  %v838 = vld [vmem:[%s4 + $0xf8] sm:$0xf]
  %v839 = vld [vmem:[%s4 + $0xfc] sm:$0xf]
  %v840 = vld [vmem:[%s4 + $0x100] sm:$0xf]
  %v841 = vld [vmem:[%s4 + $0x104] sm:$0xf]
  %v842 = vld [vmem:[%s4 + $0x108] sm:$0xf]
  %v843 = vld [vmem:[%s4 + $0x10c] sm:$0xf]
  %v844 = vld [vmem:[%s4 + $0x110] sm:$0xf]
  %v845 = vld [vmem:[%s4 + $0x114] sm:$0xf]
  %v846 = vld [vmem:[%s4 + $0x118] sm:$0xf]
  %v847 = vld [vmem:[%s4 + $0x11c] sm:$0xf]
  %v848 = vld [vmem:[%s4 + $0x120] sm:$0xf]
  %v849 = vld [vmem:[%s4 + $0x124] sm:$0xf]
  %v850 = vld [vmem:[%s4 + $0x128] sm:$0xf]
  %v851 = vld [vmem:[%s4 + $0x12c] sm:$0xf]
  %v852 = vld [vmem:[%s4 + $0x130] sm:$0xf]
  %v853 = vld [vmem:[%s4 + $0x134] sm:$0xf]
  %v854 = vld [vmem:[%s4 + $0x138] sm:$0xf]
  %v855 = vld [vmem:[%s4 + $0x13c] sm:$0xf]
  %v856 = vld [vmem:[%s4 + $0x140] sm:$0xf]
  %v857 = vld [vmem:[%s4 + $0x144] sm:$0xf]
  %v858 = vld [vmem:[%s4 + $0x148] sm:$0xf]
  %v859 = vld [vmem:[%s4 + $0x14c] sm:$0xf]
  %v860 = vld [vmem:[%s4 + $0x150] sm:$0xf]
  %v861 = vld [vmem:[%s4 + $0x154] sm:$0xf]
  %v862 = vld [vmem:[%s4 + $0x158] sm:$0xf]
  %v863 = vld [vmem:[%s4 + $0x15c] sm:$0xf]
  %v864 = vld [vmem:[%s4 + $0x160] sm:$0xf]
  %v865 = vld [vmem:[%s4 + $0x164] sm:$0xf]
  %v866 = vld [vmem:[%s4 + $0x168] sm:$0xf]
  %v867 = vld [vmem:[%s4 + $0x16c] sm:$0xf]
  %v868 = vld [vmem:[%s4 + $0x170] sm:$0xf]
  %v869 = vld [vmem:[%s4 + $0x174] sm:$0xf]
  %v870 = vld [vmem:[%s4 + $0x178] sm:$0xf]
  %v871 = vld [vmem:[%s4 + $0x17c] sm:$0xf]
  %v872 = vld [vmem:[%s4 + $0x180] sm:$0xf]
  %v873 = vld [vmem:[%s4 + $0x184] sm:$0xf]
  %v874 = vld [vmem:[%s4 + $0x188] sm:$0xf]
  %v875 = vld [vmem:[%s4 + $0x18c] sm:$0xf]
  %v876 = vld [vmem:[%s4 + $0x190] sm:$0xf]
  %v877 = vld [vmem:[%s4 + $0x194] sm:$0xf]
  %v878 = vld [vmem:[%s4 + $0x198] sm:$0xf]
  %v879 = vld [vmem:[%s4 + $0x19c] sm:$0xf]
  %v880 = vld [vmem:[%s4 + $0x1a0] sm:$0xf]
  %v881 = vld [vmem:[%s4 + $0x1a4] sm:$0xf]
  %v882 = vld [vmem:[%s4 + $0x1a8] sm:$0xf]
  %v883 = vld [vmem:[%s4 + $0x1ac] sm:$0xf]
  %v884 = vld [vmem:[%s4 + $0x1b0] sm:$0xf]
  %v885 = vld [vmem:[%s4 + $0x1b4] sm:$0xf]
  %v886 = vld [vmem:[%s4 + $0x1b8] sm:$0xf]
  %v887 = vld [vmem:[%s4 + $0x1bc] sm:$0xf]
  %v888 = vld [vmem:[%s4 + $0x1c0] sm:$0xf]
  %v889 = vld [vmem:[%s4 + $0x1c4] sm:$0xf]
  %v890 = vld [vmem:[%s4 + $0x1c8] sm:$0xf]
  %v891 = vld [vmem:[%s4 + $0x1cc] sm:$0xf]
  %v892 = vld [vmem:[%s4 + $0x1d0] sm:$0xf]
  %v893 = vld [vmem:[%s4 + $0x1d4] sm:$0xf]
  %v894 = vld [vmem:[%s4 + $0x1d8] sm:$0xf]
  %v895 = vld [vmem:[%s4 + $0x1dc] sm:$0xf]
  %v896 = vld [vmem:[%s4 + $0x1e0] sm:$0xf]
  %v897 = vld [vmem:[%s4 + $0x1e4] sm:$0xf]
  %v898 = vld [vmem:[%s4 + $0x1e8] sm:$0xf]
  %v899 = vld [vmem:[%s4 + $0x1ec] sm:$0xf]
  %v900 = vld [vmem:[%s4 + $0x1f0] sm:$0xf]
  %v901 = vld [vmem:[%s4 + $0x1f4] sm:$0xf]
  %v902 = vld [vmem:[%s4 + $0x1f8] sm:$0xf]
  %v903 = vld [vmem:[%s4 + $0x1fc] sm:$0xf]
  %v904 = vld [vmem:[%s4 + $0x200] sm:$0xf]
  %v905 = vld [vmem:[%s4 + $0x204] sm:$0xf]
  %v906 = vld [vmem:[%s4 + $0x208] sm:$0xf]
  %v907 = vld [vmem:[%s4 + $0x20c] sm:$0xf]
  %v908 = vld [vmem:[%s4 + $0x210] sm:$0xf]
  %v909 = vld [vmem:[%s4 + $0x214] sm:$0xf]
  %v910 = vld [vmem:[%s4 + $0x218] sm:$0xf]
  %v911 = vld [vmem:[%s4 + $0x21c] sm:$0xf]
  %v912 = vld [vmem:[%s4 + $0x220] sm:$0xf]
  %v913 = vld [vmem:[%s4 + $0x224] sm:$0xf]
  %v914 = vld [vmem:[%s4 + $0x228] sm:$0xf]
  %v915 = vld [vmem:[%s4 + $0x22c] sm:$0xf]
  %v916 = vld [vmem:[%s4 + $0x230] sm:$0xf]
  %v917 = vld [vmem:[%s4 + $0x234] sm:$0xf]
  %v918 = vld [vmem:[%s4 + $0x238] sm:$0xf]
  %v919 = vld [vmem:[%s4 + $0x23c] sm:$0xf]
  %v920 = vld [vmem:[%s4 + $0x240] sm:$0xf]
  %v921 = vld [vmem:[%s4 + $0x244] sm:$0xf]
  %v922 = vld [vmem:[%s4 + $0x248] sm:$0xf]
  %v923 = vld [vmem:[%s4 + $0x24c] sm:$0xf]
  %v924 = vld [vmem:[%s4 + $0x250] sm:$0xf]
  %v925 = vld [vmem:[%s4 + $0x254] sm:$0xf]
  %v926 = vld [vmem:[%s4 + $0x258] sm:$0xf]
  %v927 = vld [vmem:[%s4 + $0x25c] sm:$0xf]
  %v928 = vld [vmem:[%s4 + $0x260] sm:$0xf]
  %v929 = vld [vmem:[%s4 + $0x264] sm:$0xf]
  %v930 = vld [vmem:[%s4 + $0x268] sm:$0xf]
  %v931 = vld [vmem:[%s4 + $0x26c] sm:$0xf]
  %v932 = vld [vmem:[%s4 + $0x270] sm:$0xf]
  %v933 = vld [vmem:[%s4 + $0x274] sm:$0xf]
  %v934 = vld [vmem:[%s4 + $0x278] sm:$0xf]
  %v935 = vld [vmem:[%s4 + $0x27c] sm:$0xf]
  %v936 = vld [vmem:[%s4 + $0x280] sm:$0xf]
  %v937 = vld [vmem:[%s4 + $0x284] sm:$0xf]
  %v938 = vld [vmem:[%s4 + $0x288] sm:$0xf]
  %v939 = vld [vmem:[%s4 + $0x28c] sm:$0xf]
  %v940 = vld [vmem:[%s4 + $0x290] sm:$0xf]
  %v941 = vld [vmem:[%s4 + $0x294] sm:$0xf]
  %v942 = vld [vmem:[%s4 + $0x298] sm:$0xf]
  %v943 = vld [vmem:[%s4 + $0x29c] sm:$0xf]
  %v944 = vld [vmem:[%s4 + $0x2a0] sm:$0xf]
  %v945 = vld [vmem:[%s4 + $0x2a4] sm:$0xf]
  %v946 = vld [vmem:[%s4 + $0x2a8] sm:$0xf]
  %v947 = vld [vmem:[%s4 + $0x2ac] sm:$0xf]
  %v948 = vld [vmem:[%s4 + $0x2b0] sm:$0xf]
  %v949 = vld [vmem:[%s4 + $0x2b4] sm:$0xf]
  %v950 = vld [vmem:[%s4 + $0x2b8] sm:$0xf]
  %v951 = vld [vmem:[%s4 + $0x2bc] sm:$0xf]
  %v952 = vld [vmem:[%s4 + $0x2c0] sm:$0xf]
  %v953 = vld [vmem:[%s4 + $0x2c4] sm:$0xf]
  %v954 = vld [vmem:[%s4 + $0x2c8] sm:$0xf]
  %v955 = vld [vmem:[%s4 + $0x2cc] sm:$0xf]
  %v956 = vld [vmem:[%s4 + $0x2d0] sm:$0xf]
  %v957 = vld [vmem:[%s4 + $0x2d4] sm:$0xf]
  %v958 = vld [vmem:[%s4 + $0x2d8] sm:$0xf]
  %v959 = vld [vmem:[%s4 + $0x2dc] sm:$0xf]
  %v960 = vld [vmem:[%s4 + $0x2e0] sm:$0xf]
  %v961 = vld [vmem:[%s4 + $0x2e4] sm:$0xf]
  %v962 = vld [vmem:[%s4 + $0x2e8] sm:$0xf]
  %v963 = vld [vmem:[%s4 + $0x2ec] sm:$0xf]
  %v964 = vld [vmem:[%s4 + $0x2f0] sm:$0xf]
  %v965 = vld [vmem:[%s4 + $0x2f4] sm:$0xf]
  %v966 = vld [vmem:[%s4 + $0x2f8] sm:$0xf]
  %v967 = vld [vmem:[%s4 + $0x2fc] sm:$0xf]
  %v968 = vld [vmem:[%s4 + $0x300] sm:$0xf]
  %v969 = vld [vmem:[%s4 + $0x304] sm:$0xf]
  %v970 = vld [vmem:[%s4 + $0x308] sm:$0xf]
  %v971 = vld [vmem:[%s4 + $0x30c] sm:$0xf]
  %v972 = vld [vmem:[%s4 + $0x310] sm:$0xf]
  %v973 = vld [vmem:[%s4 + $0x314] sm:$0xf]
  %v974 = vld [vmem:[%s4 + $0x318] sm:$0xf]
  %v975 = vld [vmem:[%s4 + $0x31c] sm:$0xf]
  %v976 = vld [vmem:[%s4 + $0x320] sm:$0xf]
  %v977 = vld [vmem:[%s4 + $0x324] sm:$0xf]
  %v978 = vld [vmem:[%s4 + $0x328] sm:$0xf]
  %v979 = vld [vmem:[%s4 + $0x32c] sm:$0xf]
  %v980 = vld [vmem:[%s4 + $0x330] sm:$0xf]
  %v981 = vld [vmem:[%s4 + $0x334] sm:$0xf]
  %v982 = vld [vmem:[%s4 + $0x338] sm:$0xf]
  %v983 = vld [vmem:[%s4 + $0x33c] sm:$0xf]
  %v984 = vld [vmem:[%s4 + $0x340] sm:$0xf]
  %v985 = vld [vmem:[%s4 + $0x344] sm:$0xf]
  %v986 = vld [vmem:[%s4 + $0x348] sm:$0xf]
  %v987 = vld [vmem:[%s4 + $0x34c] sm:$0xf]
  %v988 = vld [vmem:[%s4 + $0x350] sm:$0xf]
  %v989 = vld [vmem:[%s4 + $0x354] sm:$0xf]
  %v990 = vld [vmem:[%s4 + $0x358] sm:$0xf]
  %v991 = vld [vmem:[%s4 + $0x35c] sm:$0xf]
  %v992 = vld [vmem:[%s4 + $0x360] sm:$0xf]
  %v993 = vld [vmem:[%s4 + $0x364] sm:$0xf]
  %v994 = vld [vmem:[%s4 + $0x368] sm:$0xf]
  %v995 = vld [vmem:[%s4 + $0x36c] sm:$0xf]
  %v996 = vld [vmem:[%s4 + $0x370] sm:$0xf]
  %v997 = vld [vmem:[%s4 + $0x374] sm:$0xf]
  %v998 = vld [vmem:[%s4 + $0x378] sm:$0xf]
  %v999 = vld [vmem:[%s4 + $0x37c] sm:$0xf]
  %v1000 = vld [vmem:[%s4 + $0x380] sm:$0xf]
  %v1001 = vld [vmem:[%s4 + $0x384] sm:$0xf]
  %v1002 = vld [vmem:[%s4 + $0x388] sm:$0xf]
  %v1003 = vld [vmem:[%s4 + $0x38c] sm:$0xf]
  %v1004 = vld [vmem:[%s4 + $0x390] sm:$0xf]
  %v1005 = vld [vmem:[%s4 + $0x394] sm:$0xf]
  %v1006 = vld [vmem:[%s4 + $0x398] sm:$0xf]
  %v1007 = vld [vmem:[%s4 + $0x39c] sm:$0xf]
  %v1008 = vld [vmem:[%s4 + $0x3a0] sm:$0xf]
  %v1009 = vld [vmem:[%s4 + $0x3a4] sm:$0xf]
  %v1010 = vld [vmem:[%s4 + $0x3a8] sm:$0xf]
  %v1011 = vld [vmem:[%s4 + $0x3ac] sm:$0xf]
  %v1012 = vld [vmem:[%s4 + $0x3b0] sm:$0xf]
  %v1013 = vld [vmem:[%s4 + $0x3b4] sm:$0xf]
  %v1014 = vld [vmem:[%s4 + $0x3b8] sm:$0xf]
  %v1015 = vld [vmem:[%s4 + $0x3bc] sm:$0xf]
  %v1016 = vld [vmem:[%s4 + $0x3c0] sm:$0xf]
  %v1017 = vld [vmem:[%s4 + $0x3c4] sm:$0xf]
  %v1018 = vld [vmem:[%s4 + $0x3c8] sm:$0xf]
  %v1019 = vld [vmem:[%s4 + $0x3cc] sm:$0xf]
  %v1020 = vld [vmem:[%s4 + $0x3d0] sm:$0xf]
  %v1021 = vld [vmem:[%s4 + $0x3d4] sm:$0xf]
  %v1022 = vld [vmem:[%s4 + $0x3d8] sm:$0xf]
  %v1023 = vld [vmem:[%s4 + $0x3dc] sm:$0xf]
  %v1024 = vld [vmem:[%s4 + $0x3e0] sm:$0xf]
  %v1025 = vld [vmem:[%s4 + $0x3e4] sm:$0xf]
  %v1026 = vld [vmem:[%s4 + $0x3e8] sm:$0xf]
  %v1027 = vld [vmem:[%s4 + $0x3ec] sm:$0xf]
  %v1028 = vld [vmem:[%s4 + $0x3f0] sm:$0xf]
  %v1029 = vld [vmem:[%s4 + $0x3f4] sm:$0xf]
  %v1030 = vld [vmem:[%s4 + $0x3f8] sm:$0xf]
  %v1031 = vld [vmem:[%s4 + $0x3fc] sm:$0xf]
  %v1032 = vlaneseq
  %v1033 = vshrl.u32 %v1032, 7
  %v1034 = vsub.s32 0, %v1033
  %v1035 = vrot.slane %v29, %v1034
  %v1292 = vunpack.c.l.b16 %v776
  %v1293 = vunpack.c.l.b16 %v777
  %v1294 = vunpack.c.l.b16 %v778
  %v1295 = vunpack.c.l.b16 %v779
  %v1296 = vunpack.c.l.b16 %v780
  %v1297 = vunpack.c.l.b16 %v781
  %v1298 = vunpack.c.l.b16 %v782
  %v1299 = vunpack.c.l.b16 %v783
  %v1300 = vunpack.c.l.b16 %v784
  %v1301 = vunpack.c.l.b16 %v785
  %v1302 = vunpack.c.l.b16 %v786
  %v1303 = vunpack.c.l.b16 %v787
  %v1304 = vunpack.c.l.b16 %v788
  %v1305 = vunpack.c.l.b16 %v789
  %v1306 = vunpack.c.l.b16 %v790
  %v1307 = vunpack.c.l.b16 %v791
  %v1308 = vunpack.c.l.b16 %v792
  %v1309 = vunpack.c.l.b16 %v793
  %v1310 = vunpack.c.l.b16 %v794
  %v1311 = vunpack.c.l.b16 %v795
  %v1312 = vunpack.c.l.b16 %v796
  %v1313 = vunpack.c.l.b16 %v797
  %v1314 = vunpack.c.l.b16 %v798
  %v1315 = vunpack.c.l.b16 %v799
  %v1316 = vunpack.c.l.b16 %v800
  %v1317 = vunpack.c.l.b16 %v801
  %v1318 = vunpack.c.l.b16 %v802
  %v1319 = vunpack.c.l.b16 %v803
  %v1320 = vunpack.c.l.b16 %v804
  %v1321 = vunpack.c.l.b16 %v805
  %v1322 = vunpack.c.l.b16 %v806
  %v1323 = vunpack.c.l.b16 %v807
  %v1324 = vunpack.c.l.b16 %v808
  %v1325 = vunpack.c.l.b16 %v809
  %v1326 = vunpack.c.l.b16 %v810
  %v1327 = vunpack.c.l.b16 %v811
  %v1328 = vunpack.c.l.b16 %v812
  %v1329 = vunpack.c.l.b16 %v813
  %v1330 = vunpack.c.l.b16 %v814
  %v1331 = vunpack.c.l.b16 %v815
  %v1332 = vunpack.c.l.b16 %v816
  %v1333 = vunpack.c.l.b16 %v817
  %v1334 = vunpack.c.l.b16 %v818
  %v1335 = vunpack.c.l.b16 %v819
  %v1336 = vunpack.c.l.b16 %v820
  %v1337 = vunpack.c.l.b16 %v821
  %v1338 = vunpack.c.l.b16 %v822
  %v1339 = vunpack.c.l.b16 %v823
  %v1340 = vunpack.c.l.b16 %v824
  %v1341 = vunpack.c.l.b16 %v825
  %v1342 = vunpack.c.l.b16 %v826
  %v1343 = vunpack.c.l.b16 %v827
  %v1344 = vunpack.c.l.b16 %v828
  %v1345 = vunpack.c.l.b16 %v829
  %v1346 = vunpack.c.l.b16 %v830
  %v1347 = vunpack.c.l.b16 %v831
  %v1348 = vunpack.c.l.b16 %v832
  %v1349 = vunpack.c.l.b16 %v833
  %v1350 = vunpack.c.l.b16 %v834
  %v1351 = vunpack.c.l.b16 %v835
  %v1352 = vunpack.c.l.b16 %v836
  %v1353 = vunpack.c.l.b16 %v837
  %v1354 = vunpack.c.l.b16 %v838
  %v1355 = vunpack.c.l.b16 %v839
  %v1356 = vunpack.c.l.b16 %v840
  %v1357 = vunpack.c.l.b16 %v841
  %v1358 = vunpack.c.l.b16 %v842
  %v1359 = vunpack.c.l.b16 %v843
  %v1360 = vunpack.c.l.b16 %v844
  %v1361 = vunpack.c.l.b16 %v845
  %v1362 = vunpack.c.l.b16 %v846
  %v1363 = vunpack.c.l.b16 %v847
  %v1364 = vunpack.c.l.b16 %v848
  %v1365 = vunpack.c.l.b16 %v849
  %v1366 = vunpack.c.l.b16 %v850
  %v1367 = vunpack.c.l.b16 %v851
  %v1368 = vunpack.c.l.b16 %v852
  %v1369 = vunpack.c.l.b16 %v853
  %v1370 = vunpack.c.l.b16 %v854
  %v1371 = vunpack.c.l.b16 %v855
  %v1372 = vunpack.c.l.b16 %v856
  %v1373 = vunpack.c.l.b16 %v857
  %v1374 = vunpack.c.l.b16 %v858
  %v1375 = vunpack.c.l.b16 %v859
  %v1376 = vunpack.c.l.b16 %v860
  %v1377 = vunpack.c.l.b16 %v861
  %v1378 = vunpack.c.l.b16 %v862
  %v1379 = vunpack.c.l.b16 %v863
  %v1380 = vunpack.c.l.b16 %v864
  %v1381 = vunpack.c.l.b16 %v865
  %v1382 = vunpack.c.l.b16 %v866
  %v1383 = vunpack.c.l.b16 %v867
  %v1384 = vunpack.c.l.b16 %v868
  %v1385 = vunpack.c.l.b16 %v869
  %v1386 = vunpack.c.l.b16 %v870
  %v1387 = vunpack.c.l.b16 %v871
  %v1388 = vunpack.c.l.b16 %v872
  %v1389 = vunpack.c.l.b16 %v873
  %v1390 = vunpack.c.l.b16 %v874
  %v1391 = vunpack.c.l.b16 %v875
  %v1392 = vunpack.c.l.b16 %v876
  %v1393 = vunpack.c.l.b16 %v877
  %v1394 = vunpack.c.l.b16 %v878
  %v1395 = vunpack.c.l.b16 %v879
  %v1396 = vunpack.c.l.b16 %v880
  %v1397 = vunpack.c.l.b16 %v881
  %v1398 = vunpack.c.l.b16 %v882
  %v1399 = vunpack.c.l.b16 %v883
  %v1400 = vunpack.c.l.b16 %v884
  %v1401 = vunpack.c.l.b16 %v885
  %v1402 = vunpack.c.l.b16 %v886
  %v1403 = vunpack.c.l.b16 %v887
  %v1404 = vunpack.c.l.b16 %v888
  %v1405 = vunpack.c.l.b16 %v889
  %v1406 = vunpack.c.l.b16 %v890
  %v1407 = vunpack.c.l.b16 %v891
  %v1408 = vunpack.c.l.b16 %v892
  %v1409 = vunpack.c.l.b16 %v893
  %v1410 = vunpack.c.l.b16 %v894
  %v1411 = vunpack.c.l.b16 %v895
  %v1412 = vunpack.c.l.b16 %v896
  %v1413 = vunpack.c.l.b16 %v897
  %v1414 = vunpack.c.l.b16 %v898
  %v1415 = vunpack.c.l.b16 %v899
  %v1416 = vunpack.c.l.b16 %v900
  %v1417 = vunpack.c.l.b16 %v901
  %v1418 = vunpack.c.l.b16 %v902
  %v1419 = vunpack.c.l.b16 %v903
  %v1420 = vunpack.c.l.b16 %v904
  %v1421 = vunpack.c.l.b16 %v905
  %v1422 = vunpack.c.l.b16 %v906
  %v1423 = vunpack.c.l.b16 %v907
  %v1424 = vunpack.c.l.b16 %v908
  %v1425 = vunpack.c.l.b16 %v909
  %v1426 = vunpack.c.l.b16 %v910
  %v1427 = vunpack.c.l.b16 %v911
  %v1428 = vunpack.c.l.b16 %v912
  %v1429 = vunpack.c.l.b16 %v913
  %v1430 = vunpack.c.l.b16 %v914
  %v1431 = vunpack.c.l.b16 %v915
  %v1432 = vunpack.c.l.b16 %v916
  %v1433 = vunpack.c.l.b16 %v917
  %v1434 = vunpack.c.l.b16 %v918
  %v1435 = vunpack.c.l.b16 %v919
  %v1436 = vunpack.c.l.b16 %v920
  %v1437 = vunpack.c.l.b16 %v921
  %v1438 = vunpack.c.l.b16 %v922
  %v1439 = vunpack.c.l.b16 %v923
  %v1440 = vunpack.c.l.b16 %v924
  %v1441 = vunpack.c.l.b16 %v925
  %v1442 = vunpack.c.l.b16 %v926
  %v1443 = vunpack.c.l.b16 %v927
  %v1444 = vunpack.c.l.b16 %v928
  %v1445 = vunpack.c.l.b16 %v929
  %v1446 = vunpack.c.l.b16 %v930
  %v1447 = vunpack.c.l.b16 %v931
  %v1448 = vunpack.c.l.b16 %v932
  %v1449 = vunpack.c.l.b16 %v933
  %v1450 = vunpack.c.l.b16 %v934
  %v1451 = vunpack.c.l.b16 %v935
  %v1452 = vunpack.c.l.b16 %v936
  %v1453 = vunpack.c.l.b16 %v937
  %v1454 = vunpack.c.l.b16 %v938
  %v1455 = vunpack.c.l.b16 %v939
  %v1456 = vunpack.c.l.b16 %v940
  %v1457 = vunpack.c.l.b16 %v941
  %v1458 = vunpack.c.l.b16 %v942
  %v1459 = vunpack.c.l.b16 %v943
  %v1460 = vunpack.c.l.b16 %v944
  %v1461 = vunpack.c.l.b16 %v945
  %v1462 = vunpack.c.l.b16 %v946
  %v1463 = vunpack.c.l.b16 %v947
  %v1464 = vunpack.c.l.b16 %v948
  %v1465 = vunpack.c.l.b16 %v949
  %v1466 = vunpack.c.l.b16 %v950
  %v1467 = vunpack.c.l.b16 %v951
  %v1468 = vunpack.c.l.b16 %v952
  %v1469 = vunpack.c.l.b16 %v953
  %v1470 = vunpack.c.l.b16 %v954
  %v1471 = vunpack.c.l.b16 %v955
  %v1472 = vunpack.c.l.b16 %v956
  %v1473 = vunpack.c.l.b16 %v957
  %v1474 = vunpack.c.l.b16 %v958
  %v1475 = vunpack.c.l.b16 %v959
  %v1476 = vunpack.c.l.b16 %v960
  %v1477 = vunpack.c.l.b16 %v961
  %v1478 = vunpack.c.l.b16 %v962
  %v1479 = vunpack.c.l.b16 %v963
  %v1480 = vunpack.c.l.b16 %v964
  %v1481 = vunpack.c.l.b16 %v965
  %v1482 = vunpack.c.l.b16 %v966
  %v1483 = vunpack.c.l.b16 %v967
  %v1484 = vunpack.c.l.b16 %v968
  %v1485 = vunpack.c.l.b16 %v969
  %v1486 = vunpack.c.l.b16 %v970
  %v1487 = vunpack.c.l.b16 %v971
  %v1488 = vunpack.c.l.b16 %v972
  %v1489 = vunpack.c.l.b16 %v973
  %v1490 = vunpack.c.l.b16 %v974
  %v1491 = vunpack.c.l.b16 %v975
  %v1492 = vunpack.c.l.b16 %v976
  %v1493 = vunpack.c.l.b16 %v977
  %v1494 = vunpack.c.l.b16 %v978
  %v1495 = vunpack.c.l.b16 %v979
  %v1496 = vunpack.c.l.b16 %v980
  %v1497 = vunpack.c.l.b16 %v981
  %v1498 = vunpack.c.l.b16 %v982
  %v1499 = vunpack.c.l.b16 %v983
  %v1500 = vunpack.c.l.b16 %v984
  %v1501 = vunpack.c.l.b16 %v985
  %v1502 = vunpack.c.l.b16 %v986
  %v1503 = vunpack.c.l.b16 %v987
  %v1504 = vunpack.c.l.b16 %v988
  %v1505 = vunpack.c.l.b16 %v989
  %v1506 = vunpack.c.l.b16 %v990
  %v1507 = vunpack.c.l.b16 %v991
  %v1508 = vunpack.c.l.b16 %v992
  %v1509 = vunpack.c.l.b16 %v993
  %v1510 = vunpack.c.l.b16 %v994
  %v1511 = vunpack.c.l.b16 %v995
  %v1512 = vunpack.c.l.b16 %v996
  %v1513 = vunpack.c.l.b16 %v997
  %v1514 = vunpack.c.l.b16 %v998
  %v1515 = vunpack.c.l.b16 %v999
  %v1516 = vunpack.c.l.b16 %v1000
  %v1517 = vunpack.c.l.b16 %v1001
  %v1518 = vunpack.c.l.b16 %v1002
  %v1519 = vunpack.c.l.b16 %v1003
  %v1520 = vunpack.c.l.b16 %v1004
  %v1521 = vunpack.c.l.b16 %v1005
  %v1522 = vunpack.c.l.b16 %v1006
  %v1523 = vunpack.c.l.b16 %v1007
  %v1524 = vunpack.c.l.b16 %v1008
  %v1525 = vunpack.c.l.b16 %v1009
  %v1526 = vunpack.c.l.b16 %v1010
  %v1527 = vunpack.c.l.b16 %v1011
  %v1528 = vunpack.c.l.b16 %v1012
  %v1529 = vunpack.c.l.b16 %v1013
  %v1530 = vunpack.c.l.b16 %v1014
  %v1531 = vunpack.c.l.b16 %v1015
  %v1532 = vunpack.c.l.b16 %v1016
  %v1533 = vunpack.c.l.b16 %v1017
  %v1534 = vunpack.c.l.b16 %v1018
  %v1535 = vunpack.c.l.b16 %v1019
  %v1536 = vunpack.c.l.b16 %v1020
  %v1537 = vunpack.c.l.b16 %v1021
  %v1538 = vunpack.c.l.b16 %v1022
  %v1539 = vunpack.c.l.b16 %v1023
  %v1540 = vunpack.c.l.b16 %v1024
  %v1541 = vunpack.c.l.b16 %v1025
  %v1542 = vunpack.c.l.b16 %v1026
  %v1543 = vunpack.c.l.b16 %v1027
  %v1544 = vunpack.c.l.b16 %v1028
  %v1545 = vunpack.c.l.b16 %v1029
  %v1546 = vunpack.c.l.b16 %v1030
  %v1547 = vunpack.c.l.b16 %v1031
  %v1548 = vpack.c.b16 %v1293, %v1292
  %v1549 = vpack.c.b16 %v1295, %v1294
  %v1550 = vpack.c.b16 %v1297, %v1296
  %v1551 = vpack.c.b16 %v1299, %v1298
  %v1552 = vpack.c.b16 %v1301, %v1300
  %v1553 = vpack.c.b16 %v1303, %v1302
  %v1554 = vpack.c.b16 %v1305, %v1304
  %v1555 = vpack.c.b16 %v1307, %v1306
  %v1556 = vpack.c.b16 %v1309, %v1308
  %v1557 = vpack.c.b16 %v1311, %v1310
  %v1558 = vpack.c.b16 %v1313, %v1312
  %v1559 = vpack.c.b16 %v1315, %v1314
  %v1560 = vpack.c.b16 %v1317, %v1316
  %v1561 = vpack.c.b16 %v1319, %v1318
  %v1562 = vpack.c.b16 %v1321, %v1320
  %v1563 = vpack.c.b16 %v1323, %v1322
  %v1564 = vpack.c.b16 %v1325, %v1324
  %v1565 = vpack.c.b16 %v1327, %v1326
  %v1566 = vpack.c.b16 %v1329, %v1328
  %v1567 = vpack.c.b16 %v1331, %v1330
  %v1568 = vpack.c.b16 %v1333, %v1332
  %v1569 = vpack.c.b16 %v1335, %v1334
  %v1570 = vpack.c.b16 %v1337, %v1336
  %v1571 = vpack.c.b16 %v1339, %v1338
  %v1572 = vpack.c.b16 %v1341, %v1340
  %v1573 = vpack.c.b16 %v1343, %v1342
  %v1574 = vpack.c.b16 %v1345, %v1344
  %v1575 = vpack.c.b16 %v1347, %v1346
  %v1576 = vpack.c.b16 %v1349, %v1348
  %v1577 = vpack.c.b16 %v1351, %v1350
  %v1578 = vpack.c.b16 %v1353, %v1352
  %v1579 = vpack.c.b16 %v1355, %v1354
  %v1580 = vpack.c.b16 %v1357, %v1356
  %v1581 = vpack.c.b16 %v1359, %v1358
  %v1582 = vpack.c.b16 %v1361, %v1360
  %v1583 = vpack.c.b16 %v1363, %v1362
  %v1584 = vpack.c.b16 %v1365, %v1364
  %v1585 = vpack.c.b16 %v1367, %v1366
  %v1586 = vpack.c.b16 %v1369, %v1368
  %v1587 = vpack.c.b16 %v1371, %v1370
  %v1588 = vpack.c.b16 %v1373, %v1372
  %v1589 = vpack.c.b16 %v1375, %v1374
  %v1590 = vpack.c.b16 %v1377, %v1376
  %v1591 = vpack.c.b16 %v1379, %v1378
  %v1592 = vpack.c.b16 %v1381, %v1380
  %v1593 = vpack.c.b16 %v1383, %v1382
  %v1594 = vpack.c.b16 %v1385, %v1384
  %v1595 = vpack.c.b16 %v1387, %v1386
  %v1596 = vpack.c.b16 %v1389, %v1388
  %v1597 = vpack.c.b16 %v1391, %v1390
  %v1598 = vpack.c.b16 %v1393, %v1392
  %v1599 = vpack.c.b16 %v1395, %v1394
  %v1600 = vpack.c.b16 %v1397, %v1396
  %v1601 = vpack.c.b16 %v1399, %v1398
  %v1602 = vpack.c.b16 %v1401, %v1400
  %v1603 = vpack.c.b16 %v1403, %v1402
  %v1604 = vpack.c.b16 %v1405, %v1404
  %v1605 = vpack.c.b16 %v1407, %v1406
  %v1606 = vpack.c.b16 %v1409, %v1408
  %v1607 = vpack.c.b16 %v1411, %v1410
  %v1608 = vpack.c.b16 %v1413, %v1412
  %v1609 = vpack.c.b16 %v1415, %v1414
  %v1610 = vpack.c.b16 %v1417, %v1416
  %v1611 = vpack.c.b16 %v1419, %v1418
  %v1612 = vpack.c.b16 %v1421, %v1420
  %v1613 = vpack.c.b16 %v1423, %v1422
  %v1614 = vpack.c.b16 %v1425, %v1424
  %v1615 = vpack.c.b16 %v1427, %v1426
  %v1616 = vpack.c.b16 %v1429, %v1428
  %v1617 = vpack.c.b16 %v1431, %v1430
  %v1618 = vpack.c.b16 %v1433, %v1432
  %v1619 = vpack.c.b16 %v1435, %v1434
  %v1620 = vpack.c.b16 %v1437, %v1436
  %v1621 = vpack.c.b16 %v1439, %v1438
  %v1622 = vpack.c.b16 %v1441, %v1440
  %v1623 = vpack.c.b16 %v1443, %v1442
  %v1624 = vpack.c.b16 %v1445, %v1444
  %v1625 = vpack.c.b16 %v1447, %v1446
  %v1626 = vpack.c.b16 %v1449, %v1448
  %v1627 = vpack.c.b16 %v1451, %v1450
  %v1628 = vpack.c.b16 %v1453, %v1452
  %v1629 = vpack.c.b16 %v1455, %v1454
  %v1630 = vpack.c.b16 %v1457, %v1456
  %v1631 = vpack.c.b16 %v1459, %v1458
  %v1632 = vpack.c.b16 %v1461, %v1460
  %v1633 = vpack.c.b16 %v1463, %v1462
  %v1634 = vpack.c.b16 %v1465, %v1464
  %v1635 = vpack.c.b16 %v1467, %v1466
  %v1636 = vpack.c.b16 %v1469, %v1468
  %v1637 = vpack.c.b16 %v1471, %v1470
  %v1638 = vpack.c.b16 %v1473, %v1472
  %v1639 = vpack.c.b16 %v1475, %v1474
  %v1640 = vpack.c.b16 %v1477, %v1476
  %v1641 = vpack.c.b16 %v1479, %v1478
  %v1642 = vpack.c.b16 %v1481, %v1480
  %v1643 = vpack.c.b16 %v1483, %v1482
  %v1644 = vpack.c.b16 %v1485, %v1484
  %v1645 = vpack.c.b16 %v1487, %v1486
  %v1646 = vpack.c.b16 %v1489, %v1488
  %v1647 = vpack.c.b16 %v1491, %v1490
  %v1648 = vpack.c.b16 %v1493, %v1492
  %v1649 = vpack.c.b16 %v1495, %v1494
  %v1650 = vpack.c.b16 %v1497, %v1496
  %v1651 = vpack.c.b16 %v1499, %v1498
  %v1652 = vpack.c.b16 %v1501, %v1500
  %v1653 = vpack.c.b16 %v1503, %v1502
  %v1654 = vpack.c.b16 %v1505, %v1504
  %v1655 = vpack.c.b16 %v1507, %v1506
  %v1656 = vpack.c.b16 %v1509, %v1508
  %v1657 = vpack.c.b16 %v1511, %v1510
  %v1658 = vpack.c.b16 %v1513, %v1512
  %v1659 = vpack.c.b16 %v1515, %v1514
  %v1660 = vpack.c.b16 %v1517, %v1516
  %v1661 = vpack.c.b16 %v1519, %v1518
  %v1662 = vpack.c.b16 %v1521, %v1520
  %v1663 = vpack.c.b16 %v1523, %v1522
  %v1664 = vpack.c.b16 %v1525, %v1524
  %v1665 = vpack.c.b16 %v1527, %v1526
  %v1666 = vpack.c.b16 %v1529, %v1528
  %v1667 = vpack.c.b16 %v1531, %v1530
  %v1668 = vpack.c.b16 %v1533, %v1532
  %v1669 = vpack.c.b16 %v1535, %v1534
  %v1670 = vpack.c.b16 %v1537, %v1536
  %v1671 = vpack.c.b16 %v1539, %v1538
  %v1672 = vpack.c.b16 %v1541, %v1540
  %v1673 = vpack.c.b16 %v1543, %v1542
  %v1674 = vpack.c.b16 %v1545, %v1544
  %v1675 = vpack.c.b16 %v1547, %v1546
  %1804 = vmatprep.subr.bf16.mxu0 0
  %1805 = vmatpush1.bf16.msra.mxu0 %v1548
  %1806 = vmatprep.subr.bf16.mxu0 0
  %1807 = vmatpush1.bf16.msra.mxu0 %v1549
  %1808 = vmatprep.subr.bf16.mxu0 0
  %1809 = vmatpush1.bf16.msra.mxu0 %v1550
  %1810 = vmatprep.subr.bf16.mxu0 0
  %1811 = vmatpush1.bf16.msra.mxu0 %v1551
  %1812 = vmatprep.subr.bf16.mxu0 0
  %1813 = vmatpush1.bf16.msra.mxu0 %v1552
  %1814 = vmatprep.subr.bf16.mxu0 0
  %1815 = vmatpush1.bf16.msra.mxu0 %v1553
  %1816 = vmatprep.subr.bf16.mxu0 0
  %1817 = vmatpush1.bf16.msra.mxu0 %v1554
  %1818 = vmatprep.subr.bf16.mxu0 0
  %1819 = vmatpush1.bf16.msra.mxu0 %v1555
  %1820 = vmatprep.subr.bf16.mxu0 0
  %1821 = vmatpush1.bf16.msra.mxu0 %v1556
  %1822 = vmatprep.subr.bf16.mxu0 0
  %1823 = vmatpush1.bf16.msra.mxu0 %v1557
  %1824 = vmatprep.subr.bf16.mxu0 0
  %1825 = vmatpush1.bf16.msra.mxu0 %v1558
  %1826 = vmatprep.subr.bf16.mxu0 0
  %1827 = vmatpush1.bf16.msra.mxu0 %v1559
  %1828 = vmatprep.subr.bf16.mxu0 0
  %1829 = vmatpush1.bf16.msra.mxu0 %v1560
  %1830 = vmatprep.subr.bf16.mxu0 0
  %1831 = vmatpush1.bf16.msra.mxu0 %v1561
  %1832 = vmatprep.subr.bf16.mxu0 0
  %1833 = vmatpush1.bf16.msra.mxu0 %v1562
  %1834 = vmatprep.subr.bf16.mxu0 0
  %1835 = vmatpush1.bf16.msra.mxu0 %v1563
  %1836 = vmatprep.mubr.bf16.mxu0 %v761
  %1837 = vmatmul.mubr.bf16.gmra.mrb[0].mxu0 %v760
  %v1838 = vpop.f32.mrb[0].mxu0
  %v1839 = vadd.f32 %v1035, %v1838
  %v1840 = vpop.f32.mrb[0].mxu0
  %v1841 = vpop.f32.mrb[0].mxu0
  %v1842 = vpop.f32.mrb[0].mxu0
  %1843 = vdwg.mxu0
  %1844 = vmatprep.subr.bf16.mxu0 0
  %1845 = vmatpush1.bf16.msra.mxu0 %v1564
  %1846 = vmatprep.subr.bf16.mxu0 0
  %1847 = vmatpush1.bf16.msra.mxu0 %v1565
  %1848 = vmatprep.subr.bf16.mxu0 0
  %1849 = vmatpush1.bf16.msra.mxu0 %v1566
  %1850 = vmatprep.subr.bf16.mxu0 0
  %1851 = vmatpush1.bf16.msra.mxu0 %v1567
  %1852 = vmatprep.subr.bf16.mxu0 0
  %1853 = vmatpush1.bf16.msra.mxu0 %v1568
  %1854 = vmatprep.subr.bf16.mxu0 0
  %1855 = vmatpush1.bf16.msra.mxu0 %v1569
  %1856 = vmatprep.subr.bf16.mxu0 0
  %1857 = vmatpush1.bf16.msra.mxu0 %v1570
  %1858 = vmatprep.subr.bf16.mxu0 0
  %1859 = vmatpush1.bf16.msra.mxu0 %v1571
  %1860 = vmatprep.subr.bf16.mxu0 0
  %1861 = vmatpush1.bf16.msra.mxu0 %v1572
  %1862 = vmatprep.subr.bf16.mxu0 0
  %1863 = vmatpush1.bf16.msra.mxu0 %v1573
  %1864 = vmatprep.subr.bf16.mxu0 0
  %1865 = vmatpush1.bf16.msra.mxu0 %v1574
  %1866 = vmatprep.subr.bf16.mxu0 0
  %1867 = vmatpush1.bf16.msra.mxu0 %v1575
  %1868 = vmatprep.subr.bf16.mxu0 0
  %1869 = vmatpush1.bf16.msra.mxu0 %v1576
  %1870 = vmatprep.subr.bf16.mxu0 0
  %1871 = vmatpush1.bf16.msra.mxu0 %v1577
  %1872 = vmatprep.subr.bf16.mxu0 0
  %1873 = vmatpush1.bf16.msra.mxu0 %v1578
  %1874 = vmatprep.subr.bf16.mxu0 0
  %1875 = vmatpush1.bf16.msra.mxu0 %v1579
  %1876 = vmatprep.mubr.bf16.mxu0 %v763
  %1877 = vmatmul.mubr.bf16.gmra.mrb[0].mxu0 %v762
  %v1878 = vpop.f32.mrb[0].mxu0
  %v1879 = vadd.f32 %v1839, %v1878
  %v1880 = vpop.f32.mrb[0].mxu0
  %v1881 = vpop.f32.mrb[0].mxu0
  %v1882 = vpop.f32.mrb[0].mxu0
  %1883 = vdwg.mxu0
  %1884 = vmatprep.subr.bf16.mxu0 0
  %1885 = vmatpush1.bf16.msra.mxu0 %v1580
  %1886 = vmatprep.subr.bf16.mxu0 0
  %1887 = vmatpush1.bf16.msra.mxu0 %v1581
  %1888 = vmatprep.subr.bf16.mxu0 0
  %1889 = vmatpush1.bf16.msra.mxu0 %v1582
  %1890 = vmatprep.subr.bf16.mxu0 0
  %1891 = vmatpush1.bf16.msra.mxu0 %v1583
  %1892 = vmatprep.subr.bf16.mxu0 0
  %1893 = vmatpush1.bf16.msra.mxu0 %v1584
  %1894 = vmatprep.subr.bf16.mxu0 0
  %1895 = vmatpush1.bf16.msra.mxu0 %v1585
  %1896 = vmatprep.subr.bf16.mxu0 0
  %1897 = vmatpush1.bf16.msra.mxu0 %v1586
  %1898 = vmatprep.subr.bf16.mxu0 0
  %1899 = vmatpush1.bf16.msra.mxu0 %v1587
  %1900 = vmatprep.subr.bf16.mxu0 0
  %1901 = vmatpush1.bf16.msra.mxu0 %v1588
  %1902 = vmatprep.subr.bf16.mxu0 0
  %1903 = vmatpush1.bf16.msra.mxu0 %v1589
  %1904 = vmatprep.subr.bf16.mxu0 0
  %1905 = vmatpush1.bf16.msra.mxu0 %v1590
  %1906 = vmatprep.subr.bf16.mxu0 0
  %1907 = vmatpush1.bf16.msra.mxu0 %v1591
  %1908 = vmatprep.subr.bf16.mxu0 0
  %1909 = vmatpush1.bf16.msra.mxu0 %v1592
  %1910 = vmatprep.subr.bf16.mxu0 0
  %1911 = vmatpush1.bf16.msra.mxu0 %v1593
  %1912 = vmatprep.subr.bf16.mxu0 0
  %1913 = vmatpush1.bf16.msra.mxu0 %v1594
  %1914 = vmatprep.subr.bf16.mxu0 0
  %1915 = vmatpush1.bf16.msra.mxu0 %v1595
  %1916 = vmatprep.mubr.bf16.mxu0 %v765
  %1917 = vmatmul.mubr.bf16.gmra.mrb[0].mxu0 %v764
  %v1918 = vpop.f32.mrb[0].mxu0
  %v1919 = vadd.f32 %v1879, %v1918
  %v1920 = vpop.f32.mrb[0].mxu0
  %v1921 = vpop.f32.mrb[0].mxu0
  %v1922 = vpop.f32.mrb[0].mxu0
  %1923 = vdwg.mxu0
  %1924 = vmatprep.subr.bf16.mxu0 0
  %1925 = vmatpush1.bf16.msra.mxu0 %v1596
  %1926 = vmatprep.subr.bf16.mxu0 0
  %1927 = vmatpush1.bf16.msra.mxu0 %v1597
  %1928 = vmatprep.subr.bf16.mxu0 0
  %1929 = vmatpush1.bf16.msra.mxu0 %v1598
  %1930 = vmatprep.subr.bf16.mxu0 0
  %1931 = vmatpush1.bf16.msra.mxu0 %v1599
  %1932 = vmatprep.subr.bf16.mxu0 0
  %1933 = vmatpush1.bf16.msra.mxu0 %v1600
  %1934 = vmatprep.subr.bf16.mxu0 0
  %1935 = vmatpush1.bf16.msra.mxu0 %v1601
  %1936 = vmatprep.subr.bf16.mxu0 0
  %1937 = vmatpush1.bf16.msra.mxu0 %v1602
  %1938 = vmatprep.subr.bf16.mxu0 0
  %1939 = vmatpush1.bf16.msra.mxu0 %v1603
  %1940 = vmatprep.subr.bf16.mxu0 0
  %1941 = vmatpush1.bf16.msra.mxu0 %v1604
  %1942 = vmatprep.subr.bf16.mxu0 0
  %1943 = vmatpush1.bf16.msra.mxu0 %v1605
  %1944 = vmatprep.subr.bf16.mxu0 0
  %1945 = vmatpush1.bf16.msra.mxu0 %v1606
  %1946 = vmatprep.subr.bf16.mxu0 0
  %1947 = vmatpush1.bf16.msra.mxu0 %v1607
  %1948 = vmatprep.subr.bf16.mxu0 0
  %1949 = vmatpush1.bf16.msra.mxu0 %v1608
  %1950 = vmatprep.subr.bf16.mxu0 0
  %1951 = vmatpush1.bf16.msra.mxu0 %v1609
  %1952 = vmatprep.subr.bf16.mxu0 0
  %1953 = vmatpush1.bf16.msra.mxu0 %v1610
  %1954 = vmatprep.subr.bf16.mxu0 0
  %1955 = vmatpush1.bf16.msra.mxu0 %v1611
  %1956 = vmatprep.mubr.bf16.mxu0 %v767
  %1957 = vmatmul.mubr.bf16.gmra.mrb[0].mxu0 %v766
  %v1958 = vpop.f32.mrb[0].mxu0
  %v1959 = vadd.f32 %v1919, %v1958
  %v1960 = vpop.f32.mrb[0].mxu0
  %v1961 = vpop.f32.mrb[0].mxu0
  %v1962 = vpop.f32.mrb[0].mxu0
  %1963 = vdwg.mxu0
  %1964 = vmatprep.subr.bf16.mxu0 0
  %1965 = vmatpush1.bf16.msra.mxu0 %v1612
  %1966 = vmatprep.subr.bf16.mxu0 0
  %1967 = vmatpush1.bf16.msra.mxu0 %v1613
  %1968 = vmatprep.subr.bf16.mxu0 0
  %1969 = vmatpush1.bf16.msra.mxu0 %v1614
  %1970 = vmatprep.subr.bf16.mxu0 0
  %1971 = vmatpush1.bf16.msra.mxu0 %v1615
  %1972 = vmatprep.subr.bf16.mxu0 0
  %1973 = vmatpush1.bf16.msra.mxu0 %v1616
  %1974 = vmatprep.subr.bf16.mxu0 0
  %1975 = vmatpush1.bf16.msra.mxu0 %v1617
  %1976 = vmatprep.subr.bf16.mxu0 0
  %1977 = vmatpush1.bf16.msra.mxu0 %v1618
  %1978 = vmatprep.subr.bf16.mxu0 0
  %1979 = vmatpush1.bf16.msra.mxu0 %v1619
  %1980 = vmatprep.subr.bf16.mxu0 0
  %1981 = vmatpush1.bf16.msra.mxu0 %v1620
  %1982 = vmatprep.subr.bf16.mxu0 0
  %1983 = vmatpush1.bf16.msra.mxu0 %v1621
  %1984 = vmatprep.subr.bf16.mxu0 0
  %1985 = vmatpush1.bf16.msra.mxu0 %v1622
  %1986 = vmatprep.subr.bf16.mxu0 0
  %1987 = vmatpush1.bf16.msra.mxu0 %v1623
  %1988 = vmatprep.subr.bf16.mxu0 0
  %1989 = vmatpush1.bf16.msra.mxu0 %v1624
  %1990 = vmatprep.subr.bf16.mxu0 0
  %1991 = vmatpush1.bf16.msra.mxu0 %v1625
  %1992 = vmatprep.subr.bf16.mxu0 0
  %1993 = vmatpush1.bf16.msra.mxu0 %v1626
  %1994 = vmatprep.subr.bf16.mxu0 0
  %1995 = vmatpush1.bf16.msra.mxu0 %v1627
  %1996 = vmatprep.mubr.bf16.mxu0 %v769
  %1997 = vmatmul.mubr.bf16.gmra.mrb[0].mxu0 %v768
  %v1998 = vpop.f32.mrb[0].mxu0
  %v1999 = vadd.f32 %v1959, %v1998
  %v2000 = vpop.f32.mrb[0].mxu0
  %v2001 = vpop.f32.mrb[0].mxu0
  %v2002 = vpop.f32.mrb[0].mxu0
  %2003 = vdwg.mxu0
  %2004 = vmatprep.subr.bf16.mxu0 0
  %2005 = vmatpush1.bf16.msra.mxu0 %v1628
  %2006 = vmatprep.subr.bf16.mxu0 0
  %2007 = vmatpush1.bf16.msra.mxu0 %v1629
  %2008 = vmatprep.subr.bf16.mxu0 0
  %2009 = vmatpush1.bf16.msra.mxu0 %v1630
  %2010 = vmatprep.subr.bf16.mxu0 0
  %2011 = vmatpush1.bf16.msra.mxu0 %v1631
  %2012 = vmatprep.subr.bf16.mxu0 0
  %2013 = vmatpush1.bf16.msra.mxu0 %v1632
  %2014 = vmatprep.subr.bf16.mxu0 0
  %2015 = vmatpush1.bf16.msra.mxu0 %v1633
  %2016 = vmatprep.subr.bf16.mxu0 0
  %2017 = vmatpush1.bf16.msra.mxu0 %v1634
  %2018 = vmatprep.subr.bf16.mxu0 0
  %2019 = vmatpush1.bf16.msra.mxu0 %v1635
  %2020 = vmatprep.subr.bf16.mxu0 0
  %2021 = vmatpush1.bf16.msra.mxu0 %v1636
  %2022 = vmatprep.subr.bf16.mxu0 0
  %2023 = vmatpush1.bf16.msra.mxu0 %v1637
  %2024 = vmatprep.subr.bf16.mxu0 0
  %2025 = vmatpush1.bf16.msra.mxu0 %v1638
  %2026 = vmatprep.subr.bf16.mxu0 0
  %2027 = vmatpush1.bf16.msra.mxu0 %v1639
  %2028 = vmatprep.subr.bf16.mxu0 0
  %2029 = vmatpush1.bf16.msra.mxu0 %v1640
  %2030 = vmatprep.subr.bf16.mxu0 0
  %2031 = vmatpush1.bf16.msra.mxu0 %v1641
  %2032 = vmatprep.subr.bf16.mxu0 0
  %2033 = vmatpush1.bf16.msra.mxu0 %v1642
  %2034 = vmatprep.subr.bf16.mxu0 0
  %2035 = vmatpush1.bf16.msra.mxu0 %v1643
  %2036 = vmatprep.mubr.bf16.mxu0 %v771
  %2037 = vmatmul.mubr.bf16.gmra.mrb[0].mxu0 %v770
  %v2038 = vpop.f32.mrb[0].mxu0
  %v2039 = vadd.f32 %v1999, %v2038
  %v2040 = vpop.f32.mrb[0].mxu0
  %v2041 = vpop.f32.mrb[0].mxu0
  %v2042 = vpop.f32.mrb[0].mxu0
  %2043 = vdwg.mxu0
  %2044 = vmatprep.subr.bf16.mxu0 0
  %2045 = vmatpush1.bf16.msra.mxu0 %v1644
  %2046 = vmatprep.subr.bf16.mxu0 0
  %2047 = vmatpush1.bf16.msra.mxu0 %v1645
  %2048 = vmatprep.subr.bf16.mxu0 0
  %2049 = vmatpush1.bf16.msra.mxu0 %v1646
  %2050 = vmatprep.subr.bf16.mxu0 0
  %2051 = vmatpush1.bf16.msra.mxu0 %v1647
  %2052 = vmatprep.subr.bf16.mxu0 0
  %2053 = vmatpush1.bf16.msra.mxu0 %v1648
  %2054 = vmatprep.subr.bf16.mxu0 0
  %2055 = vmatpush1.bf16.msra.mxu0 %v1649
  %2056 = vmatprep.subr.bf16.mxu0 0
  %2057 = vmatpush1.bf16.msra.mxu0 %v1650
  %2058 = vmatprep.subr.bf16.mxu0 0
  %2059 = vmatpush1.bf16.msra.mxu0 %v1651
  %2060 = vmatprep.subr.bf16.mxu0 0
  %2061 = vmatpush1.bf16.msra.mxu0 %v1652
  %2062 = vmatprep.subr.bf16.mxu0 0
  %2063 = vmatpush1.bf16.msra.mxu0 %v1653
  %2064 = vmatprep.subr.bf16.mxu0 0
  %2065 = vmatpush1.bf16.msra.mxu0 %v1654
  %2066 = vmatprep.subr.bf16.mxu0 0
  %2067 = vmatpush1.bf16.msra.mxu0 %v1655
  %2068 = vmatprep.subr.bf16.mxu0 0
  %2069 = vmatpush1.bf16.msra.mxu0 %v1656
  %2070 = vmatprep.subr.bf16.mxu0 0
  %2071 = vmatpush1.bf16.msra.mxu0 %v1657
  %2072 = vmatprep.subr.bf16.mxu0 0
  %2073 = vmatpush1.bf16.msra.mxu0 %v1658
  %2074 = vmatprep.subr.bf16.mxu0 0
  %2075 = vmatpush1.bf16.msra.mxu0 %v1659
  %2076 = vmatprep.mubr.bf16.mxu0 %v773
  %2077 = vmatmul.mubr.bf16.gmra.mrb[0].mxu0 %v772
  %v2078 = vpop.f32.mrb[0].mxu0
  %v2079 = vadd.f32 %v2039, %v2078
  %v2080 = vpop.f32.mrb[0].mxu0
  %v2081 = vpop.f32.mrb[0].mxu0
  %v2082 = vpop.f32.mrb[0].mxu0
  %2083 = vdwg.mxu0
  %2084 = vmatprep.subr.bf16.mxu0 0
  %2085 = vmatpush1.bf16.msra.mxu0 %v1660
  %2086 = vmatprep.subr.bf16.mxu0 0
  %2087 = vmatpush1.bf16.msra.mxu0 %v1661
  %2088 = vmatprep.subr.bf16.mxu0 0
  %2089 = vmatpush1.bf16.msra.mxu0 %v1662
  %2090 = vmatprep.subr.bf16.mxu0 0
  %2091 = vmatpush1.bf16.msra.mxu0 %v1663
  %2092 = vmatprep.subr.bf16.mxu0 0
  %2093 = vmatpush1.bf16.msra.mxu0 %v1664
  %2094 = vmatprep.subr.bf16.mxu0 0
  %2095 = vmatpush1.bf16.msra.mxu0 %v1665
  %2096 = vmatprep.subr.bf16.mxu0 0
  %2097 = vmatpush1.bf16.msra.mxu0 %v1666
  %2098 = vmatprep.subr.bf16.mxu0 0
  %2099 = vmatpush1.bf16.msra.mxu0 %v1667
  %2100 = vmatprep.subr.bf16.mxu0 0
  %2101 = vmatpush1.bf16.msra.mxu0 %v1668
  %2102 = vmatprep.subr.bf16.mxu0 0
  %2103 = vmatpush1.bf16.msra.mxu0 %v1669
  %2104 = vmatprep.subr.bf16.mxu0 0
  %2105 = vmatpush1.bf16.msra.mxu0 %v1670
  %2106 = vmatprep.subr.bf16.mxu0 0
  %2107 = vmatpush1.bf16.msra.mxu0 %v1671
  %2108 = vmatprep.subr.bf16.mxu0 0
  %2109 = vmatpush1.bf16.msra.mxu0 %v1672
  %2110 = vmatprep.subr.bf16.mxu0 0
  %2111 = vmatpush1.bf16.msra.mxu0 %v1673
  %2112 = vmatprep.subr.bf16.mxu0 0
  %2113 = vmatpush1.bf16.msra.mxu0 %v1674
  %2114 = vmatprep.subr.bf16.mxu0 0
  %2115 = vmatpush1.bf16.msra.mxu0 %v1675
  %2116 = vmatprep.mubr.bf16.mxu0 %v775
  %2117 = vmatmul.mubr.bf16.gmra.mrb[0].mxu0 %v774
  %v2118 = vpop.f32.mrb[0].mxu0
  %v2119 = vadd.f32 %v2079, %v2118
  %v2120 = vpop.f32.mrb[0].mxu0
  %v2121 = vpop.f32.mrb[0].mxu0
  %v2122 = vpop.f32.mrb[0].mxu0
  %2123 = vdwg.mxu0
  %v2124 = vadd.f32 %v134, %v2119
  %v2125 = vsel %vm36, %v2124, 0.0
  %2126 = vadd.xlane.f32.xlu0 %v2125
  %v2127 = vpop.xlane.xlu0 %2126
  %v2128 = vmul.f32 %v2127, %v114
  %v2129 = vsub.f32 %v2124, %v2128
  %v2130 = vmul.f32 %v2129, %v2129
  %v2131 = vsel %vm36, %v2130, 0.0
  %2132 = vadd.xlane.f32.xlu0 %v2131
  %v2133 = vpop.xlane.xlu0 %2132
  %v2134 = vmul.f32 %v2133, %v114
  %v2135 = vadd.f32 %v2134, 1e-05
  %v2136 = vrsqrt.pop %v2135
  %v2137 = vmul.f32 %v2129, %v2136
  %v2138 = vlaneseq
  %v2139 = vshrl.u32 %v2138, 7
  %v2140 = vsub.s32 0, %v2139
  %v2141 = vrot.slane %v30, %v2140
  %v2142 = vmul.f32 %v2137, %v2141
  %v2143 = vlaneseq
  %v2144 = vshrl.u32 %v2143, 7
  %v2145 = vsub.s32 0, %v2144
  %v2146 = vrot.slane %v31, %v2145
  %v2147 = vadd.f32 %v2142, %v2146
  %v2148 = vld [vmem:[%s1 + $0x20] sm:$0xff]
  %v2149 = vld [vmem:[%s1 + $0x28] sm:$0xff]
  %v2150 = vld [vmem:[%s1 + $0x30] sm:$0xff]
  %v2151 = vld [vmem:[%s1 + $0x38] sm:$0xff]
  %v2152 = vld [vmem:[%s1 + $0x46] sm:$0x1]
  %v2153 = vld [vmem:[%s1 + $0x47] sm:$0x1]
  %v2154 = vld [vmem:[%s1 + $0x48] sm:$0x1]
  %v2155 = vld [vmem:[%s1 + $0x49] sm:$0x1]
  %v2156 = vld [vmem:[%s1 + $0x4a] sm:$0x1]
  %v2157 = vld [vmem:[%s1 + $0x4b] sm:$0x1]
  %v2158 = vlaneseq
  %v2159 = vshrl.u32 %v2158, 7
  %v2160 = vsub.s32 0, %v2159
  %v2161 = vrot.slane %v2152, %v2160
  %v2163 = vsel %vm36, %v2147, 0
  %2165 = vmatprep.subr.mxu0 0.0
  %2166 = vmatpush1.msra.mxu0 %v2148
  %2167 = vmatprep.subr.mxu0 0.0
  %2168 = vmatpush1.msra.mxu0 %v2149
  %2169 = vmatprep.subr.mxu0 0.0
  %2170 = vmatpush1.msra.mxu0 %v2150
  %2171 = vmatprep.subr.mxu0 0.0
  %2172 = vmatpush1.msra.mxu0 %v2151
  %2173 = vmatprep.subr.mxu0 0.0
  %2174 = vmatpush1.msra.mxu0 0.0
  %2175 = vmatprep.subr.mxu0 0.0
  %2176 = vmatpush1.msra.mxu0 0.0
  %2177 = vmatprep.subr.mxu0 0.0
  %2178 = vmatpush1.msra.mxu0 0.0
  %2179 = vmatprep.subr.mxu0 0.0
  %2180 = vmatpush1.msra.mxu0 0.0
  %2181 = vmatprep.subr.mxu0 0.0
  %2182 = vmatpush1.msra.mxu0 0.0
  %2183 = vmatprep.subr.mxu0 0.0
  %2184 = vmatpush1.msra.mxu0 0.0
  %2185 = vmatprep.subr.mxu0 0.0
  %2186 = vmatpush1.msra.mxu0 0.0
  %2187 = vmatprep.subr.mxu0 0.0
  %2188 = vmatpush1.msra.mxu0 0.0
  %2189 = vmatprep.subr.mxu0 0.0
  %2190 = vmatpush1.msra.mxu0 0.0
  %2191 = vmatprep.subr.mxu0 0.0
  %2192 = vmatpush1.msra.mxu0 0.0
  %2193 = vmatprep.subr.mxu0 0.0
  %2194 = vmatpush1.msra.mxu0 0.0
  %2195 = vmatprep.subr.mxu0 0.0
  %2196 = vmatpush1.msra.mxu0 0.0
  %2197 = vmatprep.subr.mxu0 0.0
  %2198 = vmatpush1.msra.mxu0 0.0
  %2199 = vmatprep.subr.mxu0 0.0
  %2200 = vmatpush1.msra.mxu0 0.0
  %2201 = vmatprep.subr.mxu0 0.0
  %2202 = vmatpush1.msra.mxu0 0.0
  %2203 = vmatprep.subr.mxu0 0.0
  %2204 = vmatpush1.msra.mxu0 0.0
  %2205 = vmatprep.subr.mxu0 0.0
  %2206 = vmatpush1.msra.mxu0 0.0
  %2207 = vmatprep.subr.mxu0 0.0
  %2208 = vmatpush1.msra.mxu0 0.0
  %2209 = vmatprep.subr.mxu0 0.0
  %2210 = vmatpush1.msra.mxu0 0.0
  %2211 = vmatprep.subr.mxu0 0.0
  %2212 = vmatpush1.msra.mxu0 0.0
  %2213 = vmatprep.subr.mxu0 0.0
  %2214 = vmatpush1.msra.mxu0 0.0
  %2215 = vmatprep.subr.mxu0 0.0
  %2216 = vmatpush1.msra.mxu0 0.0
  %2217 = vmatprep.subr.mxu0 0.0
  %2218 = vmatpush1.msra.mxu0 0.0
  %2219 = vmatprep.subr.mxu0 0.0
  %2220 = vmatpush1.msra.mxu0 0.0
  %2221 = vmatprep.subr.mxu0 0.0
  %2222 = vmatpush1.msra.mxu0 0.0
  %2223 = vmatprep.subr.mxu0 0.0
  %2224 = vmatpush1.msra.mxu0 0.0
  %2225 = vmatprep.subr.mxu0 0.0
  %2226 = vmatpush1.msra.mxu0 0.0
  %2227 = vmatprep.subr.mxu0 0.0
  %2228 = vmatpush1.msra.mxu0 0.0
  %2229 = vmatprep.mubr.f32.mxu0 0.0
  %2230 = vmatmul.mubr.f32.gmra.mrb[0].mxu0 %v2163
  %v2231 = vpop.f32.mrb[0].mxu0
  %v2232 = vadd.f32 %v2161, %v2231
  %v2233 = vpop.f32.mrb[0].mxu0
  %2234 = vdwg.mxu0
  %v2235 = vadd.f32 %v2147, %v2232
  %v2236 = vsel %vm36, %v2235, 0.0
  %2237 = vadd.xlane.f32.xlu0 %v2236
  %v2238 = vpop.xlane.xlu0 %2237
  %v2239 = vmul.f32 %v2238, %v114
  %v2240 = vsub.f32 %v2235, %v2239
  %v2241 = vmul.f32 %v2240, %v2240
  %v2242 = vsel %vm36, %v2241, 0.0
  %2243 = vadd.xlane.f32.xlu0 %v2242
  %v2244 = vpop.xlane.xlu0 %2243
  %v2245 = vmul.f32 %v2244, %v114
  %v2246 = vadd.f32 %v2245, 1e-05
  %v2247 = vrsqrt.pop %v2246
  %v2248 = vmul.f32 %v2240, %v2247
  %v2249 = vlaneseq
  %v2250 = vshrl.u32 %v2249, 7
  %v2251 = vsub.s32 0, %v2250
  %v2252 = vrot.slane %v2153, %v2251
  %v2253 = vmul.f32 %v2248, %v2252
  %v2254 = vlaneseq
  %v2255 = vshrl.u32 %v2254, 7
  %v2256 = vsub.s32 0, %v2255
  %v2257 = vrot.slane %v2154, %v2256
  %v2258 = vadd.f32 %v2253, %v2257
  %v2259 = vpack.c.bf16 %v2258, %v2258
  %s2260 = scalar_lea.vmem %s3, 256
  %v2261 = vld [vmem:[%s2260] sm:$0xff]
  %v2262 = vld [vmem:[%s2260 + $0x8] sm:$0xff]
  %v2263 = vld [vmem:[%s2260 + $0x10] sm:$0xff]
  %v2264 = vld [vmem:[%s2260 + $0x18] sm:$0xff]
  %v2265 = vld [vmem:[%s2260 + $0x20] sm:$0xff]
  %v2266 = vld [vmem:[%s2260 + $0x28] sm:$0xff]
  %v2267 = vld [vmem:[%s2260 + $0x30] sm:$0xff]
  %v2268 = vld [vmem:[%s2260 + $0x38] sm:$0xff]
  %v2269 = vld [vmem:[%s2260 + $0x40] sm:$0xff]
  %v2270 = vld [vmem:[%s2260 + $0x48] sm:$0xff]
  %v2271 = vld [vmem:[%s2260 + $0x50] sm:$0xff]
  %v2272 = vld [vmem:[%s2260 + $0x58] sm:$0xff]
  %v2273 = vld [vmem:[%s2260 + $0x60] sm:$0xff]
  %v2274 = vld [vmem:[%s2260 + $0x68] sm:$0xff]
  %v2275 = vld [vmem:[%s2260 + $0x70] sm:$0xff]
  %v2276 = vld [vmem:[%s2260 + $0x78] sm:$0xff]
  %v2277 = vld [vmem:[%s2260 + $0x80] sm:$0xff]
  %v2278 = vld [vmem:[%s2260 + $0x88] sm:$0xff]
  %v2279 = vld [vmem:[%s2260 + $0x90] sm:$0xff]
  %v2280 = vld [vmem:[%s2260 + $0x98] sm:$0xff]
  %v2281 = vld [vmem:[%s2260 + $0xa0] sm:$0xff]
  %v2282 = vld [vmem:[%s2260 + $0xa8] sm:$0xff]
  %v2283 = vld [vmem:[%s2260 + $0xb0] sm:$0xff]
  %v2284 = vld [vmem:[%s2260 + $0xb8] sm:$0xff]
  %v2285 = vld [vmem:[%s2260 + $0xc0] sm:$0xff]
  %v2286 = vld [vmem:[%s2260 + $0xc8] sm:$0xff]
  %v2287 = vld [vmem:[%s2260 + $0xd0] sm:$0xff]
  %v2288 = vld [vmem:[%s2260 + $0xd8] sm:$0xff]
  %v2289 = vld [vmem:[%s2260 + $0xe0] sm:$0xff]
  %v2290 = vld [vmem:[%s2260 + $0xe8] sm:$0xff]
  %v2291 = vld [vmem:[%s2260 + $0xf0] sm:$0xff]
  %v2292 = vld [vmem:[%s2260 + $0xf8] sm:$0xff]
  %s2293 = scalar_lea.vmem %s2, 1
  %v2294 = vld [vmem:[%s2293] ss:$2 sm:$0xff]
  %s2295 = scalar_lea.vmem %s2, 17
  %v2296 = vld [vmem:[%s2295] ss:$2 sm:$0xff]
  %v2299 = vlaneseq
  %v2300 = vshrl.u32 %v2299, 7
  %v2301 = vsub.s32 0, %v2300
  %v2302 = vrot.slane %v2294, %v2301
  %v2303 = vlaneseq
  %v2304 = vshrl.u32 %v2303, 7
  %v2305 = vsub.s32 1, %v2304
  %v2306 = vrot.slane %v2294, %v2305
  %v2307 = vlaneseq
  %v2308 = vshrl.u32 %v2307, 7
  %v2309 = vsub.s32 2, %v2308
  %v2310 = vrot.slane %v2294, %v2309
  %v2311 = vlaneseq
  %v2312 = vshrl.u32 %v2311, 7
  %v2313 = vsub.s32 3, %v2312
  %v2314 = vrot.slane %v2294, %v2313
  %v2315 = vlaneseq
  %v2316 = vshrl.u32 %v2315, 7
  %v2317 = vsub.s32 4, %v2316
  %v2318 = vrot.slane %v2294, %v2317
  %v2319 = vlaneseq
  %v2320 = vshrl.u32 %v2319, 7
  %v2321 = vsub.s32 5, %v2320
  %v2322 = vrot.slane %v2294, %v2321
  %v2323 = vlaneseq
  %v2324 = vshrl.u32 %v2323, 7
  %v2325 = vsub.s32 6, %v2324
  %v2326 = vrot.slane %v2294, %v2325
  %v2327 = vlaneseq
  %v2328 = vshrl.u32 %v2327, 7
  %v2329 = vsub.s32 7, %v2328
  %v2330 = vrot.slane %v2294, %v2329
  %v2331 = vlaneseq
  %v2332 = vshrl.u32 %v2331, 7
  %v2333 = vsub.s32 0, %v2332
  %v2334 = vrot.slane %v2296, %v2333
  %v2335 = vlaneseq
  %v2336 = vshrl.u32 %v2335, 7
  %v2337 = vsub.s32 1, %v2336
  %v2338 = vrot.slane %v2296, %v2337
  %v2339 = vlaneseq
  %v2340 = vshrl.u32 %v2339, 7
  %v2341 = vsub.s32 2, %v2340
  %v2342 = vrot.slane %v2296, %v2341
  %v2343 = vlaneseq
  %v2344 = vshrl.u32 %v2343, 7
  %v2345 = vsub.s32 3, %v2344
  %v2346 = vrot.slane %v2296, %v2345
  %v2347 = vlaneseq
  %v2348 = vshrl.u32 %v2347, 7
  %v2349 = vsub.s32 4, %v2348
  %v2350 = vrot.slane %v2296, %v2349
  %v2351 = vlaneseq
  %v2352 = vshrl.u32 %v2351, 7
  %v2353 = vsub.s32 5, %v2352
  %v2354 = vrot.slane %v2296, %v2353
  %v2355 = vlaneseq
  %v2356 = vshrl.u32 %v2355, 7
  %v2357 = vsub.s32 6, %v2356
  %v2358 = vrot.slane %v2296, %v2357
  %v2359 = vlaneseq
  %v2360 = vshrl.u32 %v2359, 7
  %v2361 = vsub.s32 7, %v2360
  %v2362 = vrot.slane %v2296, %v2361
  %v2411 = vunpack.c.l.b16 %v2261
  %v2412 = vunpack.c.h.b16 %v2261
  %v2413 = vunpack.c.l.b16 %v2262
  %v2414 = vunpack.c.h.b16 %v2262
  %v2415 = vunpack.c.l.b16 %v2263
  %v2416 = vunpack.c.h.b16 %v2263
  %v2417 = vunpack.c.l.b16 %v2264
  %v2418 = vunpack.c.h.b16 %v2264
  %v2419 = vunpack.c.l.b16 %v2265
  %v2420 = vunpack.c.h.b16 %v2265
  %v2421 = vunpack.c.l.b16 %v2266
  %v2422 = vunpack.c.h.b16 %v2266
  %v2423 = vunpack.c.l.b16 %v2267
  %v2424 = vunpack.c.h.b16 %v2267
  %v2425 = vunpack.c.l.b16 %v2268
  %v2426 = vunpack.c.h.b16 %v2268
  %v2427 = vunpack.c.l.b16 %v2269
  %v2428 = vunpack.c.h.b16 %v2269
  %v2429 = vunpack.c.l.b16 %v2270
  %v2430 = vunpack.c.h.b16 %v2270
  %v2431 = vunpack.c.l.b16 %v2271
  %v2432 = vunpack.c.h.b16 %v2271
  %v2433 = vunpack.c.l.b16 %v2272
  %v2434 = vunpack.c.h.b16 %v2272
  %v2435 = vunpack.c.l.b16 %v2273
  %v2436 = vunpack.c.h.b16 %v2273
  %v2437 = vunpack.c.l.b16 %v2274
  %v2438 = vunpack.c.h.b16 %v2274
  %v2439 = vunpack.c.l.b16 %v2275
  %v2440 = vunpack.c.h.b16 %v2275
  %v2441 = vunpack.c.l.b16 %v2276
  %v2442 = vunpack.c.h.b16 %v2276
  %v2443 = vunpack.c.l.b16 %v2277
  %v2444 = vunpack.c.h.b16 %v2277
  %v2445 = vunpack.c.l.b16 %v2278
  %v2446 = vunpack.c.h.b16 %v2278
  %v2447 = vunpack.c.l.b16 %v2279
  %v2448 = vunpack.c.h.b16 %v2279
  %v2449 = vunpack.c.l.b16 %v2280
  %v2450 = vunpack.c.h.b16 %v2280
  %v2451 = vunpack.c.l.b16 %v2281
  %v2452 = vunpack.c.h.b16 %v2281
  %v2453 = vunpack.c.l.b16 %v2282
  %v2454 = vunpack.c.h.b16 %v2282
  %v2455 = vunpack.c.l.b16 %v2283
  %v2456 = vunpack.c.h.b16 %v2283
  %v2457 = vunpack.c.l.b16 %v2284
  %v2458 = vunpack.c.h.b16 %v2284
  %v2459 = vunpack.c.l.b16 %v2285
  %v2460 = vunpack.c.h.b16 %v2285
  %v2461 = vunpack.c.l.b16 %v2286
  %v2462 = vunpack.c.h.b16 %v2286
  %v2463 = vunpack.c.l.b16 %v2287
  %v2464 = vunpack.c.h.b16 %v2287
  %v2465 = vunpack.c.l.b16 %v2288
  %v2466 = vunpack.c.h.b16 %v2288
  %v2467 = vunpack.c.l.b16 %v2289
  %v2468 = vunpack.c.h.b16 %v2289
  %v2469 = vunpack.c.l.b16 %v2290
  %v2470 = vunpack.c.h.b16 %v2290
  %v2471 = vunpack.c.l.b16 %v2291
  %v2472 = vunpack.c.h.b16 %v2291
  %v2473 = vunpack.c.l.b16 %v2292
  %v2474 = vunpack.c.h.b16 %v2292
  %v2475 = vpack.c.b16 %v2427, %v2411
  %v2476 = vpack.c.b16 %v2428, %v2412
  %v2477 = vpack.c.b16 %v2429, %v2413
  %v2478 = vpack.c.b16 %v2430, %v2414
  %v2479 = vpack.c.b16 %v2431, %v2415
  %v2480 = vpack.c.b16 %v2432, %v2416
  %v2481 = vpack.c.b16 %v2433, %v2417
  %v2482 = vpack.c.b16 %v2434, %v2418
  %v2483 = vpack.c.b16 %v2435, %v2419
  %v2484 = vpack.c.b16 %v2436, %v2420
  %v2485 = vpack.c.b16 %v2437, %v2421
  %v2486 = vpack.c.b16 %v2438, %v2422
  %v2487 = vpack.c.b16 %v2439, %v2423
  %v2488 = vpack.c.b16 %v2440, %v2424
  %v2489 = vpack.c.b16 %v2441, %v2425
  %v2490 = vpack.c.b16 %v2442, %v2426
  %v2491 = vpack.c.b16 %v2459, %v2443
  %v2492 = vpack.c.b16 %v2460, %v2444
  %v2493 = vpack.c.b16 %v2461, %v2445
  %v2494 = vpack.c.b16 %v2462, %v2446
  %v2495 = vpack.c.b16 %v2463, %v2447
  %v2496 = vpack.c.b16 %v2464, %v2448
  %v2497 = vpack.c.b16 %v2465, %v2449
  %v2498 = vpack.c.b16 %v2466, %v2450
  %v2499 = vpack.c.b16 %v2467, %v2451
  %v2500 = vpack.c.b16 %v2468, %v2452
  %v2501 = vpack.c.b16 %v2469, %v2453
  %v2502 = vpack.c.b16 %v2470, %v2454
  %v2503 = vpack.c.b16 %v2471, %v2455
  %v2504 = vpack.c.b16 %v2472, %v2456
  %v2505 = vpack.c.b16 %v2473, %v2457
  %v2506 = vpack.c.b16 %v2474, %v2458
  %v2540 = vsel %vm36, %v2259, 0
  %2542 = vmatprep.subr.bf16.mxu0 %v2476
  %2543 = vmatpush1.bf16.msra.mxu0 %v2475
  %2544 = vmatprep.subr.bf16.mxu0 %v2492
  %2545 = vmatpush1.bf16.msra.mxu0 %v2491
  %2546 = vmatprep.subr.bf16.mxu0 0
  %2547 = vmatpush1.bf16.msra.mxu0 0
  %2548 = vmatprep.subr.bf16.mxu0 0
  %2549 = vmatpush1.bf16.msra.mxu0 0
  %2550 = vmatprep.subr.bf16.mxu0 0
  %2551 = vmatpush1.bf16.msra.mxu0 0
  %2552 = vmatprep.subr.bf16.mxu0 0
  %2553 = vmatpush1.bf16.msra.mxu0 0
  %2554 = vmatprep.subr.bf16.mxu0 0
  %2555 = vmatpush1.bf16.msra.mxu0 0
  %2556 = vmatprep.subr.bf16.mxu0 0
  %2557 = vmatpush1.bf16.msra.mxu0 0
  %2558 = vmatprep.subr.bf16.mxu0 0
  %2559 = vmatpush1.bf16.msra.mxu0 0
  %2560 = vmatprep.subr.bf16.mxu0 0
  %2561 = vmatpush1.bf16.msra.mxu0 0
  %2562 = vmatprep.subr.bf16.mxu0 0
  %2563 = vmatpush1.bf16.msra.mxu0 0
  %2564 = vmatprep.subr.bf16.mxu0 0
  %2565 = vmatpush1.bf16.msra.mxu0 0
  %2566 = vmatprep.subr.bf16.mxu0 0
  %2567 = vmatpush1.bf16.msra.mxu0 0
  %2568 = vmatprep.subr.bf16.mxu0 0
  %2569 = vmatpush1.bf16.msra.mxu0 0
  %2570 = vmatprep.subr.bf16.mxu0 0
  %2571 = vmatpush1.bf16.msra.mxu0 0
  %2572 = vmatprep.subr.bf16.mxu0 0
  %2573 = vmatpush1.bf16.msra.mxu0 0
  %2574 = vmatprep.mubr.bf16.mxu0 0
  %2575 = vmatmul.mubr.bf16.gmra.mrb[0].mxu0 %v2540
  %v2576 = vpop.f32.mrb[0].mxu0
  %v2577 = vadd.f32 %v2302, %v2576
  %v2578 = vpop.f32.mrb[0].mxu0
  %v2579 = vadd.f32 %v2306, %v2578
  %v2580 = vpop.f32.mrb[0].mxu0
  %v2581 = vpop.f32.mrb[0].mxu0
  %2582 = vdwg.mxu0
  %2583 = vmatprep.subr.bf16.mxu0 %v2478
  %2584 = vmatpush1.bf16.msra.mxu0 %v2477
  %2585 = vmatprep.subr.bf16.mxu0 %v2494
  %2586 = vmatpush1.bf16.msra.mxu0 %v2493
  %2587 = vmatprep.subr.bf16.mxu0 0
  %2588 = vmatpush1.bf16.msra.mxu0 0
  %2589 = vmatprep.subr.bf16.mxu0 0
  %2590 = vmatpush1.bf16.msra.mxu0 0
  %2591 = vmatprep.subr.bf16.mxu0 0
  %2592 = vmatpush1.bf16.msra.mxu0 0
  %2593 = vmatprep.subr.bf16.mxu0 0
  %2594 = vmatpush1.bf16.msra.mxu0 0
  %2595 = vmatprep.subr.bf16.mxu0 0
  %2596 = vmatpush1.bf16.msra.mxu0 0
  %2597 = vmatprep.subr.bf16.mxu0 0
  %2598 = vmatpush1.bf16.msra.mxu0 0
  %2599 = vmatprep.subr.bf16.mxu0 0
  %2600 = vmatpush1.bf16.msra.mxu0 0
  %2601 = vmatprep.subr.bf16.mxu0 0
  %2602 = vmatpush1.bf16.msra.mxu0 0
  %2603 = vmatprep.subr.bf16.mxu0 0
  %2604 = vmatpush1.bf16.msra.mxu0 0
  %2605 = vmatprep.subr.bf16.mxu0 0
  %2606 = vmatpush1.bf16.msra.mxu0 0
  %2607 = vmatprep.subr.bf16.mxu0 0
  %2608 = vmatpush1.bf16.msra.mxu0 0
  %2609 = vmatprep.subr.bf16.mxu0 0
  %2610 = vmatpush1.bf16.msra.mxu0 0
  %2611 = vmatprep.subr.bf16.mxu0 0
  %2612 = vmatpush1.bf16.msra.mxu0 0
  %2613 = vmatprep.subr.bf16.mxu0 0
  %2614 = vmatpush1.bf16.msra.mxu0 0
  %2615 = vmatprep.mubr.bf16.mxu0 0
  %2616 = vmatmul.mubr.bf16.gmra.mrb[0].mxu0 %v2540
  %v2617 = vpop.f32.mrb[0].mxu0
  %v2618 = vadd.f32 %v2310, %v2617
  %v2619 = vpop.f32.mrb[0].mxu0
  %v2620 = vadd.f32 %v2314, %v2619
  %v2621 = vpop.f32.mrb[0].mxu0
  %v2622 = vpop.f32.mrb[0].mxu0
  %2623 = vdwg.mxu0
  %2624 = vmatprep.subr.bf16.mxu0 %v2480
  %2625 = vmatpush1.bf16.msra.mxu0 %v2479
  %2626 = vmatprep.subr.bf16.mxu0 %v2496
  %2627 = vmatpush1.bf16.msra.mxu0 %v2495
  %2628 = vmatprep.subr.bf16.mxu0 0
  %2629 = vmatpush1.bf16.msra.mxu0 0
  %2630 = vmatprep.subr.bf16.mxu0 0
  %2631 = vmatpush1.bf16.msra.mxu0 0
  %2632 = vmatprep.subr.bf16.mxu0 0
  %2633 = vmatpush1.bf16.msra.mxu0 0
  %2634 = vmatprep.subr.bf16.mxu0 0
  %2635 = vmatpush1.bf16.msra.mxu0 0
  %2636 = vmatprep.subr.bf16.mxu0 0
  %2637 = vmatpush1.bf16.msra.mxu0 0
  %2638 = vmatprep.subr.bf16.mxu0 0
  %2639 = vmatpush1.bf16.msra.mxu0 0
  %2640 = vmatprep.subr.bf16.mxu0 0
  %2641 = vmatpush1.bf16.msra.mxu0 0
  %2642 = vmatprep.subr.bf16.mxu0 0
  %2643 = vmatpush1.bf16.msra.mxu0 0
  %2644 = vmatprep.subr.bf16.mxu0 0
  %2645 = vmatpush1.bf16.msra.mxu0 0
  %2646 = vmatprep.subr.bf16.mxu0 0
  %2647 = vmatpush1.bf16.msra.mxu0 0
  %2648 = vmatprep.subr.bf16.mxu0 0
  %2649 = vmatpush1.bf16.msra.mxu0 0
  %2650 = vmatprep.subr.bf16.mxu0 0
  %2651 = vmatpush1.bf16.msra.mxu0 0
  %2652 = vmatprep.subr.bf16.mxu0 0
  %2653 = vmatpush1.bf16.msra.mxu0 0
  %2654 = vmatprep.subr.bf16.mxu0 0
  %2655 = vmatpush1.bf16.msra.mxu0 0
  %2656 = vmatprep.mubr.bf16.mxu0 0
  %2657 = vmatmul.mubr.bf16.gmra.mrb[0].mxu0 %v2540
  %v2658 = vpop.f32.mrb[0].mxu0
  %v2659 = vadd.f32 %v2318, %v2658
  %v2660 = vpop.f32.mrb[0].mxu0
  %v2661 = vadd.f32 %v2322, %v2660
  %v2662 = vpop.f32.mrb[0].mxu0
  %v2663 = vpop.f32.mrb[0].mxu0
  %2664 = vdwg.mxu0
  %2665 = vmatprep.subr.bf16.mxu0 %v2482
  %2666 = vmatpush1.bf16.msra.mxu0 %v2481
  %2667 = vmatprep.subr.bf16.mxu0 %v2498
  %2668 = vmatpush1.bf16.msra.mxu0 %v2497
  %2669 = vmatprep.subr.bf16.mxu0 0
  %2670 = vmatpush1.bf16.msra.mxu0 0
  %2671 = vmatprep.subr.bf16.mxu0 0
  %2672 = vmatpush1.bf16.msra.mxu0 0
  %2673 = vmatprep.subr.bf16.mxu0 0
  %2674 = vmatpush1.bf16.msra.mxu0 0
  %2675 = vmatprep.subr.bf16.mxu0 0
  %2676 = vmatpush1.bf16.msra.mxu0 0
  %2677 = vmatprep.subr.bf16.mxu0 0
  %2678 = vmatpush1.bf16.msra.mxu0 0
  %2679 = vmatprep.subr.bf16.mxu0 0
  %2680 = vmatpush1.bf16.msra.mxu0 0
  %2681 = vmatprep.subr.bf16.mxu0 0
  %2682 = vmatpush1.bf16.msra.mxu0 0
  %2683 = vmatprep.subr.bf16.mxu0 0
  %2684 = vmatpush1.bf16.msra.mxu0 0
  %2685 = vmatprep.subr.bf16.mxu0 0
  %2686 = vmatpush1.bf16.msra.mxu0 0
  %2687 = vmatprep.subr.bf16.mxu0 0
  %2688 = vmatpush1.bf16.msra.mxu0 0
  %2689 = vmatprep.subr.bf16.mxu0 0
  %2690 = vmatpush1.bf16.msra.mxu0 0
  %2691 = vmatprep.subr.bf16.mxu0 0
  %2692 = vmatpush1.bf16.msra.mxu0 0
  %2693 = vmatprep.subr.bf16.mxu0 0
  %2694 = vmatpush1.bf16.msra.mxu0 0
  %2695 = vmatprep.subr.bf16.mxu0 0
  %2696 = vmatpush1.bf16.msra.mxu0 0
  %2697 = vmatprep.mubr.bf16.mxu0 0
  %2698 = vmatmul.mubr.bf16.gmra.mrb[0].mxu0 %v2540
  %v2699 = vpop.f32.mrb[0].mxu0
  %v2700 = vadd.f32 %v2326, %v2699
  %v2701 = vpop.f32.mrb[0].mxu0
  %v2702 = vadd.f32 %v2330, %v2701
  %v2703 = vpop.f32.mrb[0].mxu0
  %v2704 = vpop.f32.mrb[0].mxu0
  %2705 = vdwg.mxu0
  %2706 = vmatprep.subr.bf16.mxu0 %v2484
  %2707 = vmatpush1.bf16.msra.mxu0 %v2483
  %2708 = vmatprep.subr.bf16.mxu0 %v2500
  %2709 = vmatpush1.bf16.msra.mxu0 %v2499
  %2710 = vmatprep.subr.bf16.mxu0 0
  %2711 = vmatpush1.bf16.msra.mxu0 0
  %2712 = vmatprep.subr.bf16.mxu0 0
  %2713 = vmatpush1.bf16.msra.mxu0 0
  %2714 = vmatprep.subr.bf16.mxu0 0
  %2715 = vmatpush1.bf16.msra.mxu0 0
  %2716 = vmatprep.subr.bf16.mxu0 0
  %2717 = vmatpush1.bf16.msra.mxu0 0
  %2718 = vmatprep.subr.bf16.mxu0 0
  %2719 = vmatpush1.bf16.msra.mxu0 0
  %2720 = vmatprep.subr.bf16.mxu0 0
  %2721 = vmatpush1.bf16.msra.mxu0 0
  %2722 = vmatprep.subr.bf16.mxu0 0
  %2723 = vmatpush1.bf16.msra.mxu0 0
  %2724 = vmatprep.subr.bf16.mxu0 0
  %2725 = vmatpush1.bf16.msra.mxu0 0
  %2726 = vmatprep.subr.bf16.mxu0 0
  %2727 = vmatpush1.bf16.msra.mxu0 0
  %2728 = vmatprep.subr.bf16.mxu0 0
  %2729 = vmatpush1.bf16.msra.mxu0 0
  %2730 = vmatprep.subr.bf16.mxu0 0
  %2731 = vmatpush1.bf16.msra.mxu0 0
  %2732 = vmatprep.subr.bf16.mxu0 0
  %2733 = vmatpush1.bf16.msra.mxu0 0
  %2734 = vmatprep.subr.bf16.mxu0 0
  %2735 = vmatpush1.bf16.msra.mxu0 0
  %2736 = vmatprep.subr.bf16.mxu0 0
  %2737 = vmatpush1.bf16.msra.mxu0 0
  %2738 = vmatprep.mubr.bf16.mxu0 0
  %2739 = vmatmul.mubr.bf16.gmra.mrb[0].mxu0 %v2540
  %v2740 = vpop.f32.mrb[0].mxu0
  %v2741 = vadd.f32 %v2334, %v2740
  %v2742 = vpop.f32.mrb[0].mxu0
  %v2743 = vadd.f32 %v2338, %v2742
  %v2744 = vpop.f32.mrb[0].mxu0
  %v2745 = vpop.f32.mrb[0].mxu0
  %2746 = vdwg.mxu0
  %2747 = vmatprep.subr.bf16.mxu0 %v2486
  %2748 = vmatpush1.bf16.msra.mxu0 %v2485
  %2749 = vmatprep.subr.bf16.mxu0 %v2502
  %2750 = vmatpush1.bf16.msra.mxu0 %v2501
  %2751 = vmatprep.subr.bf16.mxu0 0
  %2752 = vmatpush1.bf16.msra.mxu0 0
  %2753 = vmatprep.subr.bf16.mxu0 0
  %2754 = vmatpush1.bf16.msra.mxu0 0
  %2755 = vmatprep.subr.bf16.mxu0 0
  %2756 = vmatpush1.bf16.msra.mxu0 0
  %2757 = vmatprep.subr.bf16.mxu0 0
  %2758 = vmatpush1.bf16.msra.mxu0 0
  %2759 = vmatprep.subr.bf16.mxu0 0
  %2760 = vmatpush1.bf16.msra.mxu0 0
  %2761 = vmatprep.subr.bf16.mxu0 0
  %2762 = vmatpush1.bf16.msra.mxu0 0
  %2763 = vmatprep.subr.bf16.mxu0 0
  %2764 = vmatpush1.bf16.msra.mxu0 0
  %2765 = vmatprep.subr.bf16.mxu0 0
  %2766 = vmatpush1.bf16.msra.mxu0 0
  %2767 = vmatprep.subr.bf16.mxu0 0
  %2768 = vmatpush1.bf16.msra.mxu0 0
  %2769 = vmatprep.subr.bf16.mxu0 0
  %2770 = vmatpush1.bf16.msra.mxu0 0
  %2771 = vmatprep.subr.bf16.mxu0 0
  %2772 = vmatpush1.bf16.msra.mxu0 0
  %2773 = vmatprep.subr.bf16.mxu0 0
  %2774 = vmatpush1.bf16.msra.mxu0 0
  %2775 = vmatprep.subr.bf16.mxu0 0
  %2776 = vmatpush1.bf16.msra.mxu0 0
  %2777 = vmatprep.subr.bf16.mxu0 0
  %2778 = vmatpush1.bf16.msra.mxu0 0
  %2779 = vmatprep.mubr.bf16.mxu0 0
  %2780 = vmatmul.mubr.bf16.gmra.mrb[0].mxu0 %v2540
  %v2781 = vpop.f32.mrb[0].mxu0
  %v2782 = vadd.f32 %v2342, %v2781
  %v2783 = vpop.f32.mrb[0].mxu0
  %v2784 = vadd.f32 %v2346, %v2783
  %v2785 = vpop.f32.mrb[0].mxu0
  %v2786 = vpop.f32.mrb[0].mxu0
  %2787 = vdwg.mxu0
  %2788 = vmatprep.subr.bf16.mxu0 %v2488
  %2789 = vmatpush1.bf16.msra.mxu0 %v2487
  %2790 = vmatprep.subr.bf16.mxu0 %v2504
  %2791 = vmatpush1.bf16.msra.mxu0 %v2503
  %2792 = vmatprep.subr.bf16.mxu0 0
  %2793 = vmatpush1.bf16.msra.mxu0 0
  %2794 = vmatprep.subr.bf16.mxu0 0
  %2795 = vmatpush1.bf16.msra.mxu0 0
  %2796 = vmatprep.subr.bf16.mxu0 0
  %2797 = vmatpush1.bf16.msra.mxu0 0
  %2798 = vmatprep.subr.bf16.mxu0 0
  %2799 = vmatpush1.bf16.msra.mxu0 0
  %2800 = vmatprep.subr.bf16.mxu0 0
  %2801 = vmatpush1.bf16.msra.mxu0 0
  %2802 = vmatprep.subr.bf16.mxu0 0
  %2803 = vmatpush1.bf16.msra.mxu0 0
  %2804 = vmatprep.subr.bf16.mxu0 0
  %2805 = vmatpush1.bf16.msra.mxu0 0
  %2806 = vmatprep.subr.bf16.mxu0 0
  %2807 = vmatpush1.bf16.msra.mxu0 0
  %2808 = vmatprep.subr.bf16.mxu0 0
  %2809 = vmatpush1.bf16.msra.mxu0 0
  %2810 = vmatprep.subr.bf16.mxu0 0
  %2811 = vmatpush1.bf16.msra.mxu0 0
  %2812 = vmatprep.subr.bf16.mxu0 0
  %2813 = vmatpush1.bf16.msra.mxu0 0
  %2814 = vmatprep.subr.bf16.mxu0 0
  %2815 = vmatpush1.bf16.msra.mxu0 0
  %2816 = vmatprep.subr.bf16.mxu0 0
  %2817 = vmatpush1.bf16.msra.mxu0 0
  %2818 = vmatprep.subr.bf16.mxu0 0
  %2819 = vmatpush1.bf16.msra.mxu0 0
  %2820 = vmatprep.mubr.bf16.mxu0 0
  %2821 = vmatmul.mubr.bf16.gmra.mrb[0].mxu0 %v2540
  %v2822 = vpop.f32.mrb[0].mxu0
  %v2823 = vadd.f32 %v2350, %v2822
  %v2824 = vpop.f32.mrb[0].mxu0
  %v2825 = vadd.f32 %v2354, %v2824
  %v2826 = vpop.f32.mrb[0].mxu0
  %v2827 = vpop.f32.mrb[0].mxu0
  %2828 = vdwg.mxu0
  %2829 = vmatprep.subr.bf16.mxu0 %v2490
  %2830 = vmatpush1.bf16.msra.mxu0 %v2489
  %2831 = vmatprep.subr.bf16.mxu0 %v2506
  %2832 = vmatpush1.bf16.msra.mxu0 %v2505
  %2833 = vmatprep.subr.bf16.mxu0 0
  %2834 = vmatpush1.bf16.msra.mxu0 0
  %2835 = vmatprep.subr.bf16.mxu0 0
  %2836 = vmatpush1.bf16.msra.mxu0 0
  %2837 = vmatprep.subr.bf16.mxu0 0
  %2838 = vmatpush1.bf16.msra.mxu0 0
  %2839 = vmatprep.subr.bf16.mxu0 0
  %2840 = vmatpush1.bf16.msra.mxu0 0
  %2841 = vmatprep.subr.bf16.mxu0 0
  %2842 = vmatpush1.bf16.msra.mxu0 0
  %2843 = vmatprep.subr.bf16.mxu0 0
  %2844 = vmatpush1.bf16.msra.mxu0 0
  %2845 = vmatprep.subr.bf16.mxu0 0
  %2846 = vmatpush1.bf16.msra.mxu0 0
  %2847 = vmatprep.subr.bf16.mxu0 0
  %2848 = vmatpush1.bf16.msra.mxu0 0
  %2849 = vmatprep.subr.bf16.mxu0 0
  %2850 = vmatpush1.bf16.msra.mxu0 0
  %2851 = vmatprep.subr.bf16.mxu0 0
  %2852 = vmatpush1.bf16.msra.mxu0 0
  %2853 = vmatprep.subr.bf16.mxu0 0
  %2854 = vmatpush1.bf16.msra.mxu0 0
  %2855 = vmatprep.subr.bf16.mxu0 0
  %2856 = vmatpush1.bf16.msra.mxu0 0
  %2857 = vmatprep.subr.bf16.mxu0 0
  %2858 = vmatpush1.bf16.msra.mxu0 0
  %2859 = vmatprep.subr.bf16.mxu0 0
  %2860 = vmatpush1.bf16.msra.mxu0 0
  %2861 = vmatprep.mubr.bf16.mxu0 0
  %2862 = vmatmul.mubr.bf16.gmra.mrb[0].mxu0 %v2540
  %v2863 = vpop.f32.mrb[0].mxu0
  %v2864 = vadd.f32 %v2358, %v2863
  %v2865 = vpop.f32.mrb[0].mxu0
  %v2866 = vadd.f32 %v2362, %v2865
  %v2867 = vpop.f32.mrb[0].mxu0
  %v2868 = vpop.f32.mrb[0].mxu0
  %2869 = vdwg.mxu0
  %v2870 = vmax.f32 %v2577, 0.0
  %v2871 = vmax.f32 %v2579, 0.0
  %v2872 = vmax.f32 %v2618, 0.0
  %v2873 = vmax.f32 %v2620, 0.0
  %v2874 = vmax.f32 %v2659, 0.0
  %v2875 = vmax.f32 %v2661, 0.0
  %v2876 = vmax.f32 %v2700, 0.0
  %v2877 = vmax.f32 %v2702, 0.0
  %v2878 = vmax.f32 %v2741, 0.0
  %v2879 = vmax.f32 %v2743, 0.0
  %v2880 = vmax.f32 %v2782, 0.0
  %v2881 = vmax.f32 %v2784, 0.0
  %v2882 = vmax.f32 %v2823, 0.0
  %v2883 = vmax.f32 %v2825, 0.0
  %v2884 = vmax.f32 %v2864, 0.0
  %v2885 = vmax.f32 %v2866, 0.0
  %v2886 = vpack.c.bf16 %v2870, %v2870
  %v2887 = vpack.c.bf16 %v2871, %v2871
  %v2888 = vpack.c.bf16 %v2872, %v2872
  %v2889 = vpack.c.bf16 %v2873, %v2873
  %v2890 = vpack.c.bf16 %v2874, %v2874
  %v2891 = vpack.c.bf16 %v2875, %v2875
  %v2892 = vpack.c.bf16 %v2876, %v2876
  %v2893 = vpack.c.bf16 %v2877, %v2877
  %v2894 = vpack.c.bf16 %v2878, %v2878
  %v2895 = vpack.c.bf16 %v2879, %v2879
  %v2896 = vpack.c.bf16 %v2880, %v2880
  %v2897 = vpack.c.bf16 %v2881, %v2881
  %v2898 = vpack.c.bf16 %v2882, %v2882
  %v2899 = vpack.c.bf16 %v2883, %v2883
  %v2900 = vpack.c.bf16 %v2884, %v2884
  %v2901 = vpack.c.bf16 %v2885, %v2885
  %s2902 = scalar_lea.vmem %s4, 1024
  %v2903 = vld [vmem:[%s2902] sm:$0xf]
  %v2904 = vld [vmem:[%s2902 + $0x4] sm:$0xf]
  %v2905 = vld [vmem:[%s2902 + $0x8] sm:$0xf]
  %v2906 = vld [vmem:[%s2902 + $0xc] sm:$0xf]
  %v2907 = vld [vmem:[%s2902 + $0x10] sm:$0xf]
  %v2908 = vld [vmem:[%s2902 + $0x14] sm:$0xf]
  %v2909 = vld [vmem:[%s2902 + $0x18] sm:$0xf]
  %v2910 = vld [vmem:[%s2902 + $0x1c] sm:$0xf]
  %v2911 = vld [vmem:[%s2902 + $0x20] sm:$0xf]
  %v2912 = vld [vmem:[%s2902 + $0x24] sm:$0xf]
  %v2913 = vld [vmem:[%s2902 + $0x28] sm:$0xf]
  %v2914 = vld [vmem:[%s2902 + $0x2c] sm:$0xf]
  %v2915 = vld [vmem:[%s2902 + $0x30] sm:$0xf]
  %v2916 = vld [vmem:[%s2902 + $0x34] sm:$0xf]
  %v2917 = vld [vmem:[%s2902 + $0x38] sm:$0xf]
  %v2918 = vld [vmem:[%s2902 + $0x3c] sm:$0xf]
  %v2919 = vld [vmem:[%s2902 + $0x40] sm:$0xf]
  %v2920 = vld [vmem:[%s2902 + $0x44] sm:$0xf]
  %v2921 = vld [vmem:[%s2902 + $0x48] sm:$0xf]
  %v2922 = vld [vmem:[%s2902 + $0x4c] sm:$0xf]
  %v2923 = vld [vmem:[%s2902 + $0x50] sm:$0xf]
  %v2924 = vld [vmem:[%s2902 + $0x54] sm:$0xf]
  %v2925 = vld [vmem:[%s2902 + $0x58] sm:$0xf]
  %v2926 = vld [vmem:[%s2902 + $0x5c] sm:$0xf]
  %v2927 = vld [vmem:[%s2902 + $0x60] sm:$0xf]
  %v2928 = vld [vmem:[%s2902 + $0x64] sm:$0xf]
  %v2929 = vld [vmem:[%s2902 + $0x68] sm:$0xf]
  %v2930 = vld [vmem:[%s2902 + $0x6c] sm:$0xf]
  %v2931 = vld [vmem:[%s2902 + $0x70] sm:$0xf]
  %v2932 = vld [vmem:[%s2902 + $0x74] sm:$0xf]
  %v2933 = vld [vmem:[%s2902 + $0x78] sm:$0xf]
  %v2934 = vld [vmem:[%s2902 + $0x7c] sm:$0xf]
  %v2935 = vld [vmem:[%s2902 + $0x80] sm:$0xf]
  %v2936 = vld [vmem:[%s2902 + $0x84] sm:$0xf]
  %v2937 = vld [vmem:[%s2902 + $0x88] sm:$0xf]
  %v2938 = vld [vmem:[%s2902 + $0x8c] sm:$0xf]
  %v2939 = vld [vmem:[%s2902 + $0x90] sm:$0xf]
  %v2940 = vld [vmem:[%s2902 + $0x94] sm:$0xf]
  %v2941 = vld [vmem:[%s2902 + $0x98] sm:$0xf]
  %v2942 = vld [vmem:[%s2902 + $0x9c] sm:$0xf]
  %v2943 = vld [vmem:[%s2902 + $0xa0] sm:$0xf]
  %v2944 = vld [vmem:[%s2902 + $0xa4] sm:$0xf]
  %v2945 = vld [vmem:[%s2902 + $0xa8] sm:$0xf]
  %v2946 = vld [vmem:[%s2902 + $0xac] sm:$0xf]
  %v2947 = vld [vmem:[%s2902 + $0xb0] sm:$0xf]
  %v2948 = vld [vmem:[%s2902 + $0xb4] sm:$0xf]
  %v2949 = vld [vmem:[%s2902 + $0xb8] sm:$0xf]
  %v2950 = vld [vmem:[%s2902 + $0xbc] sm:$0xf]
  %v2951 = vld [vmem:[%s2902 + $0xc0] sm:$0xf]
  %v2952 = vld [vmem:[%s2902 + $0xc4] sm:$0xf]
  %v2953 = vld [vmem:[%s2902 + $0xc8] sm:$0xf]
  %v2954 = vld [vmem:[%s2902 + $0xcc] sm:$0xf]
  %v2955 = vld [vmem:[%s2902 + $0xd0] sm:$0xf]
  %v2956 = vld [vmem:[%s2902 + $0xd4] sm:$0xf]
  %v2957 = vld [vmem:[%s2902 + $0xd8] sm:$0xf]
  %v2958 = vld [vmem:[%s2902 + $0xdc] sm:$0xf]
  %v2959 = vld [vmem:[%s2902 + $0xe0] sm:$0xf]
  %v2960 = vld [vmem:[%s2902 + $0xe4] sm:$0xf]
  %v2961 = vld [vmem:[%s2902 + $0xe8] sm:$0xf]
  %v2962 = vld [vmem:[%s2902 + $0xec] sm:$0xf]
  %v2963 = vld [vmem:[%s2902 + $0xf0] sm:$0xf]
  %v2964 = vld [vmem:[%s2902 + $0xf4] sm:$0xf]
  %v2965 = vld [vmem:[%s2902 + $0xf8] sm:$0xf]
  %v2966 = vld [vmem:[%s2902 + $0xfc] sm:$0xf]
  %v2967 = vld [vmem:[%s2902 + $0x100] sm:$0xf]
  %v2968 = vld [vmem:[%s2902 + $0x104] sm:$0xf]
  %v2969 = vld [vmem:[%s2902 + $0x108] sm:$0xf]
  %v2970 = vld [vmem:[%s2902 + $0x10c] sm:$0xf]
  %v2971 = vld [vmem:[%s2902 + $0x110] sm:$0xf]
  %v2972 = vld [vmem:[%s2902 + $0x114] sm:$0xf]
  %v2973 = vld [vmem:[%s2902 + $0x118] sm:$0xf]
  %v2974 = vld [vmem:[%s2902 + $0x11c] sm:$0xf]
  %v2975 = vld [vmem:[%s2902 + $0x120] sm:$0xf]
  %v2976 = vld [vmem:[%s2902 + $0x124] sm:$0xf]
  %v2977 = vld [vmem:[%s2902 + $0x128] sm:$0xf]
  %v2978 = vld [vmem:[%s2902 + $0x12c] sm:$0xf]
  %v2979 = vld [vmem:[%s2902 + $0x130] sm:$0xf]
  %v2980 = vld [vmem:[%s2902 + $0x134] sm:$0xf]
  %v2981 = vld [vmem:[%s2902 + $0x138] sm:$0xf]
  %v2982 = vld [vmem:[%s2902 + $0x13c] sm:$0xf]
  %v2983 = vld [vmem:[%s2902 + $0x140] sm:$0xf]
  %v2984 = vld [vmem:[%s2902 + $0x144] sm:$0xf]
  %v2985 = vld [vmem:[%s2902 + $0x148] sm:$0xf]
  %v2986 = vld [vmem:[%s2902 + $0x14c] sm:$0xf]
  %v2987 = vld [vmem:[%s2902 + $0x150] sm:$0xf]
  %v2988 = vld [vmem:[%s2902 + $0x154] sm:$0xf]
  %v2989 = vld [vmem:[%s2902 + $0x158] sm:$0xf]
  %v2990 = vld [vmem:[%s2902 + $0x15c] sm:$0xf]
  %v2991 = vld [vmem:[%s2902 + $0x160] sm:$0xf]
  %v2992 = vld [vmem:[%s2902 + $0x164] sm:$0xf]
  %v2993 = vld [vmem:[%s2902 + $0x168] sm:$0xf]
  %v2994 = vld [vmem:[%s2902 + $0x16c] sm:$0xf]
  %v2995 = vld [vmem:[%s2902 + $0x170] sm:$0xf]
  %v2996 = vld [vmem:[%s2902 + $0x174] sm:$0xf]
  %v2997 = vld [vmem:[%s2902 + $0x178] sm:$0xf]
  %v2998 = vld [vmem:[%s2902 + $0x17c] sm:$0xf]
  %v2999 = vld [vmem:[%s2902 + $0x180] sm:$0xf]
  %v3000 = vld [vmem:[%s2902 + $0x184] sm:$0xf]
  %v3001 = vld [vmem:[%s2902 + $0x188] sm:$0xf]
  %v3002 = vld [vmem:[%s2902 + $0x18c] sm:$0xf]
  %v3003 = vld [vmem:[%s2902 + $0x190] sm:$0xf]
  %v3004 = vld [vmem:[%s2902 + $0x194] sm:$0xf]
  %v3005 = vld [vmem:[%s2902 + $0x198] sm:$0xf]
  %v3006 = vld [vmem:[%s2902 + $0x19c] sm:$0xf]
  %v3007 = vld [vmem:[%s2902 + $0x1a0] sm:$0xf]
  %v3008 = vld [vmem:[%s2902 + $0x1a4] sm:$0xf]
  %v3009 = vld [vmem:[%s2902 + $0x1a8] sm:$0xf]
  %v3010 = vld [vmem:[%s2902 + $0x1ac] sm:$0xf]
  %v3011 = vld [vmem:[%s2902 + $0x1b0] sm:$0xf]
  %v3012 = vld [vmem:[%s2902 + $0x1b4] sm:$0xf]
  %v3013 = vld [vmem:[%s2902 + $0x1b8] sm:$0xf]
  %v3014 = vld [vmem:[%s2902 + $0x1bc] sm:$0xf]
  %v3015 = vld [vmem:[%s2902 + $0x1c0] sm:$0xf]
  %v3016 = vld [vmem:[%s2902 + $0x1c4] sm:$0xf]
  %v3017 = vld [vmem:[%s2902 + $0x1c8] sm:$0xf]
  %v3018 = vld [vmem:[%s2902 + $0x1cc] sm:$0xf]
  %v3019 = vld [vmem:[%s2902 + $0x1d0] sm:$0xf]
  %v3020 = vld [vmem:[%s2902 + $0x1d4] sm:$0xf]
  %v3021 = vld [vmem:[%s2902 + $0x1d8] sm:$0xf]
  %v3022 = vld [vmem:[%s2902 + $0x1dc] sm:$0xf]
  %v3023 = vld [vmem:[%s2902 + $0x1e0] sm:$0xf]
  %v3024 = vld [vmem:[%s2902 + $0x1e4] sm:$0xf]
  %v3025 = vld [vmem:[%s2902 + $0x1e8] sm:$0xf]
  %v3026 = vld [vmem:[%s2902 + $0x1ec] sm:$0xf]
  %v3027 = vld [vmem:[%s2902 + $0x1f0] sm:$0xf]
  %v3028 = vld [vmem:[%s2902 + $0x1f4] sm:$0xf]
  %v3029 = vld [vmem:[%s2902 + $0x1f8] sm:$0xf]
  %v3030 = vld [vmem:[%s2902 + $0x1fc] sm:$0xf]
  %v3031 = vld [vmem:[%s2902 + $0x200] sm:$0xf]
  %v3032 = vld [vmem:[%s2902 + $0x204] sm:$0xf]
  %v3033 = vld [vmem:[%s2902 + $0x208] sm:$0xf]
  %v3034 = vld [vmem:[%s2902 + $0x20c] sm:$0xf]
  %v3035 = vld [vmem:[%s2902 + $0x210] sm:$0xf]
  %v3036 = vld [vmem:[%s2902 + $0x214] sm:$0xf]
  %v3037 = vld [vmem:[%s2902 + $0x218] sm:$0xf]
  %v3038 = vld [vmem:[%s2902 + $0x21c] sm:$0xf]
  %v3039 = vld [vmem:[%s2902 + $0x220] sm:$0xf]
  %v3040 = vld [vmem:[%s2902 + $0x224] sm:$0xf]
  %v3041 = vld [vmem:[%s2902 + $0x228] sm:$0xf]
  %v3042 = vld [vmem:[%s2902 + $0x22c] sm:$0xf]
  %v3043 = vld [vmem:[%s2902 + $0x230] sm:$0xf]
  %v3044 = vld [vmem:[%s2902 + $0x234] sm:$0xf]
  %v3045 = vld [vmem:[%s2902 + $0x238] sm:$0xf]
  %v3046 = vld [vmem:[%s2902 + $0x23c] sm:$0xf]
  %v3047 = vld [vmem:[%s2902 + $0x240] sm:$0xf]
  %v3048 = vld [vmem:[%s2902 + $0x244] sm:$0xf]
  %v3049 = vld [vmem:[%s2902 + $0x248] sm:$0xf]
  %v3050 = vld [vmem:[%s2902 + $0x24c] sm:$0xf]
  %v3051 = vld [vmem:[%s2902 + $0x250] sm:$0xf]
  %v3052 = vld [vmem:[%s2902 + $0x254] sm:$0xf]
  %v3053 = vld [vmem:[%s2902 + $0x258] sm:$0xf]
  %v3054 = vld [vmem:[%s2902 + $0x25c] sm:$0xf]
  %v3055 = vld [vmem:[%s2902 + $0x260] sm:$0xf]
  %v3056 = vld [vmem:[%s2902 + $0x264] sm:$0xf]
  %v3057 = vld [vmem:[%s2902 + $0x268] sm:$0xf]
  %v3058 = vld [vmem:[%s2902 + $0x26c] sm:$0xf]
  %v3059 = vld [vmem:[%s2902 + $0x270] sm:$0xf]
  %v3060 = vld [vmem:[%s2902 + $0x274] sm:$0xf]
  %v3061 = vld [vmem:[%s2902 + $0x278] sm:$0xf]
  %v3062 = vld [vmem:[%s2902 + $0x27c] sm:$0xf]
  %v3063 = vld [vmem:[%s2902 + $0x280] sm:$0xf]
  %v3064 = vld [vmem:[%s2902 + $0x284] sm:$0xf]
  %v3065 = vld [vmem:[%s2902 + $0x288] sm:$0xf]
  %v3066 = vld [vmem:[%s2902 + $0x28c] sm:$0xf]
  %v3067 = vld [vmem:[%s2902 + $0x290] sm:$0xf]
  %v3068 = vld [vmem:[%s2902 + $0x294] sm:$0xf]
  %v3069 = vld [vmem:[%s2902 + $0x298] sm:$0xf]
  %v3070 = vld [vmem:[%s2902 + $0x29c] sm:$0xf]
  %v3071 = vld [vmem:[%s2902 + $0x2a0] sm:$0xf]
  %v3072 = vld [vmem:[%s2902 + $0x2a4] sm:$0xf]
  %v3073 = vld [vmem:[%s2902 + $0x2a8] sm:$0xf]
  %v3074 = vld [vmem:[%s2902 + $0x2ac] sm:$0xf]
  %v3075 = vld [vmem:[%s2902 + $0x2b0] sm:$0xf]
  %v3076 = vld [vmem:[%s2902 + $0x2b4] sm:$0xf]
  %v3077 = vld [vmem:[%s2902 + $0x2b8] sm:$0xf]
  %v3078 = vld [vmem:[%s2902 + $0x2bc] sm:$0xf]
  %v3079 = vld [vmem:[%s2902 + $0x2c0] sm:$0xf]
  %v3080 = vld [vmem:[%s2902 + $0x2c4] sm:$0xf]
  %v3081 = vld [vmem:[%s2902 + $0x2c8] sm:$0xf]
  %v3082 = vld [vmem:[%s2902 + $0x2cc] sm:$0xf]
  %v3083 = vld [vmem:[%s2902 + $0x2d0] sm:$0xf]
  %v3084 = vld [vmem:[%s2902 + $0x2d4] sm:$0xf]
  %v3085 = vld [vmem:[%s2902 + $0x2d8] sm:$0xf]
  %v3086 = vld [vmem:[%s2902 + $0x2dc] sm:$0xf]
  %v3087 = vld [vmem:[%s2902 + $0x2e0] sm:$0xf]
  %v3088 = vld [vmem:[%s2902 + $0x2e4] sm:$0xf]
  %v3089 = vld [vmem:[%s2902 + $0x2e8] sm:$0xf]
  %v3090 = vld [vmem:[%s2902 + $0x2ec] sm:$0xf]
  %v3091 = vld [vmem:[%s2902 + $0x2f0] sm:$0xf]
  %v3092 = vld [vmem:[%s2902 + $0x2f4] sm:$0xf]
  %v3093 = vld [vmem:[%s2902 + $0x2f8] sm:$0xf]
  %v3094 = vld [vmem:[%s2902 + $0x2fc] sm:$0xf]
  %v3095 = vld [vmem:[%s2902 + $0x300] sm:$0xf]
  %v3096 = vld [vmem:[%s2902 + $0x304] sm:$0xf]
  %v3097 = vld [vmem:[%s2902 + $0x308] sm:$0xf]
  %v3098 = vld [vmem:[%s2902 + $0x30c] sm:$0xf]
  %v3099 = vld [vmem:[%s2902 + $0x310] sm:$0xf]
  %v3100 = vld [vmem:[%s2902 + $0x314] sm:$0xf]
  %v3101 = vld [vmem:[%s2902 + $0x318] sm:$0xf]
  %v3102 = vld [vmem:[%s2902 + $0x31c] sm:$0xf]
  %v3103 = vld [vmem:[%s2902 + $0x320] sm:$0xf]
  %v3104 = vld [vmem:[%s2902 + $0x324] sm:$0xf]
  %v3105 = vld [vmem:[%s2902 + $0x328] sm:$0xf]
  %v3106 = vld [vmem:[%s2902 + $0x32c] sm:$0xf]
  %v3107 = vld [vmem:[%s2902 + $0x330] sm:$0xf]
  %v3108 = vld [vmem:[%s2902 + $0x334] sm:$0xf]
  %v3109 = vld [vmem:[%s2902 + $0x338] sm:$0xf]
  %v3110 = vld [vmem:[%s2902 + $0x33c] sm:$0xf]
  %v3111 = vld [vmem:[%s2902 + $0x340] sm:$0xf]
  %v3112 = vld [vmem:[%s2902 + $0x344] sm:$0xf]
  %v3113 = vld [vmem:[%s2902 + $0x348] sm:$0xf]
  %v3114 = vld [vmem:[%s2902 + $0x34c] sm:$0xf]
  %v3115 = vld [vmem:[%s2902 + $0x350] sm:$0xf]
  %v3116 = vld [vmem:[%s2902 + $0x354] sm:$0xf]
  %v3117 = vld [vmem:[%s2902 + $0x358] sm:$0xf]
  %v3118 = vld [vmem:[%s2902 + $0x35c] sm:$0xf]
  %v3119 = vld [vmem:[%s2902 + $0x360] sm:$0xf]
  %v3120 = vld [vmem:[%s2902 + $0x364] sm:$0xf]
  %v3121 = vld [vmem:[%s2902 + $0x368] sm:$0xf]
  %v3122 = vld [vmem:[%s2902 + $0x36c] sm:$0xf]
  %v3123 = vld [vmem:[%s2902 + $0x370] sm:$0xf]
  %v3124 = vld [vmem:[%s2902 + $0x374] sm:$0xf]
  %v3125 = vld [vmem:[%s2902 + $0x378] sm:$0xf]
  %v3126 = vld [vmem:[%s2902 + $0x37c] sm:$0xf]
  %v3127 = vld [vmem:[%s2902 + $0x380] sm:$0xf]
  %v3128 = vld [vmem:[%s2902 + $0x384] sm:$0xf]
  %v3129 = vld [vmem:[%s2902 + $0x388] sm:$0xf]
  %v3130 = vld [vmem:[%s2902 + $0x38c] sm:$0xf]
  %v3131 = vld [vmem:[%s2902 + $0x390] sm:$0xf]
  %v3132 = vld [vmem:[%s2902 + $0x394] sm:$0xf]
  %v3133 = vld [vmem:[%s2902 + $0x398] sm:$0xf]
  %v3134 = vld [vmem:[%s2902 + $0x39c] sm:$0xf]
  %v3135 = vld [vmem:[%s2902 + $0x3a0] sm:$0xf]
  %v3136 = vld [vmem:[%s2902 + $0x3a4] sm:$0xf]
  %v3137 = vld [vmem:[%s2902 + $0x3a8] sm:$0xf]
  %v3138 = vld [vmem:[%s2902 + $0x3ac] sm:$0xf]
  %v3139 = vld [vmem:[%s2902 + $0x3b0] sm:$0xf]
  %v3140 = vld [vmem:[%s2902 + $0x3b4] sm:$0xf]
  %v3141 = vld [vmem:[%s2902 + $0x3b8] sm:$0xf]
  %v3142 = vld [vmem:[%s2902 + $0x3bc] sm:$0xf]
  %v3143 = vld [vmem:[%s2902 + $0x3c0] sm:$0xf]
  %v3144 = vld [vmem:[%s2902 + $0x3c4] sm:$0xf]
  %v3145 = vld [vmem:[%s2902 + $0x3c8] sm:$0xf]
  %v3146 = vld [vmem:[%s2902 + $0x3cc] sm:$0xf]
  %v3147 = vld [vmem:[%s2902 + $0x3d0] sm:$0xf]
  %v3148 = vld [vmem:[%s2902 + $0x3d4] sm:$0xf]
  %v3149 = vld [vmem:[%s2902 + $0x3d8] sm:$0xf]
  %v3150 = vld [vmem:[%s2902 + $0x3dc] sm:$0xf]
  %v3151 = vld [vmem:[%s2902 + $0x3e0] sm:$0xf]
  %v3152 = vld [vmem:[%s2902 + $0x3e4] sm:$0xf]
  %v3153 = vld [vmem:[%s2902 + $0x3e8] sm:$0xf]
  %v3154 = vld [vmem:[%s2902 + $0x3ec] sm:$0xf]
  %v3155 = vld [vmem:[%s2902 + $0x3f0] sm:$0xf]
  %v3156 = vld [vmem:[%s2902 + $0x3f4] sm:$0xf]
  %v3157 = vld [vmem:[%s2902 + $0x3f8] sm:$0xf]
  %v3158 = vld [vmem:[%s2902 + $0x3fc] sm:$0xf]
  %v3159 = vlaneseq
  %v3160 = vshrl.u32 %v3159, 7
  %v3161 = vsub.s32 0, %v3160
  %v3162 = vrot.slane %v2155, %v3161
  %v3419 = vunpack.c.l.b16 %v2903
  %v3420 = vunpack.c.l.b16 %v2904
  %v3421 = vunpack.c.l.b16 %v2905
  %v3422 = vunpack.c.l.b16 %v2906
  %v3423 = vunpack.c.l.b16 %v2907
  %v3424 = vunpack.c.l.b16 %v2908
  %v3425 = vunpack.c.l.b16 %v2909
  %v3426 = vunpack.c.l.b16 %v2910
  %v3427 = vunpack.c.l.b16 %v2911
  %v3428 = vunpack.c.l.b16 %v2912
  %v3429 = vunpack.c.l.b16 %v2913
  %v3430 = vunpack.c.l.b16 %v2914
  %v3431 = vunpack.c.l.b16 %v2915
  %v3432 = vunpack.c.l.b16 %v2916
  %v3433 = vunpack.c.l.b16 %v2917
  %v3434 = vunpack.c.l.b16 %v2918
  %v3435 = vunpack.c.l.b16 %v2919
  %v3436 = vunpack.c.l.b16 %v2920
  %v3437 = vunpack.c.l.b16 %v2921
  %v3438 = vunpack.c.l.b16 %v2922
  %v3439 = vunpack.c.l.b16 %v2923
  %v3440 = vunpack.c.l.b16 %v2924
  %v3441 = vunpack.c.l.b16 %v2925
  %v3442 = vunpack.c.l.b16 %v2926
  %v3443 = vunpack.c.l.b16 %v2927
  %v3444 = vunpack.c.l.b16 %v2928
  %v3445 = vunpack.c.l.b16 %v2929
  %v3446 = vunpack.c.l.b16 %v2930
  %v3447 = vunpack.c.l.b16 %v2931
  %v3448 = vunpack.c.l.b16 %v2932
  %v3449 = vunpack.c.l.b16 %v2933
  %v3450 = vunpack.c.l.b16 %v2934
  %v3451 = vunpack.c.l.b16 %v2935
  %v3452 = vunpack.c.l.b16 %v2936
  %v3453 = vunpack.c.l.b16 %v2937
  %v3454 = vunpack.c.l.b16 %v2938
  %v3455 = vunpack.c.l.b16 %v2939
  %v3456 = vunpack.c.l.b16 %v2940
  %v3457 = vunpack.c.l.b16 %v2941
  %v3458 = vunpack.c.l.b16 %v2942
  %v3459 = vunpack.c.l.b16 %v2943
  %v3460 = vunpack.c.l.b16 %v2944
  %v3461 = vunpack.c.l.b16 %v2945
  %v3462 = vunpack.c.l.b16 %v2946
  %v3463 = vunpack.c.l.b16 %v2947
  %v3464 = vunpack.c.l.b16 %v2948
  %v3465 = vunpack.c.l.b16 %v2949
  %v3466 = vunpack.c.l.b16 %v2950
  %v3467 = vunpack.c.l.b16 %v2951
  %v3468 = vunpack.c.l.b16 %v2952
  %v3469 = vunpack.c.l.b16 %v2953
  %v3470 = vunpack.c.l.b16 %v2954
  %v3471 = vunpack.c.l.b16 %v2955
  %v3472 = vunpack.c.l.b16 %v2956
  %v3473 = vunpack.c.l.b16 %v2957
  %v3474 = vunpack.c.l.b16 %v2958
  %v3475 = vunpack.c.l.b16 %v2959
  %v3476 = vunpack.c.l.b16 %v2960
  %v3477 = vunpack.c.l.b16 %v2961
  %v3478 = vunpack.c.l.b16 %v2962
  %v3479 = vunpack.c.l.b16 %v2963
  %v3480 = vunpack.c.l.b16 %v2964
  %v3481 = vunpack.c.l.b16 %v2965
  %v3482 = vunpack.c.l.b16 %v2966
  %v3483 = vunpack.c.l.b16 %v2967
  %v3484 = vunpack.c.l.b16 %v2968
  %v3485 = vunpack.c.l.b16 %v2969
  %v3486 = vunpack.c.l.b16 %v2970
  %v3487 = vunpack.c.l.b16 %v2971
  %v3488 = vunpack.c.l.b16 %v2972
  %v3489 = vunpack.c.l.b16 %v2973
  %v3490 = vunpack.c.l.b16 %v2974
  %v3491 = vunpack.c.l.b16 %v2975
  %v3492 = vunpack.c.l.b16 %v2976
  %v3493 = vunpack.c.l.b16 %v2977
  %v3494 = vunpack.c.l.b16 %v2978
  %v3495 = vunpack.c.l.b16 %v2979
  %v3496 = vunpack.c.l.b16 %v2980
  %v3497 = vunpack.c.l.b16 %v2981
  %v3498 = vunpack.c.l.b16 %v2982
  %v3499 = vunpack.c.l.b16 %v2983
  %v3500 = vunpack.c.l.b16 %v2984
  %v3501 = vunpack.c.l.b16 %v2985
  %v3502 = vunpack.c.l.b16 %v2986
  %v3503 = vunpack.c.l.b16 %v2987
  %v3504 = vunpack.c.l.b16 %v2988
  %v3505 = vunpack.c.l.b16 %v2989
  %v3506 = vunpack.c.l.b16 %v2990
  %v3507 = vunpack.c.l.b16 %v2991
  %v3508 = vunpack.c.l.b16 %v2992
  %v3509 = vunpack.c.l.b16 %v2993
  %v3510 = vunpack.c.l.b16 %v2994
  %v3511 = vunpack.c.l.b16 %v2995
  %v3512 = vunpack.c.l.b16 %v2996
  %v3513 = vunpack.c.l.b16 %v2997
  %v3514 = vunpack.c.l.b16 %v2998
  %v3515 = vunpack.c.l.b16 %v2999
  %v3516 = vunpack.c.l.b16 %v3000
  %v3517 = vunpack.c.l.b16 %v3001
  %v3518 = vunpack.c.l.b16 %v3002
  %v3519 = vunpack.c.l.b16 %v3003
  %v3520 = vunpack.c.l.b16 %v3004
  %v3521 = vunpack.c.l.b16 %v3005
  %v3522 = vunpack.c.l.b16 %v3006
  %v3523 = vunpack.c.l.b16 %v3007
  %v3524 = vunpack.c.l.b16 %v3008
  %v3525 = vunpack.c.l.b16 %v3009
  %v3526 = vunpack.c.l.b16 %v3010
  %v3527 = vunpack.c.l.b16 %v3011
  %v3528 = vunpack.c.l.b16 %v3012
  %v3529 = vunpack.c.l.b16 %v3013
  %v3530 = vunpack.c.l.b16 %v3014
  %v3531 = vunpack.c.l.b16 %v3015
  %v3532 = vunpack.c.l.b16 %v3016
  %v3533 = vunpack.c.l.b16 %v3017
  %v3534 = vunpack.c.l.b16 %v3018
  %v3535 = vunpack.c.l.b16 %v3019
  %v3536 = vunpack.c.l.b16 %v3020
  %v3537 = vunpack.c.l.b16 %v3021
  %v3538 = vunpack.c.l.b16 %v3022
  %v3539 = vunpack.c.l.b16 %v3023
  %v3540 = vunpack.c.l.b16 %v3024
  %v3541 = vunpack.c.l.b16 %v3025
  %v3542 = vunpack.c.l.b16 %v3026
  %v3543 = vunpack.c.l.b16 %v3027
  %v3544 = vunpack.c.l.b16 %v3028
  %v3545 = vunpack.c.l.b16 %v3029
  %v3546 = vunpack.c.l.b16 %v3030
  %v3547 = vunpack.c.l.b16 %v3031
  %v3548 = vunpack.c.l.b16 %v3032
  %v3549 = vunpack.c.l.b16 %v3033
  %v3550 = vunpack.c.l.b16 %v3034
  %v3551 = vunpack.c.l.b16 %v3035
  %v3552 = vunpack.c.l.b16 %v3036
  %v3553 = vunpack.c.l.b16 %v3037
  %v3554 = vunpack.c.l.b16 %v3038
  %v3555 = vunpack.c.l.b16 %v3039
  %v3556 = vunpack.c.l.b16 %v3040
  %v3557 = vunpack.c.l.b16 %v3041
  %v3558 = vunpack.c.l.b16 %v3042
  %v3559 = vunpack.c.l.b16 %v3043
  %v3560 = vunpack.c.l.b16 %v3044
  %v3561 = vunpack.c.l.b16 %v3045
  %v3562 = vunpack.c.l.b16 %v3046
  %v3563 = vunpack.c.l.b16 %v3047
  %v3564 = vunpack.c.l.b16 %v3048
  %v3565 = vunpack.c.l.b16 %v3049
  %v3566 = vunpack.c.l.b16 %v3050
  %v3567 = vunpack.c.l.b16 %v3051
  %v3568 = vunpack.c.l.b16 %v3052
  %v3569 = vunpack.c.l.b16 %v3053
  %v3570 = vunpack.c.l.b16 %v3054
  %v3571 = vunpack.c.l.b16 %v3055
  %v3572 = vunpack.c.l.b16 %v3056
  %v3573 = vunpack.c.l.b16 %v3057
  %v3574 = vunpack.c.l.b16 %v3058
  %v3575 = vunpack.c.l.b16 %v3059
  %v3576 = vunpack.c.l.b16 %v3060
  %v3577 = vunpack.c.l.b16 %v3061
  %v3578 = vunpack.c.l.b16 %v3062
  %v3579 = vunpack.c.l.b16 %v3063
  %v3580 = vunpack.c.l.b16 %v3064
  %v3581 = vunpack.c.l.b16 %v3065
  %v3582 = vunpack.c.l.b16 %v3066
  %v3583 = vunpack.c.l.b16 %v3067
  %v3584 = vunpack.c.l.b16 %v3068
  %v3585 = vunpack.c.l.b16 %v3069
  %v3586 = vunpack.c.l.b16 %v3070
  %v3587 = vunpack.c.l.b16 %v3071
  %v3588 = vunpack.c.l.b16 %v3072
  %v3589 = vunpack.c.l.b16 %v3073
  %v3590 = vunpack.c.l.b16 %v3074
  %v3591 = vunpack.c.l.b16 %v3075
  %v3592 = vunpack.c.l.b16 %v3076
  %v3593 = vunpack.c.l.b16 %v3077
  %v3594 = vunpack.c.l.b16 %v3078
  %v3595 = vunpack.c.l.b16 %v3079
  %v3596 = vunpack.c.l.b16 %v3080
  %v3597 = vunpack.c.l.b16 %v3081
  %v3598 = vunpack.c.l.b16 %v3082
  %v3599 = vunpack.c.l.b16 %v3083
  %v3600 = vunpack.c.l.b16 %v3084
  %v3601 = vunpack.c.l.b16 %v3085
  %v3602 = vunpack.c.l.b16 %v3086
  %v3603 = vunpack.c.l.b16 %v3087
  %v3604 = vunpack.c.l.b16 %v3088
  %v3605 = vunpack.c.l.b16 %v3089
  %v3606 = vunpack.c.l.b16 %v3090
  %v3607 = vunpack.c.l.b16 %v3091
  %v3608 = vunpack.c.l.b16 %v3092
  %v3609 = vunpack.c.l.b16 %v3093
  %v3610 = vunpack.c.l.b16 %v3094
  %v3611 = vunpack.c.l.b16 %v3095
  %v3612 = vunpack.c.l.b16 %v3096
  %v3613 = vunpack.c.l.b16 %v3097
  %v3614 = vunpack.c.l.b16 %v3098
  %v3615 = vunpack.c.l.b16 %v3099
  %v3616 = vunpack.c.l.b16 %v3100
  %v3617 = vunpack.c.l.b16 %v3101
  %v3618 = vunpack.c.l.b16 %v3102
  %v3619 = vunpack.c.l.b16 %v3103
  %v3620 = vunpack.c.l.b16 %v3104
  %v3621 = vunpack.c.l.b16 %v3105
  %v3622 = vunpack.c.l.b16 %v3106
  %v3623 = vunpack.c.l.b16 %v3107
  %v3624 = vunpack.c.l.b16 %v3108
  %v3625 = vunpack.c.l.b16 %v3109
  %v3626 = vunpack.c.l.b16 %v3110
  %v3627 = vunpack.c.l.b16 %v3111
  %v3628 = vunpack.c.l.b16 %v3112
  %v3629 = vunpack.c.l.b16 %v3113
  %v3630 = vunpack.c.l.b16 %v3114
  %v3631 = vunpack.c.l.b16 %v3115
  %v3632 = vunpack.c.l.b16 %v3116
  %v3633 = vunpack.c.l.b16 %v3117
  %v3634 = vunpack.c.l.b16 %v3118
  %v3635 = vunpack.c.l.b16 %v3119
  %v3636 = vunpack.c.l.b16 %v3120
  %v3637 = vunpack.c.l.b16 %v3121
  %v3638 = vunpack.c.l.b16 %v3122
  %v3639 = vunpack.c.l.b16 %v3123
  %v3640 = vunpack.c.l.b16 %v3124
  %v3641 = vunpack.c.l.b16 %v3125
  %v3642 = vunpack.c.l.b16 %v3126
  %v3643 = vunpack.c.l.b16 %v3127
  %v3644 = vunpack.c.l.b16 %v3128
  %v3645 = vunpack.c.l.b16 %v3129
  %v3646 = vunpack.c.l.b16 %v3130
  %v3647 = vunpack.c.l.b16 %v3131
  %v3648 = vunpack.c.l.b16 %v3132
  %v3649 = vunpack.c.l.b16 %v3133
  %v3650 = vunpack.c.l.b16 %v3134
  %v3651 = vunpack.c.l.b16 %v3135
  %v3652 = vunpack.c.l.b16 %v3136
  %v3653 = vunpack.c.l.b16 %v3137
  %v3654 = vunpack.c.l.b16 %v3138
  %v3655 = vunpack.c.l.b16 %v3139
  %v3656 = vunpack.c.l.b16 %v3140
  %v3657 = vunpack.c.l.b16 %v3141
  %v3658 = vunpack.c.l.b16 %v3142
  %v3659 = vunpack.c.l.b16 %v3143
  %v3660 = vunpack.c.l.b16 %v3144
  %v3661 = vunpack.c.l.b16 %v3145
  %v3662 = vunpack.c.l.b16 %v3146
  %v3663 = vunpack.c.l.b16 %v3147
  %v3664 = vunpack.c.l.b16 %v3148
  %v3665 = vunpack.c.l.b16 %v3149
  %v3666 = vunpack.c.l.b16 %v3150
  %v3667 = vunpack.c.l.b16 %v3151
  %v3668 = vunpack.c.l.b16 %v3152
  %v3669 = vunpack.c.l.b16 %v3153
  %v3670 = vunpack.c.l.b16 %v3154
  %v3671 = vunpack.c.l.b16 %v3155
  %v3672 = vunpack.c.l.b16 %v3156
  %v3673 = vunpack.c.l.b16 %v3157
  %v3674 = vunpack.c.l.b16 %v3158
  %v3675 = vpack.c.b16 %v3420, %v3419
  %v3676 = vpack.c.b16 %v3422, %v3421
  %v3677 = vpack.c.b16 %v3424, %v3423
  %v3678 = vpack.c.b16 %v3426, %v3425
  %v3679 = vpack.c.b16 %v3428, %v3427
  %v3680 = vpack.c.b16 %v3430, %v3429
  %v3681 = vpack.c.b16 %v3432, %v3431
  %v3682 = vpack.c.b16 %v3434, %v3433
  %v3683 = vpack.c.b16 %v3436, %v3435
  %v3684 = vpack.c.b16 %v3438, %v3437
  %v3685 = vpack.c.b16 %v3440, %v3439
  %v3686 = vpack.c.b16 %v3442, %v3441
  %v3687 = vpack.c.b16 %v3444, %v3443
  %v3688 = vpack.c.b16 %v3446, %v3445
  %v3689 = vpack.c.b16 %v3448, %v3447
  %v3690 = vpack.c.b16 %v3450, %v3449
  %v3691 = vpack.c.b16 %v3452, %v3451
  %v3692 = vpack.c.b16 %v3454, %v3453
  %v3693 = vpack.c.b16 %v3456, %v3455
  %v3694 = vpack.c.b16 %v3458, %v3457
  %v3695 = vpack.c.b16 %v3460, %v3459
  %v3696 = vpack.c.b16 %v3462, %v3461
  %v3697 = vpack.c.b16 %v3464, %v3463
  %v3698 = vpack.c.b16 %v3466, %v3465
  %v3699 = vpack.c.b16 %v3468, %v3467
  %v3700 = vpack.c.b16 %v3470, %v3469
  %v3701 = vpack.c.b16 %v3472, %v3471
  %v3702 = vpack.c.b16 %v3474, %v3473
  %v3703 = vpack.c.b16 %v3476, %v3475
  %v3704 = vpack.c.b16 %v3478, %v3477
  %v3705 = vpack.c.b16 %v3480, %v3479
  %v3706 = vpack.c.b16 %v3482, %v3481
  %v3707 = vpack.c.b16 %v3484, %v3483
  %v3708 = vpack.c.b16 %v3486, %v3485
  %v3709 = vpack.c.b16 %v3488, %v3487
  %v3710 = vpack.c.b16 %v3490, %v3489
  %v3711 = vpack.c.b16 %v3492, %v3491
  %v3712 = vpack.c.b16 %v3494, %v3493
  %v3713 = vpack.c.b16 %v3496, %v3495
  %v3714 = vpack.c.b16 %v3498, %v3497
  %v3715 = vpack.c.b16 %v3500, %v3499
  %v3716 = vpack.c.b16 %v3502, %v3501
  %v3717 = vpack.c.b16 %v3504, %v3503
  %v3718 = vpack.c.b16 %v3506, %v3505
  %v3719 = vpack.c.b16 %v3508, %v3507
  %v3720 = vpack.c.b16 %v3510, %v3509
  %v3721 = vpack.c.b16 %v3512, %v3511
  %v3722 = vpack.c.b16 %v3514, %v3513
  %v3723 = vpack.c.b16 %v3516, %v3515
  %v3724 = vpack.c.b16 %v3518, %v3517
  %v3725 = vpack.c.b16 %v3520, %v3519
  %v3726 = vpack.c.b16 %v3522, %v3521
  %v3727 = vpack.c.b16 %v3524, %v3523
  %v3728 = vpack.c.b16 %v3526, %v3525
  %v3729 = vpack.c.b16 %v3528, %v3527
  %v3730 = vpack.c.b16 %v3530, %v3529
  %v3731 = vpack.c.b16 %v3532, %v3531
  %v3732 = vpack.c.b16 %v3534, %v3533
  %v3733 = vpack.c.b16 %v3536, %v3535
  %v3734 = vpack.c.b16 %v3538, %v3537
  %v3735 = vpack.c.b16 %v3540, %v3539
  %v3736 = vpack.c.b16 %v3542, %v3541
  %v3737 = vpack.c.b16 %v3544, %v3543
  %v3738 = vpack.c.b16 %v3546, %v3545
  %v3739 = vpack.c.b16 %v3548, %v3547
  %v3740 = vpack.c.b16 %v3550, %v3549
  %v3741 = vpack.c.b16 %v3552, %v3551
  %v3742 = vpack.c.b16 %v3554, %v3553
  %v3743 = vpack.c.b16 %v3556, %v3555
  %v3744 = vpack.c.b16 %v3558, %v3557
  %v3745 = vpack.c.b16 %v3560, %v3559
  %v3746 = vpack.c.b16 %v3562, %v3561
  %v3747 = vpack.c.b16 %v3564, %v3563
  %v3748 = vpack.c.b16 %v3566, %v3565
  %v3749 = vpack.c.b16 %v3568, %v3567
  %v3750 = vpack.c.b16 %v3570, %v3569
  %v3751 = vpack.c.b16 %v3572, %v3571
  %v3752 = vpack.c.b16 %v3574, %v3573
  %v3753 = vpack.c.b16 %v3576, %v3575
  %v3754 = vpack.c.b16 %v3578, %v3577
  %v3755 = vpack.c.b16 %v3580, %v3579
  %v3756 = vpack.c.b16 %v3582, %v3581
  %v3757 = vpack.c.b16 %v3584, %v3583
  %v3758 = vpack.c.b16 %v3586, %v3585
  %v3759 = vpack.c.b16 %v3588, %v3587
  %v3760 = vpack.c.b16 %v3590, %v3589
  %v3761 = vpack.c.b16 %v3592, %v3591
  %v3762 = vpack.c.b16 %v3594, %v3593
  %v3763 = vpack.c.b16 %v3596, %v3595
  %v3764 = vpack.c.b16 %v3598, %v3597
  %v3765 = vpack.c.b16 %v3600, %v3599
  %v3766 = vpack.c.b16 %v3602, %v3601
  %v3767 = vpack.c.b16 %v3604, %v3603
  %v3768 = vpack.c.b16 %v3606, %v3605
  %v3769 = vpack.c.b16 %v3608, %v3607
  %v3770 = vpack.c.b16 %v3610, %v3609
  %v3771 = vpack.c.b16 %v3612, %v3611
  %v3772 = vpack.c.b16 %v3614, %v3613
  %v3773 = vpack.c.b16 %v3616, %v3615
  %v3774 = vpack.c.b16 %v3618, %v3617
  %v3775 = vpack.c.b16 %v3620, %v3619
  %v3776 = vpack.c.b16 %v3622, %v3621
  %v3777 = vpack.c.b16 %v3624, %v3623
  %v3778 = vpack.c.b16 %v3626, %v3625
  %v3779 = vpack.c.b16 %v3628, %v3627
  %v3780 = vpack.c.b16 %v3630, %v3629
  %v3781 = vpack.c.b16 %v3632, %v3631
  %v3782 = vpack.c.b16 %v3634, %v3633
  %v3783 = vpack.c.b16 %v3636, %v3635
  %v3784 = vpack.c.b16 %v3638, %v3637
  %v3785 = vpack.c.b16 %v3640, %v3639
  %v3786 = vpack.c.b16 %v3642, %v3641
  %v3787 = vpack.c.b16 %v3644, %v3643
  %v3788 = vpack.c.b16 %v3646, %v3645
  %v3789 = vpack.c.b16 %v3648, %v3647
  %v3790 = vpack.c.b16 %v3650, %v3649
  %v3791 = vpack.c.b16 %v3652, %v3651
  %v3792 = vpack.c.b16 %v3654, %v3653
  %v3793 = vpack.c.b16 %v3656, %v3655
  %v3794 = vpack.c.b16 %v3658, %v3657
  %v3795 = vpack.c.b16 %v3660, %v3659
  %v3796 = vpack.c.b16 %v3662, %v3661
  %v3797 = vpack.c.b16 %v3664, %v3663
  %v3798 = vpack.c.b16 %v3666, %v3665
  %v3799 = vpack.c.b16 %v3668, %v3667
  %v3800 = vpack.c.b16 %v3670, %v3669
  %v3801 = vpack.c.b16 %v3672, %v3671
  %v3802 = vpack.c.b16 %v3674, %v3673
  %3931 = vmatprep.subr.bf16.mxu0 0
  %3932 = vmatpush1.bf16.msra.mxu0 %v3675
  %3933 = vmatprep.subr.bf16.mxu0 0
  %3934 = vmatpush1.bf16.msra.mxu0 %v3676
  %3935 = vmatprep.subr.bf16.mxu0 0
  %3936 = vmatpush1.bf16.msra.mxu0 %v3677
  %3937 = vmatprep.subr.bf16.mxu0 0
  %3938 = vmatpush1.bf16.msra.mxu0 %v3678
  %3939 = vmatprep.subr.bf16.mxu0 0
  %3940 = vmatpush1.bf16.msra.mxu0 %v3679
  %3941 = vmatprep.subr.bf16.mxu0 0
  %3942 = vmatpush1.bf16.msra.mxu0 %v3680
  %3943 = vmatprep.subr.bf16.mxu0 0
  %3944 = vmatpush1.bf16.msra.mxu0 %v3681
  %3945 = vmatprep.subr.bf16.mxu0 0
  %3946 = vmatpush1.bf16.msra.mxu0 %v3682
  %3947 = vmatprep.subr.bf16.mxu0 0
  %3948 = vmatpush1.bf16.msra.mxu0 %v3683
  %3949 = vmatprep.subr.bf16.mxu0 0
  %3950 = vmatpush1.bf16.msra.mxu0 %v3684
  %3951 = vmatprep.subr.bf16.mxu0 0
  %3952 = vmatpush1.bf16.msra.mxu0 %v3685
  %3953 = vmatprep.subr.bf16.mxu0 0
  %3954 = vmatpush1.bf16.msra.mxu0 %v3686
  %3955 = vmatprep.subr.bf16.mxu0 0
  %3956 = vmatpush1.bf16.msra.mxu0 %v3687
  %3957 = vmatprep.subr.bf16.mxu0 0
  %3958 = vmatpush1.bf16.msra.mxu0 %v3688
  %3959 = vmatprep.subr.bf16.mxu0 0
  %3960 = vmatpush1.bf16.msra.mxu0 %v3689
  %3961 = vmatprep.subr.bf16.mxu0 0
  %3962 = vmatpush1.bf16.msra.mxu0 %v3690
  %3963 = vmatprep.mubr.bf16.mxu0 %v2887
  %3964 = vmatmul.mubr.bf16.gmra.mrb[0].mxu0 %v2886
  %v3965 = vpop.f32.mrb[0].mxu0
  %v3966 = vadd.f32 %v3162, %v3965
  %v3967 = vpop.f32.mrb[0].mxu0
  %v3968 = vpop.f32.mrb[0].mxu0
  %v3969 = vpop.f32.mrb[0].mxu0
  %3970 = vdwg.mxu0
  %3971 = vmatprep.subr.bf16.mxu0 0
  %3972 = vmatpush1.bf16.msra.mxu0 %v3691
  %3973 = vmatprep.subr.bf16.mxu0 0
  %3974 = vmatpush1.bf16.msra.mxu0 %v3692
  %3975 = vmatprep.subr.bf16.mxu0 0
  %3976 = vmatpush1.bf16.msra.mxu0 %v3693
  %3977 = vmatprep.subr.bf16.mxu0 0
  %3978 = vmatpush1.bf16.msra.mxu0 %v3694
  %3979 = vmatprep.subr.bf16.mxu0 0
  %3980 = vmatpush1.bf16.msra.mxu0 %v3695
  %3981 = vmatprep.subr.bf16.mxu0 0
  %3982 = vmatpush1.bf16.msra.mxu0 %v3696
  %3983 = vmatprep.subr.bf16.mxu0 0
  %3984 = vmatpush1.bf16.msra.mxu0 %v3697
  %3985 = vmatprep.subr.bf16.mxu0 0
  %3986 = vmatpush1.bf16.msra.mxu0 %v3698
  %3987 = vmatprep.subr.bf16.mxu0 0
  %3988 = vmatpush1.bf16.msra.mxu0 %v3699
  %3989 = vmatprep.subr.bf16.mxu0 0
  %3990 = vmatpush1.bf16.msra.mxu0 %v3700
  %3991 = vmatprep.subr.bf16.mxu0 0
  %3992 = vmatpush1.bf16.msra.mxu0 %v3701
  %3993 = vmatprep.subr.bf16.mxu0 0
  %3994 = vmatpush1.bf16.msra.mxu0 %v3702
  %3995 = vmatprep.subr.bf16.mxu0 0
  %3996 = vmatpush1.bf16.msra.mxu0 %v3703
  %3997 = vmatprep.subr.bf16.mxu0 0
  %3998 = vmatpush1.bf16.msra.mxu0 %v3704
  %3999 = vmatprep.subr.bf16.mxu0 0
  %4000 = vmatpush1.bf16.msra.mxu0 %v3705
  %4001 = vmatprep.subr.bf16.mxu0 0
  %4002 = vmatpush1.bf16.msra.mxu0 %v3706
  %4003 = vmatprep.mubr.bf16.mxu0 %v2889
  %4004 = vmatmul.mubr.bf16.gmra.mrb[0].mxu0 %v2888
  %v4005 = vpop.f32.mrb[0].mxu0
  %v4006 = vadd.f32 %v3966, %v4005
  %v4007 = vpop.f32.mrb[0].mxu0
  %v4008 = vpop.f32.mrb[0].mxu0
  %v4009 = vpop.f32.mrb[0].mxu0
  %4010 = vdwg.mxu0
  %4011 = vmatprep.subr.bf16.mxu0 0
  %4012 = vmatpush1.bf16.msra.mxu0 %v3707
  %4013 = vmatprep.subr.bf16.mxu0 0
  %4014 = vmatpush1.bf16.msra.mxu0 %v3708
  %4015 = vmatprep.subr.bf16.mxu0 0
  %4016 = vmatpush1.bf16.msra.mxu0 %v3709
  %4017 = vmatprep.subr.bf16.mxu0 0
  %4018 = vmatpush1.bf16.msra.mxu0 %v3710
  %4019 = vmatprep.subr.bf16.mxu0 0
  %4020 = vmatpush1.bf16.msra.mxu0 %v3711
  %4021 = vmatprep.subr.bf16.mxu0 0
  %4022 = vmatpush1.bf16.msra.mxu0 %v3712
  %4023 = vmatprep.subr.bf16.mxu0 0
  %4024 = vmatpush1.bf16.msra.mxu0 %v3713
  %4025 = vmatprep.subr.bf16.mxu0 0
  %4026 = vmatpush1.bf16.msra.mxu0 %v3714
  %4027 = vmatprep.subr.bf16.mxu0 0
  %4028 = vmatpush1.bf16.msra.mxu0 %v3715
  %4029 = vmatprep.subr.bf16.mxu0 0
  %4030 = vmatpush1.bf16.msra.mxu0 %v3716
  %4031 = vmatprep.subr.bf16.mxu0 0
  %4032 = vmatpush1.bf16.msra.mxu0 %v3717
  %4033 = vmatprep.subr.bf16.mxu0 0
  %4034 = vmatpush1.bf16.msra.mxu0 %v3718
  %4035 = vmatprep.subr.bf16.mxu0 0
  %4036 = vmatpush1.bf16.msra.mxu0 %v3719
  %4037 = vmatprep.subr.bf16.mxu0 0
  %4038 = vmatpush1.bf16.msra.mxu0 %v3720
  %4039 = vmatprep.subr.bf16.mxu0 0
  %4040 = vmatpush1.bf16.msra.mxu0 %v3721
  %4041 = vmatprep.subr.bf16.mxu0 0
  %4042 = vmatpush1.bf16.msra.mxu0 %v3722
  %4043 = vmatprep.mubr.bf16.mxu0 %v2891
  %4044 = vmatmul.mubr.bf16.gmra.mrb[0].mxu0 %v2890
  %v4045 = vpop.f32.mrb[0].mxu0
  %v4046 = vadd.f32 %v4006, %v4045
  %v4047 = vpop.f32.mrb[0].mxu0
  %v4048 = vpop.f32.mrb[0].mxu0
  %v4049 = vpop.f32.mrb[0].mxu0
  %4050 = vdwg.mxu0
  %4051 = vmatprep.subr.bf16.mxu0 0
  %4052 = vmatpush1.bf16.msra.mxu0 %v3723
  %4053 = vmatprep.subr.bf16.mxu0 0
  %4054 = vmatpush1.bf16.msra.mxu0 %v3724
  %4055 = vmatprep.subr.bf16.mxu0 0
  %4056 = vmatpush1.bf16.msra.mxu0 %v3725
  %4057 = vmatprep.subr.bf16.mxu0 0
  %4058 = vmatpush1.bf16.msra.mxu0 %v3726
  %4059 = vmatprep.subr.bf16.mxu0 0
  %4060 = vmatpush1.bf16.msra.mxu0 %v3727
  %4061 = vmatprep.subr.bf16.mxu0 0
  %4062 = vmatpush1.bf16.msra.mxu0 %v3728
  %4063 = vmatprep.subr.bf16.mxu0 0
  %4064 = vmatpush1.bf16.msra.mxu0 %v3729
  %4065 = vmatprep.subr.bf16.mxu0 0
  %4066 = vmatpush1.bf16.msra.mxu0 %v3730
  %4067 = vmatprep.subr.bf16.mxu0 0
  %4068 = vmatpush1.bf16.msra.mxu0 %v3731
  %4069 = vmatprep.subr.bf16.mxu0 0
  %4070 = vmatpush1.bf16.msra.mxu0 %v3732
  %4071 = vmatprep.subr.bf16.mxu0 0
  %4072 = vmatpush1.bf16.msra.mxu0 %v3733
  %4073 = vmatprep.subr.bf16.mxu0 0
  %4074 = vmatpush1.bf16.msra.mxu0 %v3734
  %4075 = vmatprep.subr.bf16.mxu0 0
  %4076 = vmatpush1.bf16.msra.mxu0 %v3735
  %4077 = vmatprep.subr.bf16.mxu0 0
  %4078 = vmatpush1.bf16.msra.mxu0 %v3736
  %4079 = vmatprep.subr.bf16.mxu0 0
  %4080 = vmatpush1.bf16.msra.mxu0 %v3737
  %4081 = vmatprep.subr.bf16.mxu0 0
  %4082 = vmatpush1.bf16.msra.mxu0 %v3738
  %4083 = vmatprep.mubr.bf16.mxu0 %v2893
  %4084 = vmatmul.mubr.bf16.gmra.mrb[0].mxu0 %v2892
  %v4085 = vpop.f32.mrb[0].mxu0
  %v4086 = vadd.f32 %v4046, %v4085
  %v4087 = vpop.f32.mrb[0].mxu0
  %v4088 = vpop.f32.mrb[0].mxu0
  %v4089 = vpop.f32.mrb[0].mxu0
  %4090 = vdwg.mxu0
  %4091 = vmatprep.subr.bf16.mxu0 0
  %4092 = vmatpush1.bf16.msra.mxu0 %v3739
  %4093 = vmatprep.subr.bf16.mxu0 0
  %4094 = vmatpush1.bf16.msra.mxu0 %v3740
  %4095 = vmatprep.subr.bf16.mxu0 0
  %4096 = vmatpush1.bf16.msra.mxu0 %v3741
  %4097 = vmatprep.subr.bf16.mxu0 0
  %4098 = vmatpush1.bf16.msra.mxu0 %v3742
  %4099 = vmatprep.subr.bf16.mxu0 0
  %4100 = vmatpush1.bf16.msra.mxu0 %v3743
  %4101 = vmatprep.subr.bf16.mxu0 0
  %4102 = vmatpush1.bf16.msra.mxu0 %v3744
  %4103 = vmatprep.subr.bf16.mxu0 0
  %4104 = vmatpush1.bf16.msra.mxu0 %v3745
  %4105 = vmatprep.subr.bf16.mxu0 0
  %4106 = vmatpush1.bf16.msra.mxu0 %v3746
  %4107 = vmatprep.subr.bf16.mxu0 0
  %4108 = vmatpush1.bf16.msra.mxu0 %v3747
  %4109 = vmatprep.subr.bf16.mxu0 0
  %4110 = vmatpush1.bf16.msra.mxu0 %v3748
  %4111 = vmatprep.subr.bf16.mxu0 0
  %4112 = vmatpush1.bf16.msra.mxu0 %v3749
  %4113 = vmatprep.subr.bf16.mxu0 0
  %4114 = vmatpush1.bf16.msra.mxu0 %v3750
  %4115 = vmatprep.subr.bf16.mxu0 0
  %4116 = vmatpush1.bf16.msra.mxu0 %v3751
  %4117 = vmatprep.subr.bf16.mxu0 0
  %4118 = vmatpush1.bf16.msra.mxu0 %v3752
  %4119 = vmatprep.subr.bf16.mxu0 0
  %4120 = vmatpush1.bf16.msra.mxu0 %v3753
  %4121 = vmatprep.subr.bf16.mxu0 0
  %4122 = vmatpush1.bf16.msra.mxu0 %v3754
  %4123 = vmatprep.mubr.bf16.mxu0 %v2895
  %4124 = vmatmul.mubr.bf16.gmra.mrb[0].mxu0 %v2894
  %v4125 = vpop.f32.mrb[0].mxu0
  %v4126 = vadd.f32 %v4086, %v4125
  %v4127 = vpop.f32.mrb[0].mxu0
  %v4128 = vpop.f32.mrb[0].mxu0
  %v4129 = vpop.f32.mrb[0].mxu0
  %4130 = vdwg.mxu0
  %4131 = vmatprep.subr.bf16.mxu0 0
  %4132 = vmatpush1.bf16.msra.mxu0 %v3755
  %4133 = vmatprep.subr.bf16.mxu0 0
  %4134 = vmatpush1.bf16.msra.mxu0 %v3756
  %4135 = vmatprep.subr.bf16.mxu0 0
  %4136 = vmatpush1.bf16.msra.mxu0 %v3757
  %4137 = vmatprep.subr.bf16.mxu0 0
  %4138 = vmatpush1.bf16.msra.mxu0 %v3758
  %4139 = vmatprep.subr.bf16.mxu0 0
  %4140 = vmatpush1.bf16.msra.mxu0 %v3759
  %4141 = vmatprep.subr.bf16.mxu0 0
  %4142 = vmatpush1.bf16.msra.mxu0 %v3760
  %4143 = vmatprep.subr.bf16.mxu0 0
  %4144 = vmatpush1.bf16.msra.mxu0 %v3761
  %4145 = vmatprep.subr.bf16.mxu0 0
  %4146 = vmatpush1.bf16.msra.mxu0 %v3762
  %4147 = vmatprep.subr.bf16.mxu0 0
  %4148 = vmatpush1.bf16.msra.mxu0 %v3763
  %4149 = vmatprep.subr.bf16.mxu0 0
  %4150 = vmatpush1.bf16.msra.mxu0 %v3764
  %4151 = vmatprep.subr.bf16.mxu0 0
  %4152 = vmatpush1.bf16.msra.mxu0 %v3765
  %4153 = vmatprep.subr.bf16.mxu0 0
  %4154 = vmatpush1.bf16.msra.mxu0 %v3766
  %4155 = vmatprep.subr.bf16.mxu0 0
  %4156 = vmatpush1.bf16.msra.mxu0 %v3767
  %4157 = vmatprep.subr.bf16.mxu0 0
  %4158 = vmatpush1.bf16.msra.mxu0 %v3768
  %4159 = vmatprep.subr.bf16.mxu0 0
  %4160 = vmatpush1.bf16.msra.mxu0 %v3769
  %4161 = vmatprep.subr.bf16.mxu0 0
  %4162 = vmatpush1.bf16.msra.mxu0 %v3770
  %4163 = vmatprep.mubr.bf16.mxu0 %v2897
  %4164 = vmatmul.mubr.bf16.gmra.mrb[0].mxu0 %v2896
  %v4165 = vpop.f32.mrb[0].mxu0
  %v4166 = vadd.f32 %v4126, %v4165
  %v4167 = vpop.f32.mrb[0].mxu0
  %v4168 = vpop.f32.mrb[0].mxu0
  %v4169 = vpop.f32.mrb[0].mxu0
  %4170 = vdwg.mxu0
  %4171 = vmatprep.subr.bf16.mxu0 0
  %4172 = vmatpush1.bf16.msra.mxu0 %v3771
  %4173 = vmatprep.subr.bf16.mxu0 0
  %4174 = vmatpush1.bf16.msra.mxu0 %v3772
  %4175 = vmatprep.subr.bf16.mxu0 0
  %4176 = vmatpush1.bf16.msra.mxu0 %v3773
  %4177 = vmatprep.subr.bf16.mxu0 0
  %4178 = vmatpush1.bf16.msra.mxu0 %v3774
  %4179 = vmatprep.subr.bf16.mxu0 0
  %4180 = vmatpush1.bf16.msra.mxu0 %v3775
  %4181 = vmatprep.subr.bf16.mxu0 0
  %4182 = vmatpush1.bf16.msra.mxu0 %v3776
  %4183 = vmatprep.subr.bf16.mxu0 0
  %4184 = vmatpush1.bf16.msra.mxu0 %v3777
  %4185 = vmatprep.subr.bf16.mxu0 0
  %4186 = vmatpush1.bf16.msra.mxu0 %v3778
  %4187 = vmatprep.subr.bf16.mxu0 0
  %4188 = vmatpush1.bf16.msra.mxu0 %v3779
  %4189 = vmatprep.subr.bf16.mxu0 0
  %4190 = vmatpush1.bf16.msra.mxu0 %v3780
  %4191 = vmatprep.subr.bf16.mxu0 0
  %4192 = vmatpush1.bf16.msra.mxu0 %v3781
  %4193 = vmatprep.subr.bf16.mxu0 0
  %4194 = vmatpush1.bf16.msra.mxu0 %v3782
  %4195 = vmatprep.subr.bf16.mxu0 0
  %4196 = vmatpush1.bf16.msra.mxu0 %v3783
  %4197 = vmatprep.subr.bf16.mxu0 0
  %4198 = vmatpush1.bf16.msra.mxu0 %v3784
  %4199 = vmatprep.subr.bf16.mxu0 0
  %4200 = vmatpush1.bf16.msra.mxu0 %v3785
  %4201 = vmatprep.subr.bf16.mxu0 0
  %4202 = vmatpush1.bf16.msra.mxu0 %v3786
  %4203 = vmatprep.mubr.bf16.mxu0 %v2899
  %4204 = vmatmul.mubr.bf16.gmra.mrb[0].mxu0 %v2898
  %v4205 = vpop.f32.mrb[0].mxu0
  %v4206 = vadd.f32 %v4166, %v4205
  %v4207 = vpop.f32.mrb[0].mxu0
  %v4208 = vpop.f32.mrb[0].mxu0
  %v4209 = vpop.f32.mrb[0].mxu0
  %4210 = vdwg.mxu0
  %4211 = vmatprep.subr.bf16.mxu0 0
  %4212 = vmatpush1.bf16.msra.mxu0 %v3787
  %4213 = vmatprep.subr.bf16.mxu0 0
  %4214 = vmatpush1.bf16.msra.mxu0 %v3788
  %4215 = vmatprep.subr.bf16.mxu0 0
  %4216 = vmatpush1.bf16.msra.mxu0 %v3789
  %4217 = vmatprep.subr.bf16.mxu0 0
  %4218 = vmatpush1.bf16.msra.mxu0 %v3790
  %4219 = vmatprep.subr.bf16.mxu0 0
  %4220 = vmatpush1.bf16.msra.mxu0 %v3791
  %4221 = vmatprep.subr.bf16.mxu0 0
  %4222 = vmatpush1.bf16.msra.mxu0 %v3792
  %4223 = vmatprep.subr.bf16.mxu0 0
  %4224 = vmatpush1.bf16.msra.mxu0 %v3793
  %4225 = vmatprep.subr.bf16.mxu0 0
  %4226 = vmatpush1.bf16.msra.mxu0 %v3794
  %4227 = vmatprep.subr.bf16.mxu0 0
  %4228 = vmatpush1.bf16.msra.mxu0 %v3795
  %4229 = vmatprep.subr.bf16.mxu0 0
  %4230 = vmatpush1.bf16.msra.mxu0 %v3796
  %4231 = vmatprep.subr.bf16.mxu0 0
  %4232 = vmatpush1.bf16.msra.mxu0 %v3797
  %4233 = vmatprep.subr.bf16.mxu0 0
  %4234 = vmatpush1.bf16.msra.mxu0 %v3798
  %4235 = vmatprep.subr.bf16.mxu0 0
  %4236 = vmatpush1.bf16.msra.mxu0 %v3799
  %4237 = vmatprep.subr.bf16.mxu0 0
  %4238 = vmatpush1.bf16.msra.mxu0 %v3800
  %4239 = vmatprep.subr.bf16.mxu0 0
  %4240 = vmatpush1.bf16.msra.mxu0 %v3801
  %4241 = vmatprep.subr.bf16.mxu0 0
  %4242 = vmatpush1.bf16.msra.mxu0 %v3802
  %4243 = vmatprep.mubr.bf16.mxu0 %v2901
  %4244 = vmatmul.mubr.bf16.gmra.mrb[0].mxu0 %v2900
  %v4245 = vpop.f32.mrb[0].mxu0
  %v4246 = vadd.f32 %v4206, %v4245
  %v4247 = vpop.f32.mrb[0].mxu0
  %v4248 = vpop.f32.mrb[0].mxu0
  %v4249 = vpop.f32.mrb[0].mxu0
  %4250 = vdwg.mxu0
  %v4251 = vadd.f32 %v2258, %v4246
  %v4252 = vsel %vm36, %v4251, 0.0
  %4253 = vadd.xlane.f32.xlu0 %v4252
  %v4254 = vpop.xlane.xlu0 %4253
  %v4255 = vmul.f32 %v4254, %v114
  %v4256 = vsub.f32 %v4251, %v4255
  %v4257 = vmul.f32 %v4256, %v4256
  %v4258 = vsel %vm36, %v4257, 0.0
  %4259 = vadd.xlane.f32.xlu0 %v4258
  %v4260 = vpop.xlane.xlu0 %4259
  %v4261 = vmul.f32 %v4260, %v114
  %v4262 = vadd.f32 %v4261, 1e-05
  %v4263 = vrsqrt.pop %v4262
  %v4264 = vmul.f32 %v4256, %v4263
  %v4265 = vlaneseq
  %v4266 = vshrl.u32 %v4265, 7
  %v4267 = vsub.s32 0, %v4266
  %v4268 = vrot.slane %v2156, %v4267
  %v4269 = vmul.f32 %v4264, %v4268
  %v4270 = vlaneseq
  %v4271 = vshrl.u32 %v4270, 7
  %v4272 = vsub.s32 0, %v4271
  %v4273 = vrot.slane %v2157, %v4272
  %v4274 = vadd.f32 %v4269, %v4273
  %v4275 = vld [vmem:[%s1 + $0x4c] sm:$0xff]
  %v4276 = vld [vmem:[%s1 + $0x54] sm:$0xff]
  %v4277 = vld [vmem:[%s1 + $0x5c] sm:$0xff]
  %v4278 = vld [vmem:[%s1 + $0x64] sm:$0xff]
  %v4279 = vld [vmem:[%s1 + $0x6c] sm:$0x1]
  %v4280 = vlaneseq
  %v4281 = vshrl.u32 %v4280, 7
  %v4282 = vsub.s32 0, %v4281
  %v4283 = vrot.slane %v4279, %v4282
  %v4285 = vsel %vm36, %v4274, 0
  %4287 = vmatprep.subr.mxu0 0.0
  %4288 = vmatpush1.msra.mxu0 %v4275
  %4289 = vmatprep.subr.mxu0 0.0
  %4290 = vmatpush1.msra.mxu0 %v4276
  %4291 = vmatprep.subr.mxu0 0.0
  %4292 = vmatpush1.msra.mxu0 %v4277
  %4293 = vmatprep.subr.mxu0 0.0
  %4294 = vmatpush1.msra.mxu0 %v4278
  %4295 = vmatprep.subr.mxu0 0.0
  %4296 = vmatpush1.msra.mxu0 0.0
  %4297 = vmatprep.subr.mxu0 0.0
  %4298 = vmatpush1.msra.mxu0 0.0
  %4299 = vmatprep.subr.mxu0 0.0
  %4300 = vmatpush1.msra.mxu0 0.0
  %4301 = vmatprep.subr.mxu0 0.0
  %4302 = vmatpush1.msra.mxu0 0.0
  %4303 = vmatprep.subr.mxu0 0.0
  %4304 = vmatpush1.msra.mxu0 0.0
  %4305 = vmatprep.subr.mxu0 0.0
  %4306 = vmatpush1.msra.mxu0 0.0
  %4307 = vmatprep.subr.mxu0 0.0
  %4308 = vmatpush1.msra.mxu0 0.0
  %4309 = vmatprep.subr.mxu0 0.0
  %4310 = vmatpush1.msra.mxu0 0.0
  %4311 = vmatprep.subr.mxu0 0.0
  %4312 = vmatpush1.msra.mxu0 0.0
  %4313 = vmatprep.subr.mxu0 0.0
  %4314 = vmatpush1.msra.mxu0 0.0
  %4315 = vmatprep.subr.mxu0 0.0
  %4316 = vmatpush1.msra.mxu0 0.0
  %4317 = vmatprep.subr.mxu0 0.0
  %4318 = vmatpush1.msra.mxu0 0.0
  %4319 = vmatprep.subr.mxu0 0.0
  %4320 = vmatpush1.msra.mxu0 0.0
  %4321 = vmatprep.subr.mxu0 0.0
  %4322 = vmatpush1.msra.mxu0 0.0
  %4323 = vmatprep.subr.mxu0 0.0
  %4324 = vmatpush1.msra.mxu0 0.0
  %4325 = vmatprep.subr.mxu0 0.0
  %4326 = vmatpush1.msra.mxu0 0.0
  %4327 = vmatprep.subr.mxu0 0.0
  %4328 = vmatpush1.msra.mxu0 0.0
  %4329 = vmatprep.subr.mxu0 0.0
  %4330 = vmatpush1.msra.mxu0 0.0
  %4331 = vmatprep.subr.mxu0 0.0
  %4332 = vmatpush1.msra.mxu0 0.0
  %4333 = vmatprep.subr.mxu0 0.0
  %4334 = vmatpush1.msra.mxu0 0.0
  %4335 = vmatprep.subr.mxu0 0.0
  %4336 = vmatpush1.msra.mxu0 0.0
  %4337 = vmatprep.subr.mxu0 0.0
  %4338 = vmatpush1.msra.mxu0 0.0
  %4339 = vmatprep.subr.mxu0 0.0
  %4340 = vmatpush1.msra.mxu0 0.0
  %4341 = vmatprep.subr.mxu0 0.0
  %4342 = vmatpush1.msra.mxu0 0.0
  %4343 = vmatprep.subr.mxu0 0.0
  %4344 = vmatpush1.msra.mxu0 0.0
  %4345 = vmatprep.subr.mxu0 0.0
  %4346 = vmatpush1.msra.mxu0 0.0
  %4347 = vmatprep.subr.mxu0 0.0
  %4348 = vmatpush1.msra.mxu0 0.0
  %4349 = vmatprep.subr.mxu0 0.0
  %4350 = vmatpush1.msra.mxu0 0.0
  %4351 = vmatprep.mubr.f32.mxu0 0.0
  %4352 = vmatmul.mubr.f32.gmra.mrb[0].mxu0 %v4285
  %v4353 = vpop.f32.mrb[0].mxu0
  %v4354 = vadd.f32 %v4283, %v4353
  %v4355 = vpop.f32.mrb[0].mxu0
  %4356 = vdwg.mxu0
  %4357 = vst [vmem:[%s5] sm:$0xff] %v4354
  // Predicated region
  $region22: #{pose_binary_forward.1} parent=0 // pred_check
    _
  $region23: #{pose_binary_forward.1} parent=0 // pred_check_branch
    %4359 = sbr.rel (0) target = $region25
  $region24: #{pose_binary_forward.1} parent=0 // pred_region
    _
  $region25: #{pose_binary_forward.1} parent=0 // pred_fallthru
    _
  // Predicated region
  $region26: #{pose_binary_forward.1} parent=0 // pred_check
    _
  $region27: #{pose_binary_forward.1} parent=0 // pred_check_branch
    %4361 = sbr.rel (0) target = $region29
  $region28: #{pose_binary_forward.1} parent=0 // pred_region
    _
  $region29: #{pose_binary_forward.1} parent=0 // pred_fallthru
    _

</llo_original>
